<compile_context>
chip_gen: v7x
topology: tpu7x:2x2x1
jax: 0.10.0
libtpu: 0.0.40
codegen_flags: <defaults>
</compile_context>

<pallas_src>
import jax
import jax.numpy as jnp
from jax.experimental import pallas as pl
from jax.experimental.pallas import tpu as pltpu

H = 32          # hidden size
V = 64          # vocab size
T = 8           # input sequence length
MAX_LEN = 6     # greedy decode steps
SOS_TOKEN = 1

# Row offsets inside the packed bf16 weight slab (all rows are 128 lanes wide).
R_WGF_X = 0            # (H, 4H)  encoder fwd  x-projection
R_WGF_H = 32           # (H, 4H)  encoder fwd  h-projection
R_WGB_X = 64           # (H, 4H)  encoder bwd  x-projection
R_WGB_H = 96           # (H, 4H)  encoder bwd  h-projection
R_WGD_H = 128          # (H, 4H)  decoder      h-projection
R_EMBG = 160           # (V, 4H)  emb @ decoder x-projection (embedding folded in)
R_WCAT1 = 224          # (H, 128) concat-Linear, rnn_output half (lane-padded)
R_WCAT2 = 256          # (H, 128) concat-Linear, context half   (lane-padded)
R_WOUT = 288           # (128,128) output Linear, rows>=H and lanes>=V zero
W_ROWS = 416

_VMEM = pl.BlockSpec(memory_space=pltpu.MemorySpace.VMEM)


# ---------------------------------------------------------------------------
# Fused encoder + greedy-decode kernel
# ---------------------------------------------------------------------------
def greedy_decode_kernel(enc_emb_ref, w_ref, b_ref, tok_ref, score_ref):
    f32 = jnp.float32
    bf16 = jnp.bfloat16

    def gates_to_h(g, h):
        # g = [i_r+h_r | i_z+h_z | i_n | h_n]  (PyTorch GRU gate order r,z,n)
        r = jax.nn.sigmoid(g[:, :H])
        z = jax.nn.sigmoid(g[:, H:2 * H])
        n = jnp.tanh(g[:, 2 * H:3 * H] + r * g[:, 3 * H:])
        return (1.0 - z) * n + z * h

    enc_emb = enc_emb_ref[...]                                          # (T, H) bf16

    # --- hoisted encoder input projections (one batched matmul per direction) ---
    x_gates_f = jnp.dot(enc_emb, w_ref[R_WGF_X:R_WGF_X + H, :],
                        preferred_element_type=f32)                     # (T, 4H)
    x_gates_b = jnp.dot(enc_emb, w_ref[R_WGB_X:R_WGB_X + H, :],
                        preferred_element_type=f32)                     # (T, 4H)

    bg_f = b_ref[0:1, :]
    bg_b = b_ref[1:2, :]

    # --- forward encoder GRU (unrolled) ---
    h_f = jnp.zeros((1, H), f32)
    outs_f = []
    for t in range(T):
        g = (x_gates_f[t:t + 1, :]
             + jnp.dot(h_f.astype(bf16), w_ref[R_WGF_H:R_WGF_H + H, :],
                       preferred_element_type=f32)
             + bg_f)
        h_f = gates_to_h(g, h_f)
        outs_f.append(h_f)

    # --- backward encoder GRU (unrolled) ---
    h_b = jnp.zeros((1, H), f32)
    outs_b = [None] * T
    for t in range(T - 1, -1, -1):
        g = (x_gates_b[t:t + 1, :]
             + jnp.dot(h_b.astype(bf16), w_ref[R_WGB_H:R_WGB_H + H, :],
                       preferred_element_type=f32)
             + bg_b)
        h_b = gates_to_h(g, h_b)
        outs_b[t] = h_b

    # bidirectional outputs summed over directions
    enc = jnp.concatenate(outs_f, axis=0) + jnp.concatenate(outs_b, axis=0)   # (T, H) f32
    enc_bf = enc.astype(bf16)                                                 # for context matmul
    enc_t_bf = jnp.transpose(enc).astype(bf16)                                # (H, T) hoisted transpose

    bg_d = b_ref[2:3, :]
    bcat = b_ref[3:4, :]          # lanes >= H are 0
    bout = b_ref[4:5, :]          # lanes >= V are -1e30 (mask padded vocab lanes)

    lane_v = jax.lax.broadcasted_iota(jnp.int32, (1, V), 1)
    lane_128 = jax.lax.broadcasted_iota(jnp.int32, (1, 128), 1)

    tok_vec = jnp.zeros((1, 128), jnp.int32)
    score_vec = jnp.zeros((1, 128), f32)

    # decoder_hidden = encoder forward-direction final hidden (encoder_hidden[:n_layers])
    h_d = h_f

    # first decode input: SOS token through the pre-projected embedding-gates table
    onehot0 = (lane_v == SOS_TOKEN).astype(bf16)                              # (1, V)
    g_x = jnp.dot(onehot0, w_ref[R_EMBG:R_EMBG + V, :], preferred_element_type=f32)

    for step in range(MAX_LEN):                                               # unrolled
        # decoder GRU step (x-gates already projected)
        g = (g_x
             + jnp.dot(h_d.astype(bf16), w_ref[R_WGD_H:R_WGD_H + H, :],
                       preferred_element_type=f32)
             + bg_d)
        h_d = gates_to_h(g, h_d)
        h_d_bf = h_d.astype(bf16)

        # Luong dot attention over encoder outputs (transpose hoisted above)
        sc = jnp.dot(h_d_bf, enc_t_bf, preferred_element_type=f32)            # (1, T)
        sc = sc - jnp.max(sc, axis=-1, keepdims=True)
        e = jnp.exp(sc)
        attn = e * pl.reciprocal(jnp.sum(e, axis=-1, keepdims=True), approx=False)
        ctx = jnp.dot(attn.astype(bf16), enc_bf, preferred_element_type=f32)  # (1, H)

        # concat([rnn_output, context]) -> Linear -> tanh, split into 2 matmuls (no lane concat)
        co = jnp.tanh(
            jnp.dot(h_d_bf, w_ref[R_WCAT1:R_WCAT1 + H, :], preferred_element_type=f32)
            + jnp.dot(ctx.astype(bf16), w_ref[R_WCAT2:R_WCAT2 + H, :],
                      preferred_element_type=f32)
            + bcat)                                                           # (1, 128)

        # output projection; padded vocab lanes carry -1e30 bias so they never win
        logits = (jnp.dot(co.astype(bf16), w_ref[R_WOUT:R_WOUT + 128, :],
                          preferred_element_type=f32) + bout)                 # (1, 128)

        m = jnp.max(logits, axis=-1, keepdims=True)                           # (1, 1)
        sumexp = jnp.sum(jnp.exp(logits - m), axis=-1, keepdims=True)
        score = pl.reciprocal(sumexp, approx=False)        # = max softmax probability
        tok = jnp.min(jnp.where(logits >= m, lane_128, 128),
                      axis=-1, keepdims=True).astype(jnp.int32)               # first argmax

        # lane-select write into the padded accumulators (no end-of-kernel concat)
        step_mask = lane_128 == step
        tok_vec = jnp.where(step_mask, tok, tok_vec)
        score_vec = jnp.where(step_mask, score, score_vec)

        # feed greedy token back through the fused embedding+input-projection table
        onehot = (lane_v == tok).astype(bf16)                                 # (1, V)
        g_x = jnp.dot(onehot, w_ref[R_EMBG:R_EMBG + V, :], preferred_element_type=f32)

    tok_ref[...] = tok_vec                                                    # (1, 128) int32
    score_ref[...] = score_vec                                                # (1, 128) f32


# ---------------------------------------------------------------------------
# Wrappers
# ---------------------------------------------------------------------------
def _fused_greedy(enc_emb, w_slab, b_slab, max_length):
    tok, score = pl.pallas_call(
        greedy_decode_kernel,
        out_shape=(
            jax.ShapeDtypeStruct((1, 128), jnp.int32),
            jax.ShapeDtypeStruct((1, 128), jnp.float32),
        ),
        in_specs=[_VMEM, _VMEM, _VMEM],
        out_specs=(_VMEM, _VMEM),
    )(enc_emb, w_slab, b_slab)
    return tok[0, :max_length], score[0, :max_length]


def greedy_search_decoder(packed, input_seq, input_length, max_length):
    # TODO(synk): input_length / pack_padded_sequence masking omitted; full-length sequences assumed.
    enc_emb = packed["emb"][input_seq].astype(jnp.bfloat16)   # one-time gather + cast, outside the kernel
    return _fused_greedy(enc_emb, packed["w_slab"], packed["b_slab"], max_length)


# ---------------------------------------------------------------------------
# Parameter init (torch layout) + host-side packing (transpose / gate merge / slab)
# ---------------------------------------------------------------------------
def init_params(key):
    keys = jax.random.split(key, 16)
    s = 0.1

    def nrm(k, shape):
        return jax.random.normal(k, shape, jnp.float32) * s

    return {
        "embedding": nrm(keys[0], (V, H)),
        # encoder forward-direction GRU (torch layout: (3H, H) weights, gate order r,z,n)
        "enc_f_wih": nrm(keys[1], (3 * H, H)), "enc_f_whh": nrm(keys[2], (3 * H, H)),
        "enc_f_bih": nrm(keys[3], (1, 3 * H)), "enc_f_bhh": nrm(keys[4], (1, 3 * H)),
        # encoder backward-direction GRU
        "enc_b_wih": nrm(keys[5], (3 * H, H)), "enc_b_whh": nrm(keys[6], (3 * H, H)),
        "enc_b_bih": nrm(keys[7], (1, 3 * H)), "enc_b_bhh": nrm(keys[8], (1, 3 * H)),
        # decoder GRU
        "dec_wih": nrm(keys[9], (3 * H, H)), "dec_whh": nrm(keys[10], (3 * H, H)),
        "dec_bih": nrm(keys[11], (1, 3 * H)), "dec_bhh": nrm(keys[12], (1, 3 * H)),
        # concat Linear(2H -> H), split into [rnn_output | context] halves
        "wcat1": nrm(keys[13], (H, H)), "wcat2": nrm(keys[14], (H, H)),
        "bcat": jnp.zeros((1, H), jnp.float32),
        # output Linear(H -> V)
        "wout": nrm(keys[15], (V, H)),
        "bout": jnp.zeros((1, V), jnp.float32),
    }


def _pack_gru_xh(wih, whh, bih, bhh):
    """Split the merged-gate GRU into x / h projections (pre-transposed):

       x @ w_x + h @ w_h + b == [i_r+h_r | i_z+h_z | i_n | h_n]   (PyTorch GRU gates).
    """
    h = wih.shape[1]
    wih_t, whh_t = wih.T, whh.T                       # (H, 3H)
    zeros = jnp.zeros((h, h), jnp.float32)
    w_x = jnp.concatenate([wih_t[:, :h], wih_t[:, h:2 * h], wih_t[:, 2 * h:], zeros], axis=1)
    w_h = jnp.concatenate([whh_t[:, :h], whh_t[:, h:2 * h], zeros, whh_t[:, 2 * h:]], axis=1)
    b = jnp.concatenate([
        bih[:, :h] + bhh[:, :h],
        bih[:, h:2 * h] + bhh[:, h:2 * h],
        bih[:, 2 * h:],
        bhh[:, 2 * h:],
    ], axis=1)                                        # (1, 4H)
    return w_x, w_h, b


def pack_params(p):
    wgf_x, wgf_h, bg_f = _pack_gru_xh(p["enc_f_wih"], p["enc_f_whh"], p["enc_f_bih"], p["enc_f_bhh"])
    wgb_x, wgb_h, bg_b = _pack_gru_xh(p["enc_b_wih"], p["enc_b_whh"], p["enc_b_bih"], p["enc_b_bhh"])
    wgd_x, wgd_h, bg_d = _pack_gru_xh(p["dec_wih"], p["dec_whh"], p["dec_bih"], p["dec_bhh"])

    # fold the decoder embedding lookup into the GRU input projection
    emb_gates = jnp.dot(p["embedding"], wgd_x)                  # (V, 4H)

    def pad_lanes(x, fill=0.0):
        return jnp.pad(x, ((0, 0), (0, 128 - x.shape[1])), constant_values=fill)

    wcat1_p = pad_lanes(p["wcat1"].T)                           # (H, 128)
    wcat2_p = pad_lanes(p["wcat2"].T)                           # (H, 128)
    wout_p = jnp.zeros((128, 128), jnp.float32).at[:H, :V].set(p["wout"].T)

    w_slab = jnp.concatenate(
        [wgf_x, wgf_h, wgb_x, wgb_h, wgd_h, emb_gates, wcat1_p, wcat2_p, wout_p],
        axis=0).astype(jnp.bfloat16)                            # (416, 128) bf16
    assert w_slab.shape == (W_ROWS, 128)

    bcat_p = pad_lanes(p["bcat"])                               # (1, 128)
    # padded vocab lanes get -1e30 so they never win the greedy argmax / affect softmax
    bout_p = jnp.concatenate(
        [p["bout"], jnp.full((1, 128 - V), -1e30, jnp.float32)], axis=1)
    b_slab = jnp.concatenate([bg_f, bg_b, bg_d, bcat_p, bout_p], axis=0)   # (5, 128) f32

    return {"emb": p["embedding"], "w_slab": w_slab, "b_slab": b_slab}


if __name__ == "__main__":
    key = jax.random.PRNGKey(0)
    params = init_params(key)
    packed = pack_params(params)

    input_seq = jax.random.randint(jax.random.PRNGKey(1), (T,), 2, V, dtype=jnp.int32)
    input_length = jnp.array([T], dtype=jnp.int32)

    run = jax.jit(greedy_search_decoder, static_argnums=(3,))
    tokens, scores = run(packed, input_seq, input_length, MAX_LEN)
    tokens = jax.block_until_ready(tokens)
    scores = jax.block_until_ready(scores)

    assert tokens.shape == (MAX_LEN,) and tokens.dtype == jnp.int32
    assert scores.shape == (MAX_LEN,) and scores.dtype == jnp.float32
    assert bool(jnp.all(scores > 0.0)) and bool(jnp.all(scores <= 1.0))
    assert bool(jnp.all(tokens >= 0)) and bool(jnp.all(tokens < V))
    print("KERNEL_OK")
</pallas_src>

<mosaic_0001>
module attributes {stable_mosaic.version = 11 : i64} {
  func.func @greedy_decode_kernel(%arg0: memref<8x32xbf16, #tpu.memory_space<vmem>>, %arg1: memref<416x128xbf16, #tpu.memory_space<vmem>>, %arg2: memref<5x128xf32, #tpu.memory_space<vmem>>, %arg3: memref<1x128xi32, #tpu.memory_space<vmem>>, %arg4: memref<1x128xf32, #tpu.memory_space<vmem>>) attributes {dimension_semantics = [], scalar_prefetch = 0 : i64, scratch_operands = 0 : i64, tpu.core_type = #tpu.core_type<tc>} {
    %c0 = arith.constant 0 : index
    %c0_0 = arith.constant 0 : index
    %0 = vector.load %arg0[%c0, %c0_0] : memref<8x32xbf16, #tpu.memory_space<vmem>>, vector<8x32xbf16>
    %c0_1 = arith.constant 0 : index
    %c0_2 = arith.constant 0 : index
    %1 = vector.load %arg1[%c0_1, %c0_2] : memref<416x128xbf16, #tpu.memory_space<vmem>>, vector<32x128xbf16>
    %cst = arith.constant dense<0.000000e+00> : vector<8x128xf32>
    %2 = tpu.matmul %0, %1, %cst {dimension_numbers = #tpu.dot_dimension_numbers<[1], [0], [0], [1], [0, 0, 1, 1], [], []>} : vector<8x32xbf16>, vector<32x128xbf16>, vector<8x128xf32> -> vector<8x128xf32>
    %c64 = arith.constant 64 : index
    %c0_3 = arith.constant 0 : index
    %3 = vector.load %arg1[%c64, %c0_3] : memref<416x128xbf16, #tpu.memory_space<vmem>>, vector<32x128xbf16>
    %cst_4 = arith.constant dense<0.000000e+00> : vector<8x128xf32>
    %4 = tpu.matmul %0, %3, %cst_4 {dimension_numbers = #tpu.dot_dimension_numbers<[1], [0], [0], [1], [0, 0, 1, 1], [], []>} : vector<8x32xbf16>, vector<32x128xbf16>, vector<8x128xf32> -> vector<8x128xf32>
    %c0_5 = arith.constant 0 : index
    %c0_6 = arith.constant 0 : index
    %5 = vector.load %arg2[%c0_5, %c0_6] : memref<5x128xf32, #tpu.memory_space<vmem>>, vector<1x128xf32>
    %c1 = arith.constant 1 : index
    %c0_7 = arith.constant 0 : index
    %6 = vector.load %arg2[%c1, %c0_7] : memref<5x128xf32, #tpu.memory_space<vmem>>, vector<1x128xf32>
    %cst_8 = arith.constant 0.000000e+00 : f32
    %7 = vector.broadcast %cst_8 : f32 to vector<1x32xf32>
    %8 = vector.extract_strided_slice %2 {offsets = [0, 0], sizes = [1, 128], strides = [1, 1]} : vector<8x128xf32> to vector<1x128xf32>
    %9 = arith.truncf %7 : vector<1x32xf32> to vector<1x32xbf16>
    %c32 = arith.constant 32 : index
    %c0_9 = arith.constant 0 : index
    %10 = vector.load %arg1[%c32, %c0_9] : memref<416x128xbf16, #tpu.memory_space<vmem>>, vector<32x128xbf16>
    %cst_10 = arith.constant dense<0.000000e+00> : vector<1x128xf32>
    %11 = tpu.matmul %9, %10, %cst_10 {dimension_numbers = #tpu.dot_dimension_numbers<[1], [0], [0], [1], [0, 0, 1, 1], [], []>} : vector<1x32xbf16>, vector<32x128xbf16>, vector<1x128xf32> -> vector<1x128xf32>
    %12 = arith.addf %8, %11 : vector<1x128xf32>
    %13 = arith.addf %12, %5 : vector<1x128xf32>
    %14 = vector.extract_strided_slice %13 {offsets = [0, 0], sizes = [1, 32], strides = [1, 1]} : vector<1x128xf32> to vector<1x32xf32>
    %15 = arith.negf %14 : vector<1x32xf32>
    %16 = math.exp %15 : vector<1x32xf32>
    %cst_11 = arith.constant 1.000000e+00 : f32
    %17 = vector.broadcast %cst_11 : f32 to vector<1x32xf32>
    %18 = arith.addf %17, %16 : vector<1x32xf32>
    %19 = arith.divf %17, %18 : vector<1x32xf32>
    %20 = vector.extract_strided_slice %13 {offsets = [0, 32], sizes = [1, 32], strides = [1, 1]} : vector<1x128xf32> to vector<1x32xf32>
    %21 = arith.negf %20 : vector<1x32xf32>
    %22 = math.exp %21 : vector<1x32xf32>
    %cst_12 = arith.constant 1.000000e+00 : f32
    %23 = vector.broadcast %cst_12 : f32 to vector<1x32xf32>
    %24 = arith.addf %23, %22 : vector<1x32xf32>
    %25 = arith.divf %23, %24 : vector<1x32xf32>
    %26 = vector.extract_strided_slice %13 {offsets = [0, 64], sizes = [1, 32], strides = [1, 1]} : vector<1x128xf32> to vector<1x32xf32>
    %27 = vector.extract_strided_slice %13 {offsets = [0, 96], sizes = [1, 32], strides = [1, 1]} : vector<1x128xf32> to vector<1x32xf32>
    %28 = arith.mulf %19, %27 : vector<1x32xf32>
    %29 = arith.addf %26, %28 : vector<1x32xf32>
    %30 = math.tanh %29 : vector<1x32xf32>
    %cst_13 = arith.constant 1.000000e+00 : f32
    %31 = vector.broadcast %cst_13 : f32 to vector<1x32xf32>
    %32 = arith.subf %31, %25 : vector<1x32xf32>
    %33 = arith.mulf %32, %30 : vector<1x32xf32>
    %34 = arith.mulf %25, %7 : vector<1x32xf32>
    %35 = arith.addf %33, %34 : vector<1x32xf32>
    %36 = vector.extract_strided_slice %2 {offsets = [1, 0], sizes = [1, 128], strides = [1, 1]} : vector<8x128xf32> to vector<1x128xf32>
    %37 = arith.truncf %35 : vector<1x32xf32> to vector<1x32xbf16>
    %c32_14 = arith.constant 32 : index
    %c0_15 = arith.constant 0 : index
    %38 = vector.load %arg1[%c32_14, %c0_15] : memref<416x128xbf16, #tpu.memory_space<vmem>>, vector<32x128xbf16>
    %cst_16 = arith.constant dense<0.000000e+00> : vector<1x128xf32>
    %39 = tpu.matmul %37, %38, %cst_16 {dimension_numbers = #tpu.dot_dimension_numbers<[1], [0], [0], [1], [0, 0, 1, 1], [], []>} : vector<1x32xbf16>, vector<32x128xbf16>, vector<1x128xf32> -> vector<1x128xf32>
    %40 = arith.addf %36, %39 : vector<1x128xf32>
    %41 = arith.addf %40, %5 : vector<1x128xf32>
    %42 = vector.extract_strided_slice %41 {offsets = [0, 0], sizes = [1, 32], strides = [1, 1]} : vector<1x128xf32> to vector<1x32xf32>
    %43 = arith.negf %42 : vector<1x32xf32>
    %44 = math.exp %43 : vector<1x32xf32>
    %cst_17 = arith.constant 1.000000e+00 : f32
    %45 = vector.broadcast %cst_17 : f32 to vector<1x32xf32>
    %46 = arith.addf %45, %44 : vector<1x32xf32>
    %47 = arith.divf %45, %46 : vector<1x32xf32>
    %48 = vector.extract_strided_slice %41 {offsets = [0, 32], sizes = [1, 32], strides = [1, 1]} : vector<1x128xf32> to vector<1x32xf32>
    %49 = arith.negf %48 : vector<1x32xf32>
    %50 = math.exp %49 : vector<1x32xf32>
    %cst_18 = arith.constant 1.000000e+00 : f32
    %51 = vector.broadcast %cst_18 : f32 to vector<1x32xf32>
    %52 = arith.addf %51, %50 : vector<1x32xf32>
    %53 = arith.divf %51, %52 : vector<1x32xf32>
    %54 = vector.extract_strided_slice %41 {offsets = [0, 64], sizes = [1, 32], strides = [1, 1]} : vector<1x128xf32> to vector<1x32xf32>
    %55 = vector.extract_strided_slice %41 {offsets = [0, 96], sizes = [1, 32], strides = [1, 1]} : vector<1x128xf32> to vector<1x32xf32>
    %56 = arith.mulf %47, %55 : vector<1x32xf32>
    %57 = arith.addf %54, %56 : vector<1x32xf32>
    %58 = math.tanh %57 : vector<1x32xf32>
    %cst_19 = arith.constant 1.000000e+00 : f32
    %59 = vector.broadcast %cst_19 : f32 to vector<1x32xf32>
    %60 = arith.subf %59, %53 : vector<1x32xf32>
    %61 = arith.mulf %60, %58 : vector<1x32xf32>
    %62 = arith.mulf %53, %35 : vector<1x32xf32>
    %63 = arith.addf %61, %62 : vector<1x32xf32>
    %64 = vector.extract_strided_slice %2 {offsets = [2, 0], sizes = [1, 128], strides = [1, 1]} : vector<8x128xf32> to vector<1x128xf32>
    %65 = arith.truncf %63 : vector<1x32xf32> to vector<1x32xbf16>
    %c32_20 = arith.constant 32 : index
    %c0_21 = arith.constant 0 : index
    %66 = vector.load %arg1[%c32_20, %c0_21] : memref<416x128xbf16, #tpu.memory_space<vmem>>, vector<32x128xbf16>
    %cst_22 = arith.constant dense<0.000000e+00> : vector<1x128xf32>
    %67 = tpu.matmul %65, %66, %cst_22 {dimension_numbers = #tpu.dot_dimension_numbers<[1], [0], [0], [1], [0, 0, 1, 1], [], []>} : vector<1x32xbf16>, vector<32x128xbf16>, vector<1x128xf32> -> vector<1x128xf32>
    %68 = arith.addf %64, %67 : vector<1x128xf32>
    %69 = arith.addf %68, %5 : vector<1x128xf32>
    %70 = vector.extract_strided_slice %69 {offsets = [0, 0], sizes = [1, 32], strides = [1, 1]} : vector<1x128xf32> to vector<1x32xf32>
    %71 = arith.negf %70 : vector<1x32xf32>
    %72 = math.exp %71 : vector<1x32xf32>
    %cst_23 = arith.constant 1.000000e+00 : f32
    %73 = vector.broadcast %cst_23 : f32 to vector<1x32xf32>
    %74 = arith.addf %73, %72 : vector<1x32xf32>
    %75 = arith.divf %73, %74 : vector<1x32xf32>
    %76 = vector.extract_strided_slice %69 {offsets = [0, 32], sizes = [1, 32], strides = [1, 1]} : vector<1x128xf32> to vector<1x32xf32>
    %77 = arith.negf %76 : vector<1x32xf32>
    %78 = math.exp %77 : vector<1x32xf32>
    %cst_24 = arith.constant 1.000000e+00 : f32
    %79 = vector.broadcast %cst_24 : f32 to vector<1x32xf32>
    %80 = arith.addf %79, %78 : vector<1x32xf32>
    %81 = arith.divf %79, %80 : vector<1x32xf32>
    %82 = vector.extract_strided_slice %69 {offsets = [0, 64], sizes = [1, 32], strides = [1, 1]} : vector<1x128xf32> to vector<1x32xf32>
    %83 = vector.extract_strided_slice %69 {offsets = [0, 96], sizes = [1, 32], strides = [1, 1]} : vector<1x128xf32> to vector<1x32xf32>
    %84 = arith.mulf %75, %83 : vector<1x32xf32>
    %85 = arith.addf %82, %84 : vector<1x32xf32>
    %86 = math.tanh %85 : vector<1x32xf32>
    %cst_25 = arith.constant 1.000000e+00 : f32
    %87 = vector.broadcast %cst_25 : f32 to vector<1x32xf32>
    %88 = arith.subf %87, %81 : vector<1x32xf32>
    %89 = arith.mulf %88, %86 : vector<1x32xf32>
    %90 = arith.mulf %81, %63 : vector<1x32xf32>
    %91 = arith.addf %89, %90 : vector<1x32xf32>
    %92 = vector.extract_strided_slice %2 {offsets = [3, 0], sizes = [1, 128], strides = [1, 1]} : vector<8x128xf32> to vector<1x128xf32>
    %93 = arith.truncf %91 : vector<1x32xf32> to vector<1x32xbf16>
    %c32_26 = arith.constant 32 : index
    %c0_27 = arith.constant 0 : index
    %94 = vector.load %arg1[%c32_26, %c0_27] : memref<416x128xbf16, #tpu.memory_space<vmem>>, vector<32x128xbf16>
    %cst_28 = arith.constant dense<0.000000e+00> : vector<1x128xf32>
    %95 = tpu.matmul %93, %94, %cst_28 {dimension_numbers = #tpu.dot_dimension_numbers<[1], [0], [0], [1], [0, 0, 1, 1], [], []>} : vector<1x32xbf16>, vector<32x128xbf16>, vector<1x128xf32> -> vector<1x128xf32>
    %96 = arith.addf %92, %95 : vector<1x128xf32>
    %97 = arith.addf %96, %5 : vector<1x128xf32>
    %98 = vector.extract_strided_slice %97 {offsets = [0, 0], sizes = [1, 32], strides = [1, 1]} : vector<1x128xf32> to vector<1x32xf32>
    %99 = arith.negf %98 : vector<1x32xf32>
    %100 = math.exp %99 : vector<1x32xf32>
    %cst_29 = arith.constant 1.000000e+00 : f32
    %101 = vector.broadcast %cst_29 : f32 to vector<1x32xf32>
    %102 = arith.addf %101, %100 : vector<1x32xf32>
    %103 = arith.divf %101, %102 : vector<1x32xf32>
    %104 = vector.extract_strided_slice %97 {offsets = [0, 32], sizes = [1, 32], strides = [1, 1]} : vector<1x128xf32> to vector<1x32xf32>
    %105 = arith.negf %104 : vector<1x32xf32>
    %106 = math.exp %105 : vector<1x32xf32>
    %cst_30 = arith.constant 1.000000e+00 : f32
    %107 = vector.broadcast %cst_30 : f32 to vector<1x32xf32>
    %108 = arith.addf %107, %106 : vector<1x32xf32>
    %109 = arith.divf %107, %108 : vector<1x32xf32>
    %110 = vector.extract_strided_slice %97 {offsets = [0, 64], sizes = [1, 32], strides = [1, 1]} : vector<1x128xf32> to vector<1x32xf32>
    %111 = vector.extract_strided_slice %97 {offsets = [0, 96], sizes = [1, 32], strides = [1, 1]} : vector<1x128xf32> to vector<1x32xf32>
    %112 = arith.mulf %103, %111 : vector<1x32xf32>
    %113 = arith.addf %110, %112 : vector<1x32xf32>
    %114 = math.tanh %113 : vector<1x32xf32>
    %cst_31 = arith.constant 1.000000e+00 : f32
    %115 = vector.broadcast %cst_31 : f32 to vector<1x32xf32>
    %116 = arith.subf %115, %109 : vector<1x32xf32>
    %117 = arith.mulf %116, %114 : vector<1x32xf32>
    %118 = arith.mulf %109, %91 : vector<1x32xf32>
    %119 = arith.addf %117, %118 : vector<1x32xf32>
    %120 = vector.extract_strided_slice %2 {offsets = [4, 0], sizes = [1, 128], strides = [1, 1]} : vector<8x128xf32> to vector<1x128xf32>
    %121 = arith.truncf %119 : vector<1x32xf32> to vector<1x32xbf16>
    %c32_32 = arith.constant 32 : index
    %c0_33 = arith.constant 0 : index
    %122 = vector.load %arg1[%c32_32, %c0_33] : memref<416x128xbf16, #tpu.memory_space<vmem>>, vector<32x128xbf16>
    %cst_34 = arith.constant dense<0.000000e+00> : vector<1x128xf32>
    %123 = tpu.matmul %121, %122, %cst_34 {dimension_numbers = #tpu.dot_dimension_numbers<[1], [0], [0], [1], [0, 0, 1, 1], [], []>} : vector<1x32xbf16>, vector<32x128xbf16>, vector<1x128xf32> -> vector<1x128xf32>
    %124 = arith.addf %120, %123 : vector<1x128xf32>
    %125 = arith.addf %124, %5 : vector<1x128xf32>
    %126 = vector.extract_strided_slice %125 {offsets = [0, 0], sizes = [1, 32], strides = [1, 1]} : vector<1x128xf32> to vector<1x32xf32>
    %127 = arith.negf %126 : vector<1x32xf32>
    %128 = math.exp %127 : vector<1x32xf32>
    %cst_35 = arith.constant 1.000000e+00 : f32
    %129 = vector.broadcast %cst_35 : f32 to vector<1x32xf32>
    %130 = arith.addf %129, %128 : vector<1x32xf32>
    %131 = arith.divf %129, %130 : vector<1x32xf32>
    %132 = vector.extract_strided_slice %125 {offsets = [0, 32], sizes = [1, 32], strides = [1, 1]} : vector<1x128xf32> to vector<1x32xf32>
    %133 = arith.negf %132 : vector<1x32xf32>
    %134 = math.exp %133 : vector<1x32xf32>
    %cst_36 = arith.constant 1.000000e+00 : f32
    %135 = vector.broadcast %cst_36 : f32 to vector<1x32xf32>
    %136 = arith.addf %135, %134 : vector<1x32xf32>
    %137 = arith.divf %135, %136 : vector<1x32xf32>
    %138 = vector.extract_strided_slice %125 {offsets = [0, 64], sizes = [1, 32], strides = [1, 1]} : vector<1x128xf32> to vector<1x32xf32>
    %139 = vector.extract_strided_slice %125 {offsets = [0, 96], sizes = [1, 32], strides = [1, 1]} : vector<1x128xf32> to vector<1x32xf32>
    %140 = arith.mulf %131, %139 : vector<1x32xf32>
    %141 = arith.addf %138, %140 : vector<1x32xf32>
    %142 = math.tanh %141 : vector<1x32xf32>
    %cst_37 = arith.constant 1.000000e+00 : f32
    %143 = vector.broadcast %cst_37 : f32 to vector<1x32xf32>
    %144 = arith.subf %143, %137 : vector<1x32xf32>
    %145 = arith.mulf %144, %142 : vector<1x32xf32>
    %146 = arith.mulf %137, %119 : vector<1x32xf32>
    %147 = arith.addf %145, %146 : vector<1x32xf32>
    %148 = vector.extract_strided_slice %2 {offsets = [5, 0], sizes = [1, 128], strides = [1, 1]} : vector<8x128xf32> to vector<1x128xf32>
    %149 = arith.truncf %147 : vector<1x32xf32> to vector<1x32xbf16>
    %c32_38 = arith.constant 32 : index
    %c0_39 = arith.constant 0 : index
    %150 = vector.load %arg1[%c32_38, %c0_39] : memref<416x128xbf16, #tpu.memory_space<vmem>>, vector<32x128xbf16>
    %cst_40 = arith.constant dense<0.000000e+00> : vector<1x128xf32>
    %151 = tpu.matmul %149, %150, %cst_40 {dimension_numbers = #tpu.dot_dimension_numbers<[1], [0], [0], [1], [0, 0, 1, 1], [], []>} : vector<1x32xbf16>, vector<32x128xbf16>, vector<1x128xf32> -> vector<1x128xf32>
    %152 = arith.addf %148, %151 : vector<1x128xf32>
    %153 = arith.addf %152, %5 : vector<1x128xf32>
    %154 = vector.extract_strided_slice %153 {offsets = [0, 0], sizes = [1, 32], strides = [1, 1]} : vector<1x128xf32> to vector<1x32xf32>
    %155 = arith.negf %154 : vector<1x32xf32>
    %156 = math.exp %155 : vector<1x32xf32>
    %cst_41 = arith.constant 1.000000e+00 : f32
    %157 = vector.broadcast %cst_41 : f32 to vector<1x32xf32>
    %158 = arith.addf %157, %156 : vector<1x32xf32>
    %159 = arith.divf %157, %158 : vector<1x32xf32>
    %160 = vector.extract_strided_slice %153 {offsets = [0, 32], sizes = [1, 32], strides = [1, 1]} : vector<1x128xf32> to vector<1x32xf32>
    %161 = arith.negf %160 : vector<1x32xf32>
    %162 = math.exp %161 : vector<1x32xf32>
    %cst_42 = arith.constant 1.000000e+00 : f32
    %163 = vector.broadcast %cst_42 : f32 to vector<1x32xf32>
    %164 = arith.addf %163, %162 : vector<1x32xf32>
    %165 = arith.divf %163, %164 : vector<1x32xf32>
    %166 = vector.extract_strided_slice %153 {offsets = [0, 64], sizes = [1, 32], strides = [1, 1]} : vector<1x128xf32> to vector<1x32xf32>
    %167 = vector.extract_strided_slice %153 {offsets = [0, 96], sizes = [1, 32], strides = [1, 1]} : vector<1x128xf32> to vector<1x32xf32>
    %168 = arith.mulf %159, %167 : vector<1x32xf32>
    %169 = arith.addf %166, %168 : vector<1x32xf32>
    %170 = math.tanh %169 : vector<1x32xf32>
    %cst_43 = arith.constant 1.000000e+00 : f32
    %171 = vector.broadcast %cst_43 : f32 to vector<1x32xf32>
    %172 = arith.subf %171, %165 : vector<1x32xf32>
    %173 = arith.mulf %172, %170 : vector<1x32xf32>
    %174 = arith.mulf %165, %147 : vector<1x32xf32>
    %175 = arith.addf %173, %174 : vector<1x32xf32>
    %176 = vector.extract_strided_slice %2 {offsets = [6, 0], sizes = [1, 128], strides = [1, 1]} : vector<8x128xf32> to vector<1x128xf32>
    %177 = arith.truncf %175 : vector<1x32xf32> to vector<1x32xbf16>
    %c32_44 = arith.constant 32 : index
    %c0_45 = arith.constant 0 : index
    %178 = vector.load %arg1[%c32_44, %c0_45] : memref<416x128xbf16, #tpu.memory_space<vmem>>, vector<32x128xbf16>
    %cst_46 = arith.constant dense<0.000000e+00> : vector<1x128xf32>
    %179 = tpu.matmul %177, %178, %cst_46 {dimension_numbers = #tpu.dot_dimension_numbers<[1], [0], [0], [1], [0, 0, 1, 1], [], []>} : vector<1x32xbf16>, vector<32x128xbf16>, vector<1x128xf32> -> vector<1x128xf32>
    %180 = arith.addf %176, %179 : vector<1x128xf32>
    %181 = arith.addf %180, %5 : vector<1x128xf32>
    %182 = vector.extract_strided_slice %181 {offsets = [0, 0], sizes = [1, 32], strides = [1, 1]} : vector<1x128xf32> to vector<1x32xf32>
    %183 = arith.negf %182 : vector<1x32xf32>
    %184 = math.exp %183 : vector<1x32xf32>
    %cst_47 = arith.constant 1.000000e+00 : f32
    %185 = vector.broadcast %cst_47 : f32 to vector<1x32xf32>
    %186 = arith.addf %185, %184 : vector<1x32xf32>
    %187 = arith.divf %185, %186 : vector<1x32xf32>
    %188 = vector.extract_strided_slice %181 {offsets = [0, 32], sizes = [1, 32], strides = [1, 1]} : vector<1x128xf32> to vector<1x32xf32>
    %189 = arith.negf %188 : vector<1x32xf32>
    %190 = math.exp %189 : vector<1x32xf32>
    %cst_48 = arith.constant 1.000000e+00 : f32
    %191 = vector.broadcast %cst_48 : f32 to vector<1x32xf32>
    %192 = arith.addf %191, %190 : vector<1x32xf32>
    %193 = arith.divf %191, %192 : vector<1x32xf32>
    %194 = vector.extract_strided_slice %181 {offsets = [0, 64], sizes = [1, 32], strides = [1, 1]} : vector<1x128xf32> to vector<1x32xf32>
    %195 = vector.extract_strided_slice %181 {offsets = [0, 96], sizes = [1, 32], strides = [1, 1]} : vector<1x128xf32> to vector<1x32xf32>
    %196 = arith.mulf %187, %195 : vector<1x32xf32>
    %197 = arith.addf %194, %196 : vector<1x32xf32>
    %198 = math.tanh %197 : vector<1x32xf32>
    %cst_49 = arith.constant 1.000000e+00 : f32
    %199 = vector.broadcast %cst_49 : f32 to vector<1x32xf32>
    %200 = arith.subf %199, %193 : vector<1x32xf32>
    %201 = arith.mulf %200, %198 : vector<1x32xf32>
    %202 = arith.mulf %193, %175 : vector<1x32xf32>
    %203 = arith.addf %201, %202 : vector<1x32xf32>
    %204 = vector.extract_strided_slice %2 {offsets = [7, 0], sizes = [1, 128], strides = [1, 1]} : vector<8x128xf32> to vector<1x128xf32>
    %205 = arith.truncf %203 : vector<1x32xf32> to vector<1x32xbf16>
    %c32_50 = arith.constant 32 : index
    %c0_51 = arith.constant 0 : index
    %206 = vector.load %arg1[%c32_50, %c0_51] : memref<416x128xbf16, #tpu.memory_space<vmem>>, vector<32x128xbf16>
    %cst_52 = arith.constant dense<0.000000e+00> : vector<1x128xf32>
    %207 = tpu.matmul %205, %206, %cst_52 {dimension_numbers = #tpu.dot_dimension_numbers<[1], [0], [0], [1], [0, 0, 1, 1], [], []>} : vector<1x32xbf16>, vector<32x128xbf16>, vector<1x128xf32> -> vector<1x128xf32>
    %208 = arith.addf %204, %207 : vector<1x128xf32>
    %209 = arith.addf %208, %5 : vector<1x128xf32>
    %210 = vector.extract_strided_slice %209 {offsets = [0, 0], sizes = [1, 32], strides = [1, 1]} : vector<1x128xf32> to vector<1x32xf32>
    %211 = arith.negf %210 : vector<1x32xf32>
    %212 = math.exp %211 : vector<1x32xf32>
    %cst_53 = arith.constant 1.000000e+00 : f32
    %213 = vector.broadcast %cst_53 : f32 to vector<1x32xf32>
    %214 = arith.addf %213, %212 : vector<1x32xf32>
    %215 = arith.divf %213, %214 : vector<1x32xf32>
    %216 = vector.extract_strided_slice %209 {offsets = [0, 32], sizes = [1, 32], strides = [1, 1]} : vector<1x128xf32> to vector<1x32xf32>
    %217 = arith.negf %216 : vector<1x32xf32>
    %218 = math.exp %217 : vector<1x32xf32>
    %cst_54 = arith.constant 1.000000e+00 : f32
    %219 = vector.broadcast %cst_54 : f32 to vector<1x32xf32>
    %220 = arith.addf %219, %218 : vector<1x32xf32>
    %221 = arith.divf %219, %220 : vector<1x32xf32>
    %222 = vector.extract_strided_slice %209 {offsets = [0, 64], sizes = [1, 32], strides = [1, 1]} : vector<1x128xf32> to vector<1x32xf32>
    %223 = vector.extract_strided_slice %209 {offsets = [0, 96], sizes = [1, 32], strides = [1, 1]} : vector<1x128xf32> to vector<1x32xf32>
    %224 = arith.mulf %215, %223 : vector<1x32xf32>
    %225 = arith.addf %222, %224 : vector<1x32xf32>
    %226 = math.tanh %225 : vector<1x32xf32>
    %cst_55 = arith.constant 1.000000e+00 : f32
    %227 = vector.broadcast %cst_55 : f32 to vector<1x32xf32>
    %228 = arith.subf %227, %221 : vector<1x32xf32>
    %229 = arith.mulf %228, %226 : vector<1x32xf32>
    %230 = arith.mulf %221, %203 : vector<1x32xf32>
    %231 = arith.addf %229, %230 : vector<1x32xf32>
    %cst_56 = arith.constant 0.000000e+00 : f32
    %232 = vector.broadcast %cst_56 : f32 to vector<1x32xf32>
    %233 = vector.extract_strided_slice %4 {offsets = [7, 0], sizes = [1, 128], strides = [1, 1]} : vector<8x128xf32> to vector<1x128xf32>
    %234 = arith.truncf %232 : vector<1x32xf32> to vector<1x32xbf16>
    %c96 = arith.constant 96 : index
    %c0_57 = arith.constant 0 : index
    %235 = vector.load %arg1[%c96, %c0_57] : memref<416x128xbf16, #tpu.memory_space<vmem>>, vector<32x128xbf16>
    %cst_58 = arith.constant dense<0.000000e+00> : vector<1x128xf32>
    %236 = tpu.matmul %234, %235, %cst_58 {dimension_numbers = #tpu.dot_dimension_numbers<[1], [0], [0], [1], [0, 0, 1, 1], [], []>} : vector<1x32xbf16>, vector<32x128xbf16>, vector<1x128xf32> -> vector<1x128xf32>
    %237 = arith.addf %233, %236 : vector<1x128xf32>
    %238 = arith.addf %237, %6 : vector<1x128xf32>
    %239 = vector.extract_strided_slice %238 {offsets = [0, 0], sizes = [1, 32], strides = [1, 1]} : vector<1x128xf32> to vector<1x32xf32>
    %240 = arith.negf %239 : vector<1x32xf32>
    %241 = math.exp %240 : vector<1x32xf32>
    %cst_59 = arith.constant 1.000000e+00 : f32
    %242 = vector.broadcast %cst_59 : f32 to vector<1x32xf32>
    %243 = arith.addf %242, %241 : vector<1x32xf32>
    %244 = arith.divf %242, %243 : vector<1x32xf32>
    %245 = vector.extract_strided_slice %238 {offsets = [0, 32], sizes = [1, 32], strides = [1, 1]} : vector<1x128xf32> to vector<1x32xf32>
    %246 = arith.negf %245 : vector<1x32xf32>
    %247 = math.exp %246 : vector<1x32xf32>
    %cst_60 = arith.constant 1.000000e+00 : f32
    %248 = vector.broadcast %cst_60 : f32 to vector<1x32xf32>
    %249 = arith.addf %248, %247 : vector<1x32xf32>
    %250 = arith.divf %248, %249 : vector<1x32xf32>
    %251 = vector.extract_strided_slice %238 {offsets = [0, 64], sizes = [1, 32], strides = [1, 1]} : vector<1x128xf32> to vector<1x32xf32>
    %252 = vector.extract_strided_slice %238 {offsets = [0, 96], sizes = [1, 32], strides = [1, 1]} : vector<1x128xf32> to vector<1x32xf32>
    %253 = arith.mulf %244, %252 : vector<1x32xf32>
    %254 = arith.addf %251, %253 : vector<1x32xf32>
    %255 = math.tanh %254 : vector<1x32xf32>
    %cst_61 = arith.constant 1.000000e+00 : f32
    %256 = vector.broadcast %cst_61 : f32 to vector<1x32xf32>
    %257 = arith.subf %256, %250 : vector<1x32xf32>
    %258 = arith.mulf %257, %255 : vector<1x32xf32>
    %259 = arith.mulf %250, %232 : vector<1x32xf32>
    %260 = arith.addf %258, %259 : vector<1x32xf32>
    %261 = vector.extract_strided_slice %4 {offsets = [6, 0], sizes = [1, 128], strides = [1, 1]} : vector<8x128xf32> to vector<1x128xf32>
    %262 = arith.truncf %260 : vector<1x32xf32> to vector<1x32xbf16>
    %c96_62 = arith.constant 96 : index
    %c0_63 = arith.constant 0 : index
    %263 = vector.load %arg1[%c96_62, %c0_63] : memref<416x128xbf16, #tpu.memory_space<vmem>>, vector<32x128xbf16>
    %cst_64 = arith.constant dense<0.000000e+00> : vector<1x128xf32>
    %264 = tpu.matmul %262, %263, %cst_64 {dimension_numbers = #tpu.dot_dimension_numbers<[1], [0], [0], [1], [0, 0, 1, 1], [], []>} : vector<1x32xbf16>, vector<32x128xbf16>, vector<1x128xf32> -> vector<1x128xf32>
    %265 = arith.addf %261, %264 : vector<1x128xf32>
    %266 = arith.addf %265, %6 : vector<1x128xf32>
    %267 = vector.extract_strided_slice %266 {offsets = [0, 0], sizes = [1, 32], strides = [1, 1]} : vector<1x128xf32> to vector<1x32xf32>
    %268 = arith.negf %267 : vector<1x32xf32>
    %269 = math.exp %268 : vector<1x32xf32>
    %cst_65 = arith.constant 1.000000e+00 : f32
    %270 = vector.broadcast %cst_65 : f32 to vector<1x32xf32>
    %271 = arith.addf %270, %269 : vector<1x32xf32>
    %272 = arith.divf %270, %271 : vector<1x32xf32>
    %273 = vector.extract_strided_slice %266 {offsets = [0, 32], sizes = [1, 32], strides = [1, 1]} : vector<1x128xf32> to vector<1x32xf32>
    %274 = arith.negf %273 : vector<1x32xf32>
    %275 = math.exp %274 : vector<1x32xf32>
    %cst_66 = arith.constant 1.000000e+00 : f32
    %276 = vector.broadcast %cst_66 : f32 to vector<1x32xf32>
    %277 = arith.addf %276, %275 : vector<1x32xf32>
    %278 = arith.divf %276, %277 : vector<1x32xf32>
    %279 = vector.extract_strided_slice %266 {offsets = [0, 64], sizes = [1, 32], strides = [1, 1]} : vector<1x128xf32> to vector<1x32xf32>
    %280 = vector.extract_strided_slice %266 {offsets = [0, 96], sizes = [1, 32], strides = [1, 1]} : vector<1x128xf32> to vector<1x32xf32>
    %281 = arith.mulf %272, %280 : vector<1x32xf32>
    %282 = arith.addf %279, %281 : vector<1x32xf32>
    %283 = math.tanh %282 : vector<1x32xf32>
    %cst_67 = arith.constant 1.000000e+00 : f32
    %284 = vector.broadcast %cst_67 : f32 to vector<1x32xf32>
    %285 = arith.subf %284, %278 : vector<1x32xf32>
    %286 = arith.mulf %285, %283 : vector<1x32xf32>
    %287 = arith.mulf %278, %260 : vector<1x32xf32>
    %288 = arith.addf %286, %287 : vector<1x32xf32>
    %289 = vector.extract_strided_slice %4 {offsets = [5, 0], sizes = [1, 128], strides = [1, 1]} : vector<8x128xf32> to vector<1x128xf32>
    %290 = arith.truncf %288 : vector<1x32xf32> to vector<1x32xbf16>
    %c96_68 = arith.constant 96 : index
    %c0_69 = arith.constant 0 : index
    %291 = vector.load %arg1[%c96_68, %c0_69] : memref<416x128xbf16, #tpu.memory_space<vmem>>, vector<32x128xbf16>
    %cst_70 = arith.constant dense<0.000000e+00> : vector<1x128xf32>
    %292 = tpu.matmul %290, %291, %cst_70 {dimension_numbers = #tpu.dot_dimension_numbers<[1], [0], [0], [1], [0, 0, 1, 1], [], []>} : vector<1x32xbf16>, vector<32x128xbf16>, vector<1x128xf32> -> vector<1x128xf32>
    %293 = arith.addf %289, %292 : vector<1x128xf32>
    %294 = arith.addf %293, %6 : vector<1x128xf32>
    %295 = vector.extract_strided_slice %294 {offsets = [0, 0], sizes = [1, 32], strides = [1, 1]} : vector<1x128xf32> to vector<1x32xf32>
    %296 = arith.negf %295 : vector<1x32xf32>
    %297 = math.exp %296 : vector<1x32xf32>
    %cst_71 = arith.constant 1.000000e+00 : f32
    %298 = vector.broadcast %cst_71 : f32 to vector<1x32xf32>
    %299 = arith.addf %298, %297 : vector<1x32xf32>
    %300 = arith.divf %298, %299 : vector<1x32xf32>
    %301 = vector.extract_strided_slice %294 {offsets = [0, 32], sizes = [1, 32], strides = [1, 1]} : vector<1x128xf32> to vector<1x32xf32>
    %302 = arith.negf %301 : vector<1x32xf32>
    %303 = math.exp %302 : vector<1x32xf32>
    %cst_72 = arith.constant 1.000000e+00 : f32
    %304 = vector.broadcast %cst_72 : f32 to vector<1x32xf32>
    %305 = arith.addf %304, %303 : vector<1x32xf32>
    %306 = arith.divf %304, %305 : vector<1x32xf32>
    %307 = vector.extract_strided_slice %294 {offsets = [0, 64], sizes = [1, 32], strides = [1, 1]} : vector<1x128xf32> to vector<1x32xf32>
    %308 = vector.extract_strided_slice %294 {offsets = [0, 96], sizes = [1, 32], strides = [1, 1]} : vector<1x128xf32> to vector<1x32xf32>
    %309 = arith.mulf %300, %308 : vector<1x32xf32>
    %310 = arith.addf %307, %309 : vector<1x32xf32>
    %311 = math.tanh %310 : vector<1x32xf32>
    %cst_73 = arith.constant 1.000000e+00 : f32
    %312 = vector.broadcast %cst_73 : f32 to vector<1x32xf32>
    %313 = arith.subf %312, %306 : vector<1x32xf32>
    %314 = arith.mulf %313, %311 : vector<1x32xf32>
    %315 = arith.mulf %306, %288 : vector<1x32xf32>
    %316 = arith.addf %314, %315 : vector<1x32xf32>
    %317 = vector.extract_strided_slice %4 {offsets = [4, 0], sizes = [1, 128], strides = [1, 1]} : vector<8x128xf32> to vector<1x128xf32>
    %318 = arith.truncf %316 : vector<1x32xf32> to vector<1x32xbf16>
    %c96_74 = arith.constant 96 : index
    %c0_75 = arith.constant 0 : index
    %319 = vector.load %arg1[%c96_74, %c0_75] : memref<416x128xbf16, #tpu.memory_space<vmem>>, vector<32x128xbf16>
    %cst_76 = arith.constant dense<0.000000e+00> : vector<1x128xf32>
    %320 = tpu.matmul %318, %319, %cst_76 {dimension_numbers = #tpu.dot_dimension_numbers<[1], [0], [0], [1], [0, 0, 1, 1], [], []>} : vector<1x32xbf16>, vector<32x128xbf16>, vector<1x128xf32> -> vector<1x128xf32>
    %321 = arith.addf %317, %320 : vector<1x128xf32>
    %322 = arith.addf %321, %6 : vector<1x128xf32>
    %323 = vector.extract_strided_slice %322 {offsets = [0, 0], sizes = [1, 32], strides = [1, 1]} : vector<1x128xf32> to vector<1x32xf32>
    %324 = arith.negf %323 : vector<1x32xf32>
    %325 = math.exp %324 : vector<1x32xf32>
    %cst_77 = arith.constant 1.000000e+00 : f32
    %326 = vector.broadcast %cst_77 : f32 to vector<1x32xf32>
    %327 = arith.addf %326, %325 : vector<1x32xf32>
    %328 = arith.divf %326, %327 : vector<1x32xf32>
    %329 = vector.extract_strided_slice %322 {offsets = [0, 32], sizes = [1, 32], strides = [1, 1]} : vector<1x128xf32> to vector<1x32xf32>
    %330 = arith.negf %329 : vector<1x32xf32>
    %331 = math.exp %330 : vector<1x32xf32>
    %cst_78 = arith.constant 1.000000e+00 : f32
    %332 = vector.broadcast %cst_78 : f32 to vector<1x32xf32>
    %333 = arith.addf %332, %331 : vector<1x32xf32>
    %334 = arith.divf %332, %333 : vector<1x32xf32>
    %335 = vector.extract_strided_slice %322 {offsets = [0, 64], sizes = [1, 32], strides = [1, 1]} : vector<1x128xf32> to vector<1x32xf32>
    %336 = vector.extract_strided_slice %322 {offsets = [0, 96], sizes = [1, 32], strides = [1, 1]} : vector<1x128xf32> to vector<1x32xf32>
    %337 = arith.mulf %328, %336 : vector<1x32xf32>
    %338 = arith.addf %335, %337 : vector<1x32xf32>
    %339 = math.tanh %338 : vector<1x32xf32>
    %cst_79 = arith.constant 1.000000e+00 : f32
    %340 = vector.broadcast %cst_79 : f32 to vector<1x32xf32>
    %341 = arith.subf %340, %334 : vector<1x32xf32>
    %342 = arith.mulf %341, %339 : vector<1x32xf32>
    %343 = arith.mulf %334, %316 : vector<1x32xf32>
    %344 = arith.addf %342, %343 : vector<1x32xf32>
    %345 = vector.extract_strided_slice %4 {offsets = [3, 0], sizes = [1, 128], strides = [1, 1]} : vector<8x128xf32> to vector<1x128xf32>
    %346 = arith.truncf %344 : vector<1x32xf32> to vector<1x32xbf16>
    %c96_80 = arith.constant 96 : index
    %c0_81 = arith.constant 0 : index
    %347 = vector.load %arg1[%c96_80, %c0_81] : memref<416x128xbf16, #tpu.memory_space<vmem>>, vector<32x128xbf16>
    %cst_82 = arith.constant dense<0.000000e+00> : vector<1x128xf32>
    %348 = tpu.matmul %346, %347, %cst_82 {dimension_numbers = #tpu.dot_dimension_numbers<[1], [0], [0], [1], [0, 0, 1, 1], [], []>} : vector<1x32xbf16>, vector<32x128xbf16>, vector<1x128xf32> -> vector<1x128xf32>
    %349 = arith.addf %345, %348 : vector<1x128xf32>
    %350 = arith.addf %349, %6 : vector<1x128xf32>
    %351 = vector.extract_strided_slice %350 {offsets = [0, 0], sizes = [1, 32], strides = [1, 1]} : vector<1x128xf32> to vector<1x32xf32>
    %352 = arith.negf %351 : vector<1x32xf32>
    %353 = math.exp %352 : vector<1x32xf32>
    %cst_83 = arith.constant 1.000000e+00 : f32
    %354 = vector.broadcast %cst_83 : f32 to vector<1x32xf32>
    %355 = arith.addf %354, %353 : vector<1x32xf32>
    %356 = arith.divf %354, %355 : vector<1x32xf32>
    %357 = vector.extract_strided_slice %350 {offsets = [0, 32], sizes = [1, 32], strides = [1, 1]} : vector<1x128xf32> to vector<1x32xf32>
    %358 = arith.negf %357 : vector<1x32xf32>
    %359 = math.exp %358 : vector<1x32xf32>
    %cst_84 = arith.constant 1.000000e+00 : f32
    %360 = vector.broadcast %cst_84 : f32 to vector<1x32xf32>
    %361 = arith.addf %360, %359 : vector<1x32xf32>
    %362 = arith.divf %360, %361 : vector<1x32xf32>
    %363 = vector.extract_strided_slice %350 {offsets = [0, 64], sizes = [1, 32], strides = [1, 1]} : vector<1x128xf32> to vector<1x32xf32>
    %364 = vector.extract_strided_slice %350 {offsets = [0, 96], sizes = [1, 32], strides = [1, 1]} : vector<1x128xf32> to vector<1x32xf32>
    %365 = arith.mulf %356, %364 : vector<1x32xf32>
    %366 = arith.addf %363, %365 : vector<1x32xf32>
    %367 = math.tanh %366 : vector<1x32xf32>
    %cst_85 = arith.constant 1.000000e+00 : f32
    %368 = vector.broadcast %cst_85 : f32 to vector<1x32xf32>
    %369 = arith.subf %368, %362 : vector<1x32xf32>
    %370 = arith.mulf %369, %367 : vector<1x32xf32>
    %371 = arith.mulf %362, %344 : vector<1x32xf32>
    %372 = arith.addf %370, %371 : vector<1x32xf32>
    %373 = vector.extract_strided_slice %4 {offsets = [2, 0], sizes = [1, 128], strides = [1, 1]} : vector<8x128xf32> to vector<1x128xf32>
    %374 = arith.truncf %372 : vector<1x32xf32> to vector<1x32xbf16>
    %c96_86 = arith.constant 96 : index
    %c0_87 = arith.constant 0 : index
    %375 = vector.load %arg1[%c96_86, %c0_87] : memref<416x128xbf16, #tpu.memory_space<vmem>>, vector<32x128xbf16>
    %cst_88 = arith.constant dense<0.000000e+00> : vector<1x128xf32>
    %376 = tpu.matmul %374, %375, %cst_88 {dimension_numbers = #tpu.dot_dimension_numbers<[1], [0], [0], [1], [0, 0, 1, 1], [], []>} : vector<1x32xbf16>, vector<32x128xbf16>, vector<1x128xf32> -> vector<1x128xf32>
    %377 = arith.addf %373, %376 : vector<1x128xf32>
    %378 = arith.addf %377, %6 : vector<1x128xf32>
    %379 = vector.extract_strided_slice %378 {offsets = [0, 0], sizes = [1, 32], strides = [1, 1]} : vector<1x128xf32> to vector<1x32xf32>
    %380 = arith.negf %379 : vector<1x32xf32>
    %381 = math.exp %380 : vector<1x32xf32>
    %cst_89 = arith.constant 1.000000e+00 : f32
    %382 = vector.broadcast %cst_89 : f32 to vector<1x32xf32>
    %383 = arith.addf %382, %381 : vector<1x32xf32>
    %384 = arith.divf %382, %383 : vector<1x32xf32>
    %385 = vector.extract_strided_slice %378 {offsets = [0, 32], sizes = [1, 32], strides = [1, 1]} : vector<1x128xf32> to vector<1x32xf32>
    %386 = arith.negf %385 : vector<1x32xf32>
    %387 = math.exp %386 : vector<1x32xf32>
    %cst_90 = arith.constant 1.000000e+00 : f32
    %388 = vector.broadcast %cst_90 : f32 to vector<1x32xf32>
    %389 = arith.addf %388, %387 : vector<1x32xf32>
    %390 = arith.divf %388, %389 : vector<1x32xf32>
    %391 = vector.extract_strided_slice %378 {offsets = [0, 64], sizes = [1, 32], strides = [1, 1]} : vector<1x128xf32> to vector<1x32xf32>
    %392 = vector.extract_strided_slice %378 {offsets = [0, 96], sizes = [1, 32], strides = [1, 1]} : vector<1x128xf32> to vector<1x32xf32>
    %393 = arith.mulf %384, %392 : vector<1x32xf32>
    %394 = arith.addf %391, %393 : vector<1x32xf32>
    %395 = math.tanh %394 : vector<1x32xf32>
    %cst_91 = arith.constant 1.000000e+00 : f32
    %396 = vector.broadcast %cst_91 : f32 to vector<1x32xf32>
    %397 = arith.subf %396, %390 : vector<1x32xf32>
    %398 = arith.mulf %397, %395 : vector<1x32xf32>
    %399 = arith.mulf %390, %372 : vector<1x32xf32>
    %400 = arith.addf %398, %399 : vector<1x32xf32>
    %401 = vector.extract_strided_slice %4 {offsets = [1, 0], sizes = [1, 128], strides = [1, 1]} : vector<8x128xf32> to vector<1x128xf32>
    %402 = arith.truncf %400 : vector<1x32xf32> to vector<1x32xbf16>
    %c96_92 = arith.constant 96 : index
    %c0_93 = arith.constant 0 : index
    %403 = vector.load %arg1[%c96_92, %c0_93] : memref<416x128xbf16, #tpu.memory_space<vmem>>, vector<32x128xbf16>
    %cst_94 = arith.constant dense<0.000000e+00> : vector<1x128xf32>
    %404 = tpu.matmul %402, %403, %cst_94 {dimension_numbers = #tpu.dot_dimension_numbers<[1], [0], [0], [1], [0, 0, 1, 1], [], []>} : vector<1x32xbf16>, vector<32x128xbf16>, vector<1x128xf32> -> vector<1x128xf32>
    %405 = arith.addf %401, %404 : vector<1x128xf32>
    %406 = arith.addf %405, %6 : vector<1x128xf32>
    %407 = vector.extract_strided_slice %406 {offsets = [0, 0], sizes = [1, 32], strides = [1, 1]} : vector<1x128xf32> to vector<1x32xf32>
    %408 = arith.negf %407 : vector<1x32xf32>
    %409 = math.exp %408 : vector<1x32xf32>
    %cst_95 = arith.constant 1.000000e+00 : f32
    %410 = vector.broadcast %cst_95 : f32 to vector<1x32xf32>
    %411 = arith.addf %410, %409 : vector<1x32xf32>
    %412 = arith.divf %410, %411 : vector<1x32xf32>
    %413 = vector.extract_strided_slice %406 {offsets = [0, 32], sizes = [1, 32], strides = [1, 1]} : vector<1x128xf32> to vector<1x32xf32>
    %414 = arith.negf %413 : vector<1x32xf32>
    %415 = math.exp %414 : vector<1x32xf32>
    %cst_96 = arith.constant 1.000000e+00 : f32
    %416 = vector.broadcast %cst_96 : f32 to vector<1x32xf32>
    %417 = arith.addf %416, %415 : vector<1x32xf32>
    %418 = arith.divf %416, %417 : vector<1x32xf32>
    %419 = vector.extract_strided_slice %406 {offsets = [0, 64], sizes = [1, 32], strides = [1, 1]} : vector<1x128xf32> to vector<1x32xf32>
    %420 = vector.extract_strided_slice %406 {offsets = [0, 96], sizes = [1, 32], strides = [1, 1]} : vector<1x128xf32> to vector<1x32xf32>
    %421 = arith.mulf %412, %420 : vector<1x32xf32>
    %422 = arith.addf %419, %421 : vector<1x32xf32>
    %423 = math.tanh %422 : vector<1x32xf32>
    %cst_97 = arith.constant 1.000000e+00 : f32
    %424 = vector.broadcast %cst_97 : f32 to vector<1x32xf32>
    %425 = arith.subf %424, %418 : vector<1x32xf32>
    %426 = arith.mulf %425, %423 : vector<1x32xf32>
    %427 = arith.mulf %418, %400 : vector<1x32xf32>
    %428 = arith.addf %426, %427 : vector<1x32xf32>
    %429 = vector.extract_strided_slice %4 {offsets = [0, 0], sizes = [1, 128], strides = [1, 1]} : vector<8x128xf32> to vector<1x128xf32>
    %430 = arith.truncf %428 : vector<1x32xf32> to vector<1x32xbf16>
    %c96_98 = arith.constant 96 : index
    %c0_99 = arith.constant 0 : index
    %431 = vector.load %arg1[%c96_98, %c0_99] : memref<416x128xbf16, #tpu.memory_space<vmem>>, vector<32x128xbf16>
    %cst_100 = arith.constant dense<0.000000e+00> : vector<1x128xf32>
    %432 = tpu.matmul %430, %431, %cst_100 {dimension_numbers = #tpu.dot_dimension_numbers<[1], [0], [0], [1], [0, 0, 1, 1], [], []>} : vector<1x32xbf16>, vector<32x128xbf16>, vector<1x128xf32> -> vector<1x128xf32>
    %433 = arith.addf %429, %432 : vector<1x128xf32>
    %434 = arith.addf %433, %6 : vector<1x128xf32>
    %435 = vector.extract_strided_slice %434 {offsets = [0, 0], sizes = [1, 32], strides = [1, 1]} : vector<1x128xf32> to vector<1x32xf32>
    %436 = arith.negf %435 : vector<1x32xf32>
    %437 = math.exp %436 : vector<1x32xf32>
    %cst_101 = arith.constant 1.000000e+00 : f32
    %438 = vector.broadcast %cst_101 : f32 to vector<1x32xf32>
    %439 = arith.addf %438, %437 : vector<1x32xf32>
    %440 = arith.divf %438, %439 : vector<1x32xf32>
    %441 = vector.extract_strided_slice %434 {offsets = [0, 32], sizes = [1, 32], strides = [1, 1]} : vector<1x128xf32> to vector<1x32xf32>
    %442 = arith.negf %441 : vector<1x32xf32>
    %443 = math.exp %442 : vector<1x32xf32>
    %cst_102 = arith.constant 1.000000e+00 : f32
    %444 = vector.broadcast %cst_102 : f32 to vector<1x32xf32>
    %445 = arith.addf %444, %443 : vector<1x32xf32>
    %446 = arith.divf %444, %445 : vector<1x32xf32>
    %447 = vector.extract_strided_slice %434 {offsets = [0, 64], sizes = [1, 32], strides = [1, 1]} : vector<1x128xf32> to vector<1x32xf32>
    %448 = vector.extract_strided_slice %434 {offsets = [0, 96], sizes = [1, 32], strides = [1, 1]} : vector<1x128xf32> to vector<1x32xf32>
    %449 = arith.mulf %440, %448 : vector<1x32xf32>
    %450 = arith.addf %447, %449 : vector<1x32xf32>
    %451 = math.tanh %450 : vector<1x32xf32>
    %cst_103 = arith.constant 1.000000e+00 : f32
    %452 = vector.broadcast %cst_103 : f32 to vector<1x32xf32>
    %453 = arith.subf %452, %446 : vector<1x32xf32>
    %454 = arith.mulf %453, %451 : vector<1x32xf32>
    %455 = arith.mulf %446, %428 : vector<1x32xf32>
    %456 = arith.addf %454, %455 : vector<1x32xf32>
    %457 = tpu.concatenate %35, %63, %91, %119, %147, %175, %203, %231 in 0 : vector<1x32xf32>, vector<1x32xf32>, vector<1x32xf32>, vector<1x32xf32>, vector<1x32xf32>, vector<1x32xf32>, vector<1x32xf32>, vector<1x32xf32> -> vector<8x32xf32>
    %458 = tpu.concatenate %456, %428, %400, %372, %344, %316, %288, %260 in 0 : vector<1x32xf32>, vector<1x32xf32>, vector<1x32xf32>, vector<1x32xf32>, vector<1x32xf32>, vector<1x32xf32>, vector<1x32xf32>, vector<1x32xf32> -> vector<8x32xf32>
    %459 = arith.addf %457, %458 : vector<8x32xf32>
    %460 = arith.truncf %459 : vector<8x32xf32> to vector<8x32xbf16>
    %461 = tpu.transpose %459, [1, 0] : vector<8x32xf32> -> vector<32x8xf32>
    %462 = arith.truncf %461 : vector<32x8xf32> to vector<32x8xbf16>
    %c2 = arith.constant 2 : index
    %c0_104 = arith.constant 0 : index
    %463 = vector.load %arg2[%c2, %c0_104] : memref<5x128xf32, #tpu.memory_space<vmem>>, vector<1x128xf32>
    %c3 = arith.constant 3 : index
    %c0_105 = arith.constant 0 : index
    %464 = vector.load %arg2[%c3, %c0_105] : memref<5x128xf32, #tpu.memory_space<vmem>>, vector<1x128xf32>
    %c4 = arith.constant 4 : index
    %c0_106 = arith.constant 0 : index
    %465 = vector.load %arg2[%c4, %c0_106] : memref<5x128xf32, #tpu.memory_space<vmem>>, vector<1x128xf32>
    %466 = tpu.iota {dimensions = array<i32: 1>} : vector<1x64xi32>
    %467 = tpu.iota {dimensions = array<i32: 1>} : vector<1x128xi32>
    %c0_i32 = arith.constant 0 : i32
    %468 = vector.broadcast %c0_i32 : i32 to vector<1x128xi32>
    %cst_107 = arith.constant 0.000000e+00 : f32
    %469 = vector.broadcast %cst_107 : f32 to vector<1x128xf32>
    %c1_i32 = arith.constant 1 : i32
    %470 = vector.broadcast %c1_i32 : i32 to vector<1x64xi32>
    %471 = arith.cmpi eq, %466, %470 : vector<1x64xi32>
    %472 = arith.extui %471 : vector<1x64xi1> to vector<1x64xi32>
    %473 = arith.sitofp %472 : vector<1x64xi32> to vector<1x64xf32>
    %474 = arith.truncf %473 : vector<1x64xf32> to vector<1x64xbf16>
    %c160 = arith.constant 160 : index
    %c0_108 = arith.constant 0 : index
    %475 = vector.load %arg1[%c160, %c0_108] : memref<416x128xbf16, #tpu.memory_space<vmem>>, vector<64x128xbf16>
    %cst_109 = arith.constant dense<0.000000e+00> : vector<1x128xf32>
    %476 = tpu.matmul %474, %475, %cst_109 {dimension_numbers = #tpu.dot_dimension_numbers<[1], [0], [0], [1], [0, 0, 1, 1], [], []>} : vector<1x64xbf16>, vector<64x128xbf16>, vector<1x128xf32> -> vector<1x128xf32>
    %477 = arith.truncf %231 : vector<1x32xf32> to vector<1x32xbf16>
    %c128 = arith.constant 128 : index
    %c0_110 = arith.constant 0 : index
    %478 = vector.load %arg1[%c128, %c0_110] : memref<416x128xbf16, #tpu.memory_space<vmem>>, vector<32x128xbf16>
    %cst_111 = arith.constant dense<0.000000e+00> : vector<1x128xf32>
    %479 = tpu.matmul %477, %478, %cst_111 {dimension_numbers = #tpu.dot_dimension_numbers<[1], [0], [0], [1], [0, 0, 1, 1], [], []>} : vector<1x32xbf16>, vector<32x128xbf16>, vector<1x128xf32> -> vector<1x128xf32>
    %480 = arith.addf %476, %479 : vector<1x128xf32>
    %481 = arith.addf %480, %463 : vector<1x128xf32>
    %482 = vector.extract_strided_slice %481 {offsets = [0, 0], sizes = [1, 32], strides = [1, 1]} : vector<1x128xf32> to vector<1x32xf32>
    %483 = arith.negf %482 : vector<1x32xf32>
    %484 = math.exp %483 : vector<1x32xf32>
    %cst_112 = arith.constant 1.000000e+00 : f32
    %485 = vector.broadcast %cst_112 : f32 to vector<1x32xf32>
    %486 = arith.addf %485, %484 : vector<1x32xf32>
    %487 = arith.divf %485, %486 : vector<1x32xf32>
    %488 = vector.extract_strided_slice %481 {offsets = [0, 32], sizes = [1, 32], strides = [1, 1]} : vector<1x128xf32> to vector<1x32xf32>
    %489 = arith.negf %488 : vector<1x32xf32>
    %490 = math.exp %489 : vector<1x32xf32>
    %cst_113 = arith.constant 1.000000e+00 : f32
    %491 = vector.broadcast %cst_113 : f32 to vector<1x32xf32>
    %492 = arith.addf %491, %490 : vector<1x32xf32>
    %493 = arith.divf %491, %492 : vector<1x32xf32>
    %494 = vector.extract_strided_slice %481 {offsets = [0, 64], sizes = [1, 32], strides = [1, 1]} : vector<1x128xf32> to vector<1x32xf32>
    %495 = vector.extract_strided_slice %481 {offsets = [0, 96], sizes = [1, 32], strides = [1, 1]} : vector<1x128xf32> to vector<1x32xf32>
    %496 = arith.mulf %487, %495 : vector<1x32xf32>
    %497 = arith.addf %494, %496 : vector<1x32xf32>
    %498 = math.tanh %497 : vector<1x32xf32>
    %cst_114 = arith.constant 1.000000e+00 : f32
    %499 = vector.broadcast %cst_114 : f32 to vector<1x32xf32>
    %500 = arith.subf %499, %493 : vector<1x32xf32>
    %501 = arith.mulf %500, %498 : vector<1x32xf32>
    %502 = arith.mulf %493, %231 : vector<1x32xf32>
    %503 = arith.addf %501, %502 : vector<1x32xf32>
    %504 = arith.truncf %503 : vector<1x32xf32> to vector<1x32xbf16>
    %cst_115 = arith.constant dense<0.000000e+00> : vector<1x8xf32>
    %505 = tpu.matmul %504, %462, %cst_115 {dimension_numbers = #tpu.dot_dimension_numbers<[1], [0], [0], [1], [0, 0, 1, 1], [], []>} : vector<1x32xbf16>, vector<32x8xbf16>, vector<1x8xf32> -> vector<1x8xf32>
    %cst_116 = arith.constant dense<0xFF800000> : vector<1xf32>
    %506 = vector.multi_reduction <maximumf>, %505, %cst_116 [1] : vector<1x8xf32> to vector<1xf32>
    %507 = vector.shape_cast %506 : vector<1xf32> to vector<1x1xf32>
    %508 = vector.broadcast %507 : vector<1x1xf32> to vector<1x8xf32>
    %509 = arith.subf %505, %508 : vector<1x8xf32>
    %510 = math.exp %509 : vector<1x8xf32>
    %cst_117 = arith.constant dense<0.000000e+00> : vector<1xf32>
    %511 = vector.multi_reduction <add>, %510, %cst_117 [1] : vector<1x8xf32> to vector<1xf32>
    %512 = vector.shape_cast %511 : vector<1xf32> to vector<1x1xf32>
    %513 = tpu.reciprocal %512 : vector<1x1xf32> -> vector<1x1xf32>
    %514 = vector.broadcast %513 : vector<1x1xf32> to vector<1x8xf32>
    %515 = arith.mulf %510, %514 : vector<1x8xf32>
    %516 = arith.truncf %515 : vector<1x8xf32> to vector<1x8xbf16>
    %cst_118 = arith.constant dense<0.000000e+00> : vector<1x32xf32>
    %517 = tpu.matmul %516, %460, %cst_118 {dimension_numbers = #tpu.dot_dimension_numbers<[1], [0], [0], [1], [0, 0, 1, 1], [], []>} : vector<1x8xbf16>, vector<8x32xbf16>, vector<1x32xf32> -> vector<1x32xf32>
    %c224 = arith.constant 224 : index
    %c0_119 = arith.constant 0 : index
    %518 = vector.load %arg1[%c224, %c0_119] : memref<416x128xbf16, #tpu.memory_space<vmem>>, vector<32x128xbf16>
    %cst_120 = arith.constant dense<0.000000e+00> : vector<1x128xf32>
    %519 = tpu.matmul %504, %518, %cst_120 {dimension_numbers = #tpu.dot_dimension_numbers<[1], [0], [0], [1], [0, 0, 1, 1], [], []>} : vector<1x32xbf16>, vector<32x128xbf16>, vector<1x128xf32> -> vector<1x128xf32>
    %520 = arith.truncf %517 : vector<1x32xf32> to vector<1x32xbf16>
    %c256 = arith.constant 256 : index
    %c0_121 = arith.constant 0 : index
    %521 = vector.load %arg1[%c256, %c0_121] : memref<416x128xbf16, #tpu.memory_space<vmem>>, vector<32x128xbf16>
    %cst_122 = arith.constant dense<0.000000e+00> : vector<1x128xf32>
    %522 = tpu.matmul %520, %521, %cst_122 {dimension_numbers = #tpu.dot_dimension_numbers<[1], [0], [0], [1], [0, 0, 1, 1], [], []>} : vector<1x32xbf16>, vector<32x128xbf16>, vector<1x128xf32> -> vector<1x128xf32>
    %523 = arith.addf %519, %522 : vector<1x128xf32>
    %524 = arith.addf %523, %464 : vector<1x128xf32>
    %525 = math.tanh %524 : vector<1x128xf32>
    %526 = arith.truncf %525 : vector<1x128xf32> to vector<1x128xbf16>
    %c288 = arith.constant 288 : index
    %c0_123 = arith.constant 0 : index
    %527 = vector.load %arg1[%c288, %c0_123] : memref<416x128xbf16, #tpu.memory_space<vmem>>, vector<128x128xbf16>
    %cst_124 = arith.constant dense<0.000000e+00> : vector<1x128xf32>
    %528 = tpu.matmul %526, %527, %cst_124 {dimension_numbers = #tpu.dot_dimension_numbers<[1], [0], [0], [1], [0, 0, 1, 1], [], []>} : vector<1x128xbf16>, vector<128x128xbf16>, vector<1x128xf32> -> vector<1x128xf32>
    %529 = arith.addf %528, %465 : vector<1x128xf32>
    %cst_125 = arith.constant dense<0xFF800000> : vector<1xf32>
    %530 = vector.multi_reduction <maximumf>, %529, %cst_125 [1] : vector<1x128xf32> to vector<1xf32>
    %531 = vector.shape_cast %530 : vector<1xf32> to vector<1x1xf32>
    %532 = vector.broadcast %531 : vector<1x1xf32> to vector<1x128xf32>
    %533 = arith.subf %529, %532 : vector<1x128xf32>
    %534 = math.exp %533 : vector<1x128xf32>
    %cst_126 = arith.constant dense<0.000000e+00> : vector<1xf32>
    %535 = vector.multi_reduction <add>, %534, %cst_126 [1] : vector<1x128xf32> to vector<1xf32>
    %536 = vector.shape_cast %535 : vector<1xf32> to vector<1x1xf32>
    %537 = tpu.reciprocal %536 : vector<1x1xf32> -> vector<1x1xf32>
    %538 = vector.broadcast %531 : vector<1x1xf32> to vector<1x128xf32>
    %539 = arith.cmpf oge, %529, %538 : vector<1x128xf32>
    %c128_i32 = arith.constant 128 : i32
    %540 = vector.broadcast %c128_i32 : i32 to vector<1x128xi32>
    %541 = arith.select %539, %467, %540 : vector<1x128xi1>, vector<1x128xi32>
    %cst_127 = arith.constant dense<2147483647> : vector<1xi32>
    %542 = vector.multi_reduction <minsi>, %541, %cst_127 [1] : vector<1x128xi32> to vector<1xi32>
    %543 = vector.shape_cast %542 : vector<1xi32> to vector<1x1xi32>
    %c0_i32_128 = arith.constant 0 : i32
    %544 = vector.broadcast %c0_i32_128 : i32 to vector<1x128xi32>
    %545 = arith.cmpi eq, %467, %544 : vector<1x128xi32>
    %546 = vector.shape_cast %543 : vector<1x1xi32> to vector<1x1xi32>
    %547 = vector.broadcast %546 : vector<1x1xi32> to vector<1x128xi32>
    %548 = arith.select %545, %547, %468 : vector<1x128xi1>, vector<1x128xi32>
    %549 = vector.shape_cast %537 : vector<1x1xf32> to vector<1x1xf32>
    %550 = vector.broadcast %549 : vector<1x1xf32> to vector<1x128xf32>
    %551 = arith.select %545, %550, %469 : vector<1x128xi1>, vector<1x128xf32>
    %552 = vector.broadcast %543 : vector<1x1xi32> to vector<1x64xi32>
    %553 = arith.cmpi eq, %466, %552 : vector<1x64xi32>
    %554 = arith.extui %553 : vector<1x64xi1> to vector<1x64xi32>
    %555 = arith.sitofp %554 : vector<1x64xi32> to vector<1x64xf32>
    %556 = arith.truncf %555 : vector<1x64xf32> to vector<1x64xbf16>
    %c160_129 = arith.constant 160 : index
    %c0_130 = arith.constant 0 : index
    %557 = vector.load %arg1[%c160_129, %c0_130] : memref<416x128xbf16, #tpu.memory_space<vmem>>, vector<64x128xbf16>
    %cst_131 = arith.constant dense<0.000000e+00> : vector<1x128xf32>
    %558 = tpu.matmul %556, %557, %cst_131 {dimension_numbers = #tpu.dot_dimension_numbers<[1], [0], [0], [1], [0, 0, 1, 1], [], []>} : vector<1x64xbf16>, vector<64x128xbf16>, vector<1x128xf32> -> vector<1x128xf32>
    %559 = arith.truncf %503 : vector<1x32xf32> to vector<1x32xbf16>
    %c128_132 = arith.constant 128 : index
    %c0_133 = arith.constant 0 : index
    %560 = vector.load %arg1[%c128_132, %c0_133] : memref<416x128xbf16, #tpu.memory_space<vmem>>, vector<32x128xbf16>
    %cst_134 = arith.constant dense<0.000000e+00> : vector<1x128xf32>
    %561 = tpu.matmul %559, %560, %cst_134 {dimension_numbers = #tpu.dot_dimension_numbers<[1], [0], [0], [1], [0, 0, 1, 1], [], []>} : vector<1x32xbf16>, vector<32x128xbf16>, vector<1x128xf32> -> vector<1x128xf32>
    %562 = arith.addf %558, %561 : vector<1x128xf32>
    %563 = arith.addf %562, %463 : vector<1x128xf32>
    %564 = vector.extract_strided_slice %563 {offsets = [0, 0], sizes = [1, 32], strides = [1, 1]} : vector<1x128xf32> to vector<1x32xf32>
    %565 = arith.negf %564 : vector<1x32xf32>
    %566 = math.exp %565 : vector<1x32xf32>
    %cst_135 = arith.constant 1.000000e+00 : f32
    %567 = vector.broadcast %cst_135 : f32 to vector<1x32xf32>
    %568 = arith.addf %567, %566 : vector<1x32xf32>
    %569 = arith.divf %567, %568 : vector<1x32xf32>
    %570 = vector.extract_strided_slice %563 {offsets = [0, 32], sizes = [1, 32], strides = [1, 1]} : vector<1x128xf32> to vector<1x32xf32>
    %571 = arith.negf %570 : vector<1x32xf32>
    %572 = math.exp %571 : vector<1x32xf32>
    %cst_136 = arith.constant 1.000000e+00 : f32
    %573 = vector.broadcast %cst_136 : f32 to vector<1x32xf32>
    %574 = arith.addf %573, %572 : vector<1x32xf32>
    %575 = arith.divf %573, %574 : vector<1x32xf32>
    %576 = vector.extract_strided_slice %563 {offsets = [0, 64], sizes = [1, 32], strides = [1, 1]} : vector<1x128xf32> to vector<1x32xf32>
    %577 = vector.extract_strided_slice %563 {offsets = [0, 96], sizes = [1, 32], strides = [1, 1]} : vector<1x128xf32> to vector<1x32xf32>
    %578 = arith.mulf %569, %577 : vector<1x32xf32>
    %579 = arith.addf %576, %578 : vector<1x32xf32>
    %580 = math.tanh %579 : vector<1x32xf32>
    %cst_137 = arith.constant 1.000000e+00 : f32
    %581 = vector.broadcast %cst_137 : f32 to vector<1x32xf32>
    %582 = arith.subf %581, %575 : vector<1x32xf32>
    %583 = arith.mulf %582, %580 : vector<1x32xf32>
    %584 = arith.mulf %575, %503 : vector<1x32xf32>
    %585 = arith.addf %583, %584 : vector<1x32xf32>
    %586 = arith.truncf %585 : vector<1x32xf32> to vector<1x32xbf16>
    %cst_138 = arith.constant dense<0.000000e+00> : vector<1x8xf32>
    %587 = tpu.matmul %586, %462, %cst_138 {dimension_numbers = #tpu.dot_dimension_numbers<[1], [0], [0], [1], [0, 0, 1, 1], [], []>} : vector<1x32xbf16>, vector<32x8xbf16>, vector<1x8xf32> -> vector<1x8xf32>
    %cst_139 = arith.constant dense<0xFF800000> : vector<1xf32>
    %588 = vector.multi_reduction <maximumf>, %587, %cst_139 [1] : vector<1x8xf32> to vector<1xf32>
    %589 = vector.shape_cast %588 : vector<1xf32> to vector<1x1xf32>
    %590 = vector.broadcast %589 : vector<1x1xf32> to vector<1x8xf32>
    %591 = arith.subf %587, %590 : vector<1x8xf32>
    %592 = math.exp %591 : vector<1x8xf32>
    %cst_140 = arith.constant dense<0.000000e+00> : vector<1xf32>
    %593 = vector.multi_reduction <add>, %592, %cst_140 [1] : vector<1x8xf32> to vector<1xf32>
    %594 = vector.shape_cast %593 : vector<1xf32> to vector<1x1xf32>
    %595 = tpu.reciprocal %594 : vector<1x1xf32> -> vector<1x1xf32>
    %596 = vector.broadcast %595 : vector<1x1xf32> to vector<1x8xf32>
    %597 = arith.mulf %592, %596 : vector<1x8xf32>
    %598 = arith.truncf %597 : vector<1x8xf32> to vector<1x8xbf16>
    %cst_141 = arith.constant dense<0.000000e+00> : vector<1x32xf32>
    %599 = tpu.matmul %598, %460, %cst_141 {dimension_numbers = #tpu.dot_dimension_numbers<[1], [0], [0], [1], [0, 0, 1, 1], [], []>} : vector<1x8xbf16>, vector<8x32xbf16>, vector<1x32xf32> -> vector<1x32xf32>
    %c224_142 = arith.constant 224 : index
    %c0_143 = arith.constant 0 : index
    %600 = vector.load %arg1[%c224_142, %c0_143] : memref<416x128xbf16, #tpu.memory_space<vmem>>, vector<32x128xbf16>
    %cst_144 = arith.constant dense<0.000000e+00> : vector<1x128xf32>
    %601 = tpu.matmul %586, %600, %cst_144 {dimension_numbers = #tpu.dot_dimension_numbers<[1], [0], [0], [1], [0, 0, 1, 1], [], []>} : vector<1x32xbf16>, vector<32x128xbf16>, vector<1x128xf32> -> vector<1x128xf32>
    %602 = arith.truncf %599 : vector<1x32xf32> to vector<1x32xbf16>
    %c256_145 = arith.constant 256 : index
    %c0_146 = arith.constant 0 : index
    %603 = vector.load %arg1[%c256_145, %c0_146] : memref<416x128xbf16, #tpu.memory_space<vmem>>, vector<32x128xbf16>
    %cst_147 = arith.constant dense<0.000000e+00> : vector<1x128xf32>
    %604 = tpu.matmul %602, %603, %cst_147 {dimension_numbers = #tpu.dot_dimension_numbers<[1], [0], [0], [1], [0, 0, 1, 1], [], []>} : vector<1x32xbf16>, vector<32x128xbf16>, vector<1x128xf32> -> vector<1x128xf32>
    %605 = arith.addf %601, %604 : vector<1x128xf32>
    %606 = arith.addf %605, %464 : vector<1x128xf32>
    %607 = math.tanh %606 : vector<1x128xf32>
    %608 = arith.truncf %607 : vector<1x128xf32> to vector<1x128xbf16>
    %c288_148 = arith.constant 288 : index
    %c0_149 = arith.constant 0 : index
    %609 = vector.load %arg1[%c288_148, %c0_149] : memref<416x128xbf16, #tpu.memory_space<vmem>>, vector<128x128xbf16>
    %cst_150 = arith.constant dense<0.000000e+00> : vector<1x128xf32>
    %610 = tpu.matmul %608, %609, %cst_150 {dimension_numbers = #tpu.dot_dimension_numbers<[1], [0], [0], [1], [0, 0, 1, 1], [], []>} : vector<1x128xbf16>, vector<128x128xbf16>, vector<1x128xf32> -> vector<1x128xf32>
    %611 = arith.addf %610, %465 : vector<1x128xf32>
    %cst_151 = arith.constant dense<0xFF800000> : vector<1xf32>
    %612 = vector.multi_reduction <maximumf>, %611, %cst_151 [1] : vector<1x128xf32> to vector<1xf32>
    %613 = vector.shape_cast %612 : vector<1xf32> to vector<1x1xf32>
    %614 = vector.broadcast %613 : vector<1x1xf32> to vector<1x128xf32>
    %615 = arith.subf %611, %614 : vector<1x128xf32>
    %616 = math.exp %615 : vector<1x128xf32>
    %cst_152 = arith.constant dense<0.000000e+00> : vector<1xf32>
    %617 = vector.multi_reduction <add>, %616, %cst_152 [1] : vector<1x128xf32> to vector<1xf32>
    %618 = vector.shape_cast %617 : vector<1xf32> to vector<1x1xf32>
    %619 = tpu.reciprocal %618 : vector<1x1xf32> -> vector<1x1xf32>
    %620 = vector.broadcast %613 : vector<1x1xf32> to vector<1x128xf32>
    %621 = arith.cmpf oge, %611, %620 : vector<1x128xf32>
    %c128_i32_153 = arith.constant 128 : i32
    %622 = vector.broadcast %c128_i32_153 : i32 to vector<1x128xi32>
    %623 = arith.select %621, %467, %622 : vector<1x128xi1>, vector<1x128xi32>
    %cst_154 = arith.constant dense<2147483647> : vector<1xi32>
    %624 = vector.multi_reduction <minsi>, %623, %cst_154 [1] : vector<1x128xi32> to vector<1xi32>
    %625 = vector.shape_cast %624 : vector<1xi32> to vector<1x1xi32>
    %c1_i32_155 = arith.constant 1 : i32
    %626 = vector.broadcast %c1_i32_155 : i32 to vector<1x128xi32>
    %627 = arith.cmpi eq, %467, %626 : vector<1x128xi32>
    %628 = vector.shape_cast %625 : vector<1x1xi32> to vector<1x1xi32>
    %629 = vector.broadcast %628 : vector<1x1xi32> to vector<1x128xi32>
    %630 = arith.select %627, %629, %548 : vector<1x128xi1>, vector<1x128xi32>
    %631 = vector.shape_cast %619 : vector<1x1xf32> to vector<1x1xf32>
    %632 = vector.broadcast %631 : vector<1x1xf32> to vector<1x128xf32>
    %633 = arith.select %627, %632, %551 : vector<1x128xi1>, vector<1x128xf32>
    %634 = vector.broadcast %625 : vector<1x1xi32> to vector<1x64xi32>
    %635 = arith.cmpi eq, %466, %634 : vector<1x64xi32>
    %636 = arith.extui %635 : vector<1x64xi1> to vector<1x64xi32>
    %637 = arith.sitofp %636 : vector<1x64xi32> to vector<1x64xf32>
    %638 = arith.truncf %637 : vector<1x64xf32> to vector<1x64xbf16>
    %c160_156 = arith.constant 160 : index
    %c0_157 = arith.constant 0 : index
    %639 = vector.load %arg1[%c160_156, %c0_157] : memref<416x128xbf16, #tpu.memory_space<vmem>>, vector<64x128xbf16>
    %cst_158 = arith.constant dense<0.000000e+00> : vector<1x128xf32>
    %640 = tpu.matmul %638, %639, %cst_158 {dimension_numbers = #tpu.dot_dimension_numbers<[1], [0], [0], [1], [0, 0, 1, 1], [], []>} : vector<1x64xbf16>, vector<64x128xbf16>, vector<1x128xf32> -> vector<1x128xf32>
    %641 = arith.truncf %585 : vector<1x32xf32> to vector<1x32xbf16>
    %c128_159 = arith.constant 128 : index
    %c0_160 = arith.constant 0 : index
    %642 = vector.load %arg1[%c128_159, %c0_160] : memref<416x128xbf16, #tpu.memory_space<vmem>>, vector<32x128xbf16>
    %cst_161 = arith.constant dense<0.000000e+00> : vector<1x128xf32>
    %643 = tpu.matmul %641, %642, %cst_161 {dimension_numbers = #tpu.dot_dimension_numbers<[1], [0], [0], [1], [0, 0, 1, 1], [], []>} : vector<1x32xbf16>, vector<32x128xbf16>, vector<1x128xf32> -> vector<1x128xf32>
    %644 = arith.addf %640, %643 : vector<1x128xf32>
    %645 = arith.addf %644, %463 : vector<1x128xf32>
    %646 = vector.extract_strided_slice %645 {offsets = [0, 0], sizes = [1, 32], strides = [1, 1]} : vector<1x128xf32> to vector<1x32xf32>
    %647 = arith.negf %646 : vector<1x32xf32>
    %648 = math.exp %647 : vector<1x32xf32>
    %cst_162 = arith.constant 1.000000e+00 : f32
    %649 = vector.broadcast %cst_162 : f32 to vector<1x32xf32>
    %650 = arith.addf %649, %648 : vector<1x32xf32>
    %651 = arith.divf %649, %650 : vector<1x32xf32>
    %652 = vector.extract_strided_slice %645 {offsets = [0, 32], sizes = [1, 32], strides = [1, 1]} : vector<1x128xf32> to vector<1x32xf32>
    %653 = arith.negf %652 : vector<1x32xf32>
    %654 = math.exp %653 : vector<1x32xf32>
    %cst_163 = arith.constant 1.000000e+00 : f32
    %655 = vector.broadcast %cst_163 : f32 to vector<1x32xf32>
    %656 = arith.addf %655, %654 : vector<1x32xf32>
    %657 = arith.divf %655, %656 : vector<1x32xf32>
    %658 = vector.extract_strided_slice %645 {offsets = [0, 64], sizes = [1, 32], strides = [1, 1]} : vector<1x128xf32> to vector<1x32xf32>
    %659 = vector.extract_strided_slice %645 {offsets = [0, 96], sizes = [1, 32], strides = [1, 1]} : vector<1x128xf32> to vector<1x32xf32>
    %660 = arith.mulf %651, %659 : vector<1x32xf32>
    %661 = arith.addf %658, %660 : vector<1x32xf32>
    %662 = math.tanh %661 : vector<1x32xf32>
    %cst_164 = arith.constant 1.000000e+00 : f32
    %663 = vector.broadcast %cst_164 : f32 to vector<1x32xf32>
    %664 = arith.subf %663, %657 : vector<1x32xf32>
    %665 = arith.mulf %664, %662 : vector<1x32xf32>
    %666 = arith.mulf %657, %585 : vector<1x32xf32>
    %667 = arith.addf %665, %666 : vector<1x32xf32>
    %668 = arith.truncf %667 : vector<1x32xf32> to vector<1x32xbf16>
    %cst_165 = arith.constant dense<0.000000e+00> : vector<1x8xf32>
    %669 = tpu.matmul %668, %462, %cst_165 {dimension_numbers = #tpu.dot_dimension_numbers<[1], [0], [0], [1], [0, 0, 1, 1], [], []>} : vector<1x32xbf16>, vector<32x8xbf16>, vector<1x8xf32> -> vector<1x8xf32>
    %cst_166 = arith.constant dense<0xFF800000> : vector<1xf32>
    %670 = vector.multi_reduction <maximumf>, %669, %cst_166 [1] : vector<1x8xf32> to vector<1xf32>
    %671 = vector.shape_cast %670 : vector<1xf32> to vector<1x1xf32>
    %672 = vector.broadcast %671 : vector<1x1xf32> to vector<1x8xf32>
    %673 = arith.subf %669, %672 : vector<1x8xf32>
    %674 = math.exp %673 : vector<1x8xf32>
    %cst_167 = arith.constant dense<0.000000e+00> : vector<1xf32>
    %675 = vector.multi_reduction <add>, %674, %cst_167 [1] : vector<1x8xf32> to vector<1xf32>
    %676 = vector.shape_cast %675 : vector<1xf32> to vector<1x1xf32>
    %677 = tpu.reciprocal %676 : vector<1x1xf32> -> vector<1x1xf32>
    %678 = vector.broadcast %677 : vector<1x1xf32> to vector<1x8xf32>
    %679 = arith.mulf %674, %678 : vector<1x8xf32>
    %680 = arith.truncf %679 : vector<1x8xf32> to vector<1x8xbf16>
    %cst_168 = arith.constant dense<0.000000e+00> : vector<1x32xf32>
    %681 = tpu.matmul %680, %460, %cst_168 {dimension_numbers = #tpu.dot_dimension_numbers<[1], [0], [0], [1], [0, 0, 1, 1], [], []>} : vector<1x8xbf16>, vector<8x32xbf16>, vector<1x32xf32> -> vector<1x32xf32>
    %c224_169 = arith.constant 224 : index
    %c0_170 = arith.constant 0 : index
    %682 = vector.load %arg1[%c224_169, %c0_170] : memref<416x128xbf16, #tpu.memory_space<vmem>>, vector<32x128xbf16>
    %cst_171 = arith.constant dense<0.000000e+00> : vector<1x128xf32>
    %683 = tpu.matmul %668, %682, %cst_171 {dimension_numbers = #tpu.dot_dimension_numbers<[1], [0], [0], [1], [0, 0, 1, 1], [], []>} : vector<1x32xbf16>, vector<32x128xbf16>, vector<1x128xf32> -> vector<1x128xf32>
    %684 = arith.truncf %681 : vector<1x32xf32> to vector<1x32xbf16>
    %c256_172 = arith.constant 256 : index
    %c0_173 = arith.constant 0 : index
    %685 = vector.load %arg1[%c256_172, %c0_173] : memref<416x128xbf16, #tpu.memory_space<vmem>>, vector<32x128xbf16>
    %cst_174 = arith.constant dense<0.000000e+00> : vector<1x128xf32>
    %686 = tpu.matmul %684, %685, %cst_174 {dimension_numbers = #tpu.dot_dimension_numbers<[1], [0], [0], [1], [0, 0, 1, 1], [], []>} : vector<1x32xbf16>, vector<32x128xbf16>, vector<1x128xf32> -> vector<1x128xf32>
    %687 = arith.addf %683, %686 : vector<1x128xf32>
    %688 = arith.addf %687, %464 : vector<1x128xf32>
    %689 = math.tanh %688 : vector<1x128xf32>
    %690 = arith.truncf %689 : vector<1x128xf32> to vector<1x128xbf16>
    %c288_175 = arith.constant 288 : index
    %c0_176 = arith.constant 0 : index
    %691 = vector.load %arg1[%c288_175, %c0_176] : memref<416x128xbf16, #tpu.memory_space<vmem>>, vector<128x128xbf16>
    %cst_177 = arith.constant dense<0.000000e+00> : vector<1x128xf32>
    %692 = tpu.matmul %690, %691, %cst_177 {dimension_numbers = #tpu.dot_dimension_numbers<[1], [0], [0], [1], [0, 0, 1, 1], [], []>} : vector<1x128xbf16>, vector<128x128xbf16>, vector<1x128xf32> -> vector<1x128xf32>
    %693 = arith.addf %692, %465 : vector<1x128xf32>
    %cst_178 = arith.constant dense<0xFF800000> : vector<1xf32>
    %694 = vector.multi_reduction <maximumf>, %693, %cst_178 [1] : vector<1x128xf32> to vector<1xf32>
    %695 = vector.shape_cast %694 : vector<1xf32> to vector<1x1xf32>
    %696 = vector.broadcast %695 : vector<1x1xf32> to vector<1x128xf32>
    %697 = arith.subf %693, %696 : vector<1x128xf32>
    %698 = math.exp %697 : vector<1x128xf32>
    %cst_179 = arith.constant dense<0.000000e+00> : vector<1xf32>
    %699 = vector.multi_reduction <add>, %698, %cst_179 [1] : vector<1x128xf32> to vector<1xf32>
    %700 = vector.shape_cast %699 : vector<1xf32> to vector<1x1xf32>
    %701 = tpu.reciprocal %700 : vector<1x1xf32> -> vector<1x1xf32>
    %702 = vector.broadcast %695 : vector<1x1xf32> to vector<1x128xf32>
    %703 = arith.cmpf oge, %693, %702 : vector<1x128xf32>
    %c128_i32_180 = arith.constant 128 : i32
    %704 = vector.broadcast %c128_i32_180 : i32 to vector<1x128xi32>
    %705 = arith.select %703, %467, %704 : vector<1x128xi1>, vector<1x128xi32>
    %cst_181 = arith.constant dense<2147483647> : vector<1xi32>
    %706 = vector.multi_reduction <minsi>, %705, %cst_181 [1] : vector<1x128xi32> to vector<1xi32>
    %707 = vector.shape_cast %706 : vector<1xi32> to vector<1x1xi32>
    %c2_i32 = arith.constant 2 : i32
    %708 = vector.broadcast %c2_i32 : i32 to vector<1x128xi32>
    %709 = arith.cmpi eq, %467, %708 : vector<1x128xi32>
    %710 = vector.shape_cast %707 : vector<1x1xi32> to vector<1x1xi32>
    %711 = vector.broadcast %710 : vector<1x1xi32> to vector<1x128xi32>
    %712 = arith.select %709, %711, %630 : vector<1x128xi1>, vector<1x128xi32>
    %713 = vector.shape_cast %701 : vector<1x1xf32> to vector<1x1xf32>
    %714 = vector.broadcast %713 : vector<1x1xf32> to vector<1x128xf32>
    %715 = arith.select %709, %714, %633 : vector<1x128xi1>, vector<1x128xf32>
    %716 = vector.broadcast %707 : vector<1x1xi32> to vector<1x64xi32>
    %717 = arith.cmpi eq, %466, %716 : vector<1x64xi32>
    %718 = arith.extui %717 : vector<1x64xi1> to vector<1x64xi32>
    %719 = arith.sitofp %718 : vector<1x64xi32> to vector<1x64xf32>
    %720 = arith.truncf %719 : vector<1x64xf32> to vector<1x64xbf16>
    %c160_182 = arith.constant 160 : index
    %c0_183 = arith.constant 0 : index
    %721 = vector.load %arg1[%c160_182, %c0_183] : memref<416x128xbf16, #tpu.memory_space<vmem>>, vector<64x128xbf16>
    %cst_184 = arith.constant dense<0.000000e+00> : vector<1x128xf32>
    %722 = tpu.matmul %720, %721, %cst_184 {dimension_numbers = #tpu.dot_dimension_numbers<[1], [0], [0], [1], [0, 0, 1, 1], [], []>} : vector<1x64xbf16>, vector<64x128xbf16>, vector<1x128xf32> -> vector<1x128xf32>
    %723 = arith.truncf %667 : vector<1x32xf32> to vector<1x32xbf16>
    %c128_185 = arith.constant 128 : index
    %c0_186 = arith.constant 0 : index
    %724 = vector.load %arg1[%c128_185, %c0_186] : memref<416x128xbf16, #tpu.memory_space<vmem>>, vector<32x128xbf16>
    %cst_187 = arith.constant dense<0.000000e+00> : vector<1x128xf32>
    %725 = tpu.matmul %723, %724, %cst_187 {dimension_numbers = #tpu.dot_dimension_numbers<[1], [0], [0], [1], [0, 0, 1, 1], [], []>} : vector<1x32xbf16>, vector<32x128xbf16>, vector<1x128xf32> -> vector<1x128xf32>
    %726 = arith.addf %722, %725 : vector<1x128xf32>
    %727 = arith.addf %726, %463 : vector<1x128xf32>
    %728 = vector.extract_strided_slice %727 {offsets = [0, 0], sizes = [1, 32], strides = [1, 1]} : vector<1x128xf32> to vector<1x32xf32>
    %729 = arith.negf %728 : vector<1x32xf32>
    %730 = math.exp %729 : vector<1x32xf32>
    %cst_188 = arith.constant 1.000000e+00 : f32
    %731 = vector.broadcast %cst_188 : f32 to vector<1x32xf32>
    %732 = arith.addf %731, %730 : vector<1x32xf32>
    %733 = arith.divf %731, %732 : vector<1x32xf32>
    %734 = vector.extract_strided_slice %727 {offsets = [0, 32], sizes = [1, 32], strides = [1, 1]} : vector<1x128xf32> to vector<1x32xf32>
    %735 = arith.negf %734 : vector<1x32xf32>
    %736 = math.exp %735 : vector<1x32xf32>
    %cst_189 = arith.constant 1.000000e+00 : f32
    %737 = vector.broadcast %cst_189 : f32 to vector<1x32xf32>
    %738 = arith.addf %737, %736 : vector<1x32xf32>
    %739 = arith.divf %737, %738 : vector<1x32xf32>
    %740 = vector.extract_strided_slice %727 {offsets = [0, 64], sizes = [1, 32], strides = [1, 1]} : vector<1x128xf32> to vector<1x32xf32>
    %741 = vector.extract_strided_slice %727 {offsets = [0, 96], sizes = [1, 32], strides = [1, 1]} : vector<1x128xf32> to vector<1x32xf32>
    %742 = arith.mulf %733, %741 : vector<1x32xf32>
    %743 = arith.addf %740, %742 : vector<1x32xf32>
    %744 = math.tanh %743 : vector<1x32xf32>
    %cst_190 = arith.constant 1.000000e+00 : f32
    %745 = vector.broadcast %cst_190 : f32 to vector<1x32xf32>
    %746 = arith.subf %745, %739 : vector<1x32xf32>
    %747 = arith.mulf %746, %744 : vector<1x32xf32>
    %748 = arith.mulf %739, %667 : vector<1x32xf32>
    %749 = arith.addf %747, %748 : vector<1x32xf32>
    %750 = arith.truncf %749 : vector<1x32xf32> to vector<1x32xbf16>
    %cst_191 = arith.constant dense<0.000000e+00> : vector<1x8xf32>
    %751 = tpu.matmul %750, %462, %cst_191 {dimension_numbers = #tpu.dot_dimension_numbers<[1], [0], [0], [1], [0, 0, 1, 1], [], []>} : vector<1x32xbf16>, vector<32x8xbf16>, vector<1x8xf32> -> vector<1x8xf32>
    %cst_192 = arith.constant dense<0xFF800000> : vector<1xf32>
    %752 = vector.multi_reduction <maximumf>, %751, %cst_192 [1] : vector<1x8xf32> to vector<1xf32>
    %753 = vector.shape_cast %752 : vector<1xf32> to vector<1x1xf32>
    %754 = vector.broadcast %753 : vector<1x1xf32> to vector<1x8xf32>
    %755 = arith.subf %751, %754 : vector<1x8xf32>
    %756 = math.exp %755 : vector<1x8xf32>
    %cst_193 = arith.constant dense<0.000000e+00> : vector<1xf32>
    %757 = vector.multi_reduction <add>, %756, %cst_193 [1] : vector<1x8xf32> to vector<1xf32>
    %758 = vector.shape_cast %757 : vector<1xf32> to vector<1x1xf32>
    %759 = tpu.reciprocal %758 : vector<1x1xf32> -> vector<1x1xf32>
    %760 = vector.broadcast %759 : vector<1x1xf32> to vector<1x8xf32>
    %761 = arith.mulf %756, %760 : vector<1x8xf32>
    %762 = arith.truncf %761 : vector<1x8xf32> to vector<1x8xbf16>
    %cst_194 = arith.constant dense<0.000000e+00> : vector<1x32xf32>
    %763 = tpu.matmul %762, %460, %cst_194 {dimension_numbers = #tpu.dot_dimension_numbers<[1], [0], [0], [1], [0, 0, 1, 1], [], []>} : vector<1x8xbf16>, vector<8x32xbf16>, vector<1x32xf32> -> vector<1x32xf32>
    %c224_195 = arith.constant 224 : index
    %c0_196 = arith.constant 0 : index
    %764 = vector.load %arg1[%c224_195, %c0_196] : memref<416x128xbf16, #tpu.memory_space<vmem>>, vector<32x128xbf16>
    %cst_197 = arith.constant dense<0.000000e+00> : vector<1x128xf32>
    %765 = tpu.matmul %750, %764, %cst_197 {dimension_numbers = #tpu.dot_dimension_numbers<[1], [0], [0], [1], [0, 0, 1, 1], [], []>} : vector<1x32xbf16>, vector<32x128xbf16>, vector<1x128xf32> -> vector<1x128xf32>
    %766 = arith.truncf %763 : vector<1x32xf32> to vector<1x32xbf16>
    %c256_198 = arith.constant 256 : index
    %c0_199 = arith.constant 0 : index
    %767 = vector.load %arg1[%c256_198, %c0_199] : memref<416x128xbf16, #tpu.memory_space<vmem>>, vector<32x128xbf16>
    %cst_200 = arith.constant dense<0.000000e+00> : vector<1x128xf32>
    %768 = tpu.matmul %766, %767, %cst_200 {dimension_numbers = #tpu.dot_dimension_numbers<[1], [0], [0], [1], [0, 0, 1, 1], [], []>} : vector<1x32xbf16>, vector<32x128xbf16>, vector<1x128xf32> -> vector<1x128xf32>
    %769 = arith.addf %765, %768 : vector<1x128xf32>
    %770 = arith.addf %769, %464 : vector<1x128xf32>
    %771 = math.tanh %770 : vector<1x128xf32>
    %772 = arith.truncf %771 : vector<1x128xf32> to vector<1x128xbf16>
    %c288_201 = arith.constant 288 : index
    %c0_202 = arith.constant 0 : index
    %773 = vector.load %arg1[%c288_201, %c0_202] : memref<416x128xbf16, #tpu.memory_space<vmem>>, vector<128x128xbf16>
    %cst_203 = arith.constant dense<0.000000e+00> : vector<1x128xf32>
    %774 = tpu.matmul %772, %773, %cst_203 {dimension_numbers = #tpu.dot_dimension_numbers<[1], [0], [0], [1], [0, 0, 1, 1], [], []>} : vector<1x128xbf16>, vector<128x128xbf16>, vector<1x128xf32> -> vector<1x128xf32>
    %775 = arith.addf %774, %465 : vector<1x128xf32>
    %cst_204 = arith.constant dense<0xFF800000> : vector<1xf32>
    %776 = vector.multi_reduction <maximumf>, %775, %cst_204 [1] : vector<1x128xf32> to vector<1xf32>
    %777 = vector.shape_cast %776 : vector<1xf32> to vector<1x1xf32>
    %778 = vector.broadcast %777 : vector<1x1xf32> to vector<1x128xf32>
    %779 = arith.subf %775, %778 : vector<1x128xf32>
    %780 = math.exp %779 : vector<1x128xf32>
    %cst_205 = arith.constant dense<0.000000e+00> : vector<1xf32>
    %781 = vector.multi_reduction <add>, %780, %cst_205 [1] : vector<1x128xf32> to vector<1xf32>
    %782 = vector.shape_cast %781 : vector<1xf32> to vector<1x1xf32>
    %783 = tpu.reciprocal %782 : vector<1x1xf32> -> vector<1x1xf32>
    %784 = vector.broadcast %777 : vector<1x1xf32> to vector<1x128xf32>
    %785 = arith.cmpf oge, %775, %784 : vector<1x128xf32>
    %c128_i32_206 = arith.constant 128 : i32
    %786 = vector.broadcast %c128_i32_206 : i32 to vector<1x128xi32>
    %787 = arith.select %785, %467, %786 : vector<1x128xi1>, vector<1x128xi32>
    %cst_207 = arith.constant dense<2147483647> : vector<1xi32>
    %788 = vector.multi_reduction <minsi>, %787, %cst_207 [1] : vector<1x128xi32> to vector<1xi32>
    %789 = vector.shape_cast %788 : vector<1xi32> to vector<1x1xi32>
    %c3_i32 = arith.constant 3 : i32
    %790 = vector.broadcast %c3_i32 : i32 to vector<1x128xi32>
    %791 = arith.cmpi eq, %467, %790 : vector<1x128xi32>
    %792 = vector.shape_cast %789 : vector<1x1xi32> to vector<1x1xi32>
    %793 = vector.broadcast %792 : vector<1x1xi32> to vector<1x128xi32>
    %794 = arith.select %791, %793, %712 : vector<1x128xi1>, vector<1x128xi32>
    %795 = vector.shape_cast %783 : vector<1x1xf32> to vector<1x1xf32>
    %796 = vector.broadcast %795 : vector<1x1xf32> to vector<1x128xf32>
    %797 = arith.select %791, %796, %715 : vector<1x128xi1>, vector<1x128xf32>
    %798 = vector.broadcast %789 : vector<1x1xi32> to vector<1x64xi32>
    %799 = arith.cmpi eq, %466, %798 : vector<1x64xi32>
    %800 = arith.extui %799 : vector<1x64xi1> to vector<1x64xi32>
    %801 = arith.sitofp %800 : vector<1x64xi32> to vector<1x64xf32>
    %802 = arith.truncf %801 : vector<1x64xf32> to vector<1x64xbf16>
    %c160_208 = arith.constant 160 : index
    %c0_209 = arith.constant 0 : index
    %803 = vector.load %arg1[%c160_208, %c0_209] : memref<416x128xbf16, #tpu.memory_space<vmem>>, vector<64x128xbf16>
    %cst_210 = arith.constant dense<0.000000e+00> : vector<1x128xf32>
    %804 = tpu.matmul %802, %803, %cst_210 {dimension_numbers = #tpu.dot_dimension_numbers<[1], [0], [0], [1], [0, 0, 1, 1], [], []>} : vector<1x64xbf16>, vector<64x128xbf16>, vector<1x128xf32> -> vector<1x128xf32>
    %805 = arith.truncf %749 : vector<1x32xf32> to vector<1x32xbf16>
    %c128_211 = arith.constant 128 : index
    %c0_212 = arith.constant 0 : index
    %806 = vector.load %arg1[%c128_211, %c0_212] : memref<416x128xbf16, #tpu.memory_space<vmem>>, vector<32x128xbf16>
    %cst_213 = arith.constant dense<0.000000e+00> : vector<1x128xf32>
    %807 = tpu.matmul %805, %806, %cst_213 {dimension_numbers = #tpu.dot_dimension_numbers<[1], [0], [0], [1], [0, 0, 1, 1], [], []>} : vector<1x32xbf16>, vector<32x128xbf16>, vector<1x128xf32> -> vector<1x128xf32>
    %808 = arith.addf %804, %807 : vector<1x128xf32>
    %809 = arith.addf %808, %463 : vector<1x128xf32>
    %810 = vector.extract_strided_slice %809 {offsets = [0, 0], sizes = [1, 32], strides = [1, 1]} : vector<1x128xf32> to vector<1x32xf32>
    %811 = arith.negf %810 : vector<1x32xf32>
    %812 = math.exp %811 : vector<1x32xf32>
    %cst_214 = arith.constant 1.000000e+00 : f32
    %813 = vector.broadcast %cst_214 : f32 to vector<1x32xf32>
    %814 = arith.addf %813, %812 : vector<1x32xf32>
    %815 = arith.divf %813, %814 : vector<1x32xf32>
    %816 = vector.extract_strided_slice %809 {offsets = [0, 32], sizes = [1, 32], strides = [1, 1]} : vector<1x128xf32> to vector<1x32xf32>
    %817 = arith.negf %816 : vector<1x32xf32>
    %818 = math.exp %817 : vector<1x32xf32>
    %cst_215 = arith.constant 1.000000e+00 : f32
    %819 = vector.broadcast %cst_215 : f32 to vector<1x32xf32>
    %820 = arith.addf %819, %818 : vector<1x32xf32>
    %821 = arith.divf %819, %820 : vector<1x32xf32>
    %822 = vector.extract_strided_slice %809 {offsets = [0, 64], sizes = [1, 32], strides = [1, 1]} : vector<1x128xf32> to vector<1x32xf32>
    %823 = vector.extract_strided_slice %809 {offsets = [0, 96], sizes = [1, 32], strides = [1, 1]} : vector<1x128xf32> to vector<1x32xf32>
    %824 = arith.mulf %815, %823 : vector<1x32xf32>
    %825 = arith.addf %822, %824 : vector<1x32xf32>
    %826 = math.tanh %825 : vector<1x32xf32>
    %cst_216 = arith.constant 1.000000e+00 : f32
    %827 = vector.broadcast %cst_216 : f32 to vector<1x32xf32>
    %828 = arith.subf %827, %821 : vector<1x32xf32>
    %829 = arith.mulf %828, %826 : vector<1x32xf32>
    %830 = arith.mulf %821, %749 : vector<1x32xf32>
    %831 = arith.addf %829, %830 : vector<1x32xf32>
    %832 = arith.truncf %831 : vector<1x32xf32> to vector<1x32xbf16>
    %cst_217 = arith.constant dense<0.000000e+00> : vector<1x8xf32>
    %833 = tpu.matmul %832, %462, %cst_217 {dimension_numbers = #tpu.dot_dimension_numbers<[1], [0], [0], [1], [0, 0, 1, 1], [], []>} : vector<1x32xbf16>, vector<32x8xbf16>, vector<1x8xf32> -> vector<1x8xf32>
    %cst_218 = arith.constant dense<0xFF800000> : vector<1xf32>
    %834 = vector.multi_reduction <maximumf>, %833, %cst_218 [1] : vector<1x8xf32> to vector<1xf32>
    %835 = vector.shape_cast %834 : vector<1xf32> to vector<1x1xf32>
    %836 = vector.broadcast %835 : vector<1x1xf32> to vector<1x8xf32>
    %837 = arith.subf %833, %836 : vector<1x8xf32>
    %838 = math.exp %837 : vector<1x8xf32>
    %cst_219 = arith.constant dense<0.000000e+00> : vector<1xf32>
    %839 = vector.multi_reduction <add>, %838, %cst_219 [1] : vector<1x8xf32> to vector<1xf32>
    %840 = vector.shape_cast %839 : vector<1xf32> to vector<1x1xf32>
    %841 = tpu.reciprocal %840 : vector<1x1xf32> -> vector<1x1xf32>
    %842 = vector.broadcast %841 : vector<1x1xf32> to vector<1x8xf32>
    %843 = arith.mulf %838, %842 : vector<1x8xf32>
    %844 = arith.truncf %843 : vector<1x8xf32> to vector<1x8xbf16>
    %cst_220 = arith.constant dense<0.000000e+00> : vector<1x32xf32>
    %845 = tpu.matmul %844, %460, %cst_220 {dimension_numbers = #tpu.dot_dimension_numbers<[1], [0], [0], [1], [0, 0, 1, 1], [], []>} : vector<1x8xbf16>, vector<8x32xbf16>, vector<1x32xf32> -> vector<1x32xf32>
    %c224_221 = arith.constant 224 : index
    %c0_222 = arith.constant 0 : index
    %846 = vector.load %arg1[%c224_221, %c0_222] : memref<416x128xbf16, #tpu.memory_space<vmem>>, vector<32x128xbf16>
    %cst_223 = arith.constant dense<0.000000e+00> : vector<1x128xf32>
    %847 = tpu.matmul %832, %846, %cst_223 {dimension_numbers = #tpu.dot_dimension_numbers<[1], [0], [0], [1], [0, 0, 1, 1], [], []>} : vector<1x32xbf16>, vector<32x128xbf16>, vector<1x128xf32> -> vector<1x128xf32>
    %848 = arith.truncf %845 : vector<1x32xf32> to vector<1x32xbf16>
    %c256_224 = arith.constant 256 : index
    %c0_225 = arith.constant 0 : index
    %849 = vector.load %arg1[%c256_224, %c0_225] : memref<416x128xbf16, #tpu.memory_space<vmem>>, vector<32x128xbf16>
    %cst_226 = arith.constant dense<0.000000e+00> : vector<1x128xf32>
    %850 = tpu.matmul %848, %849, %cst_226 {dimension_numbers = #tpu.dot_dimension_numbers<[1], [0], [0], [1], [0, 0, 1, 1], [], []>} : vector<1x32xbf16>, vector<32x128xbf16>, vector<1x128xf32> -> vector<1x128xf32>
    %851 = arith.addf %847, %850 : vector<1x128xf32>
    %852 = arith.addf %851, %464 : vector<1x128xf32>
    %853 = math.tanh %852 : vector<1x128xf32>
    %854 = arith.truncf %853 : vector<1x128xf32> to vector<1x128xbf16>
    %c288_227 = arith.constant 288 : index
    %c0_228 = arith.constant 0 : index
    %855 = vector.load %arg1[%c288_227, %c0_228] : memref<416x128xbf16, #tpu.memory_space<vmem>>, vector<128x128xbf16>
    %cst_229 = arith.constant dense<0.000000e+00> : vector<1x128xf32>
    %856 = tpu.matmul %854, %855, %cst_229 {dimension_numbers = #tpu.dot_dimension_numbers<[1], [0], [0], [1], [0, 0, 1, 1], [], []>} : vector<1x128xbf16>, vector<128x128xbf16>, vector<1x128xf32> -> vector<1x128xf32>
    %857 = arith.addf %856, %465 : vector<1x128xf32>
    %cst_230 = arith.constant dense<0xFF800000> : vector<1xf32>
    %858 = vector.multi_reduction <maximumf>, %857, %cst_230 [1] : vector<1x128xf32> to vector<1xf32>
    %859 = vector.shape_cast %858 : vector<1xf32> to vector<1x1xf32>
    %860 = vector.broadcast %859 : vector<1x1xf32> to vector<1x128xf32>
    %861 = arith.subf %857, %860 : vector<1x128xf32>
    %862 = math.exp %861 : vector<1x128xf32>
    %cst_231 = arith.constant dense<0.000000e+00> : vector<1xf32>
    %863 = vector.multi_reduction <add>, %862, %cst_231 [1] : vector<1x128xf32> to vector<1xf32>
    %864 = vector.shape_cast %863 : vector<1xf32> to vector<1x1xf32>
    %865 = tpu.reciprocal %864 : vector<1x1xf32> -> vector<1x1xf32>
    %866 = vector.broadcast %859 : vector<1x1xf32> to vector<1x128xf32>
    %867 = arith.cmpf oge, %857, %866 : vector<1x128xf32>
    %c128_i32_232 = arith.constant 128 : i32
    %868 = vector.broadcast %c128_i32_232 : i32 to vector<1x128xi32>
    %869 = arith.select %867, %467, %868 : vector<1x128xi1>, vector<1x128xi32>
    %cst_233 = arith.constant dense<2147483647> : vector<1xi32>
    %870 = vector.multi_reduction <minsi>, %869, %cst_233 [1] : vector<1x128xi32> to vector<1xi32>
    %871 = vector.shape_cast %870 : vector<1xi32> to vector<1x1xi32>
    %c4_i32 = arith.constant 4 : i32
    %872 = vector.broadcast %c4_i32 : i32 to vector<1x128xi32>
    %873 = arith.cmpi eq, %467, %872 : vector<1x128xi32>
    %874 = vector.shape_cast %871 : vector<1x1xi32> to vector<1x1xi32>
    %875 = vector.broadcast %874 : vector<1x1xi32> to vector<1x128xi32>
    %876 = arith.select %873, %875, %794 : vector<1x128xi1>, vector<1x128xi32>
    %877 = vector.shape_cast %865 : vector<1x1xf32> to vector<1x1xf32>
    %878 = vector.broadcast %877 : vector<1x1xf32> to vector<1x128xf32>
    %879 = arith.select %873, %878, %797 : vector<1x128xi1>, vector<1x128xf32>
    %880 = vector.broadcast %871 : vector<1x1xi32> to vector<1x64xi32>
    %881 = arith.cmpi eq, %466, %880 : vector<1x64xi32>
    %882 = arith.extui %881 : vector<1x64xi1> to vector<1x64xi32>
    %883 = arith.sitofp %882 : vector<1x64xi32> to vector<1x64xf32>
    %884 = arith.truncf %883 : vector<1x64xf32> to vector<1x64xbf16>
    %c160_234 = arith.constant 160 : index
    %c0_235 = arith.constant 0 : index
    %885 = vector.load %arg1[%c160_234, %c0_235] : memref<416x128xbf16, #tpu.memory_space<vmem>>, vector<64x128xbf16>
    %cst_236 = arith.constant dense<0.000000e+00> : vector<1x128xf32>
    %886 = tpu.matmul %884, %885, %cst_236 {dimension_numbers = #tpu.dot_dimension_numbers<[1], [0], [0], [1], [0, 0, 1, 1], [], []>} : vector<1x64xbf16>, vector<64x128xbf16>, vector<1x128xf32> -> vector<1x128xf32>
    %887 = arith.truncf %831 : vector<1x32xf32> to vector<1x32xbf16>
    %c128_237 = arith.constant 128 : index
    %c0_238 = arith.constant 0 : index
    %888 = vector.load %arg1[%c128_237, %c0_238] : memref<416x128xbf16, #tpu.memory_space<vmem>>, vector<32x128xbf16>
    %cst_239 = arith.constant dense<0.000000e+00> : vector<1x128xf32>
    %889 = tpu.matmul %887, %888, %cst_239 {dimension_numbers = #tpu.dot_dimension_numbers<[1], [0], [0], [1], [0, 0, 1, 1], [], []>} : vector<1x32xbf16>, vector<32x128xbf16>, vector<1x128xf32> -> vector<1x128xf32>
    %890 = arith.addf %886, %889 : vector<1x128xf32>
    %891 = arith.addf %890, %463 : vector<1x128xf32>
    %892 = vector.extract_strided_slice %891 {offsets = [0, 0], sizes = [1, 32], strides = [1, 1]} : vector<1x128xf32> to vector<1x32xf32>
    %893 = arith.negf %892 : vector<1x32xf32>
    %894 = math.exp %893 : vector<1x32xf32>
    %cst_240 = arith.constant 1.000000e+00 : f32
    %895 = vector.broadcast %cst_240 : f32 to vector<1x32xf32>
    %896 = arith.addf %895, %894 : vector<1x32xf32>
    %897 = arith.divf %895, %896 : vector<1x32xf32>
    %898 = vector.extract_strided_slice %891 {offsets = [0, 32], sizes = [1, 32], strides = [1, 1]} : vector<1x128xf32> to vector<1x32xf32>
    %899 = arith.negf %898 : vector<1x32xf32>
    %900 = math.exp %899 : vector<1x32xf32>
    %cst_241 = arith.constant 1.000000e+00 : f32
    %901 = vector.broadcast %cst_241 : f32 to vector<1x32xf32>
    %902 = arith.addf %901, %900 : vector<1x32xf32>
    %903 = arith.divf %901, %902 : vector<1x32xf32>
    %904 = vector.extract_strided_slice %891 {offsets = [0, 64], sizes = [1, 32], strides = [1, 1]} : vector<1x128xf32> to vector<1x32xf32>
    %905 = vector.extract_strided_slice %891 {offsets = [0, 96], sizes = [1, 32], strides = [1, 1]} : vector<1x128xf32> to vector<1x32xf32>
    %906 = arith.mulf %897, %905 : vector<1x32xf32>
    %907 = arith.addf %904, %906 : vector<1x32xf32>
    %908 = math.tanh %907 : vector<1x32xf32>
    %cst_242 = arith.constant 1.000000e+00 : f32
    %909 = vector.broadcast %cst_242 : f32 to vector<1x32xf32>
    %910 = arith.subf %909, %903 : vector<1x32xf32>
    %911 = arith.mulf %910, %908 : vector<1x32xf32>
    %912 = arith.mulf %903, %831 : vector<1x32xf32>
    %913 = arith.addf %911, %912 : vector<1x32xf32>
    %914 = arith.truncf %913 : vector<1x32xf32> to vector<1x32xbf16>
    %cst_243 = arith.constant dense<0.000000e+00> : vector<1x8xf32>
    %915 = tpu.matmul %914, %462, %cst_243 {dimension_numbers = #tpu.dot_dimension_numbers<[1], [0], [0], [1], [0, 0, 1, 1], [], []>} : vector<1x32xbf16>, vector<32x8xbf16>, vector<1x8xf32> -> vector<1x8xf32>
    %cst_244 = arith.constant dense<0xFF800000> : vector<1xf32>
    %916 = vector.multi_reduction <maximumf>, %915, %cst_244 [1] : vector<1x8xf32> to vector<1xf32>
    %917 = vector.shape_cast %916 : vector<1xf32> to vector<1x1xf32>
    %918 = vector.broadcast %917 : vector<1x1xf32> to vector<1x8xf32>
    %919 = arith.subf %915, %918 : vector<1x8xf32>
    %920 = math.exp %919 : vector<1x8xf32>
    %cst_245 = arith.constant dense<0.000000e+00> : vector<1xf32>
    %921 = vector.multi_reduction <add>, %920, %cst_245 [1] : vector<1x8xf32> to vector<1xf32>
    %922 = vector.shape_cast %921 : vector<1xf32> to vector<1x1xf32>
    %923 = tpu.reciprocal %922 : vector<1x1xf32> -> vector<1x1xf32>
    %924 = vector.broadcast %923 : vector<1x1xf32> to vector<1x8xf32>
    %925 = arith.mulf %920, %924 : vector<1x8xf32>
    %926 = arith.truncf %925 : vector<1x8xf32> to vector<1x8xbf16>
    %cst_246 = arith.constant dense<0.000000e+00> : vector<1x32xf32>
    %927 = tpu.matmul %926, %460, %cst_246 {dimension_numbers = #tpu.dot_dimension_numbers<[1], [0], [0], [1], [0, 0, 1, 1], [], []>} : vector<1x8xbf16>, vector<8x32xbf16>, vector<1x32xf32> -> vector<1x32xf32>
    %c224_247 = arith.constant 224 : index
    %c0_248 = arith.constant 0 : index
    %928 = vector.load %arg1[%c224_247, %c0_248] : memref<416x128xbf16, #tpu.memory_space<vmem>>, vector<32x128xbf16>
    %cst_249 = arith.constant dense<0.000000e+00> : vector<1x128xf32>
    %929 = tpu.matmul %914, %928, %cst_249 {dimension_numbers = #tpu.dot_dimension_numbers<[1], [0], [0], [1], [0, 0, 1, 1], [], []>} : vector<1x32xbf16>, vector<32x128xbf16>, vector<1x128xf32> -> vector<1x128xf32>
    %930 = arith.truncf %927 : vector<1x32xf32> to vector<1x32xbf16>
    %c256_250 = arith.constant 256 : index
    %c0_251 = arith.constant 0 : index
    %931 = vector.load %arg1[%c256_250, %c0_251] : memref<416x128xbf16, #tpu.memory_space<vmem>>, vector<32x128xbf16>
    %cst_252 = arith.constant dense<0.000000e+00> : vector<1x128xf32>
    %932 = tpu.matmul %930, %931, %cst_252 {dimension_numbers = #tpu.dot_dimension_numbers<[1], [0], [0], [1], [0, 0, 1, 1], [], []>} : vector<1x32xbf16>, vector<32x128xbf16>, vector<1x128xf32> -> vector<1x128xf32>
    %933 = arith.addf %929, %932 : vector<1x128xf32>
    %934 = arith.addf %933, %464 : vector<1x128xf32>
    %935 = math.tanh %934 : vector<1x128xf32>
    %936 = arith.truncf %935 : vector<1x128xf32> to vector<1x128xbf16>
    %c288_253 = arith.constant 288 : index
    %c0_254 = arith.constant 0 : index
    %937 = vector.load %arg1[%c288_253, %c0_254] : memref<416x128xbf16, #tpu.memory_space<vmem>>, vector<128x128xbf16>
    %cst_255 = arith.constant dense<0.000000e+00> : vector<1x128xf32>
    %938 = tpu.matmul %936, %937, %cst_255 {dimension_numbers = #tpu.dot_dimension_numbers<[1], [0], [0], [1], [0, 0, 1, 1], [], []>} : vector<1x128xbf16>, vector<128x128xbf16>, vector<1x128xf32> -> vector<1x128xf32>
    %939 = arith.addf %938, %465 : vector<1x128xf32>
    %cst_256 = arith.constant dense<0xFF800000> : vector<1xf32>
    %940 = vector.multi_reduction <maximumf>, %939, %cst_256 [1] : vector<1x128xf32> to vector<1xf32>
    %941 = vector.shape_cast %940 : vector<1xf32> to vector<1x1xf32>
    %942 = vector.broadcast %941 : vector<1x1xf32> to vector<1x128xf32>
    %943 = arith.subf %939, %942 : vector<1x128xf32>
    %944 = math.exp %943 : vector<1x128xf32>
    %cst_257 = arith.constant dense<0.000000e+00> : vector<1xf32>
    %945 = vector.multi_reduction <add>, %944, %cst_257 [1] : vector<1x128xf32> to vector<1xf32>
    %946 = vector.shape_cast %945 : vector<1xf32> to vector<1x1xf32>
    %947 = tpu.reciprocal %946 : vector<1x1xf32> -> vector<1x1xf32>
    %948 = vector.broadcast %941 : vector<1x1xf32> to vector<1x128xf32>
    %949 = arith.cmpf oge, %939, %948 : vector<1x128xf32>
    %c128_i32_258 = arith.constant 128 : i32
    %950 = vector.broadcast %c128_i32_258 : i32 to vector<1x128xi32>
    %951 = arith.select %949, %467, %950 : vector<1x128xi1>, vector<1x128xi32>
    %cst_259 = arith.constant dense<2147483647> : vector<1xi32>
    %952 = vector.multi_reduction <minsi>, %951, %cst_259 [1] : vector<1x128xi32> to vector<1xi32>
    %953 = vector.shape_cast %952 : vector<1xi32> to vector<1x1xi32>
    %c5_i32 = arith.constant 5 : i32
    %954 = vector.broadcast %c5_i32 : i32 to vector<1x128xi32>
    %955 = arith.cmpi eq, %467, %954 : vector<1x128xi32>
    %956 = vector.shape_cast %953 : vector<1x1xi32> to vector<1x1xi32>
    %957 = vector.broadcast %956 : vector<1x1xi32> to vector<1x128xi32>
    %958 = arith.select %955, %957, %876 : vector<1x128xi1>, vector<1x128xi32>
    %959 = vector.shape_cast %947 : vector<1x1xf32> to vector<1x1xf32>
    %960 = vector.broadcast %959 : vector<1x1xf32> to vector<1x128xf32>
    %961 = arith.select %955, %960, %879 : vector<1x128xi1>, vector<1x128xf32>
    %c0_260 = arith.constant 0 : index
    %c0_261 = arith.constant 0 : index
    %962 = vector.load %arg3[%c0_260, %c0_261] : memref<1x128xi32, #tpu.memory_space<vmem>>, vector<1x128xi32>
    tpu.vector_store %arg3[%c0_260, %c0_261], %958 {strides = array<i32>} : memref<1x128xi32, #tpu.memory_space<vmem>>, vector<1x128xi32>,
    %c0_262 = arith.constant 0 : index
    %c0_263 = arith.constant 0 : index
    %963 = vector.load %arg4[%c0_262, %c0_263] : memref<1x128xf32, #tpu.memory_space<vmem>>, vector<1x128xf32>
    tpu.vector_store %arg4[%c0_262, %c0_263], %961 {strides = array<i32>} : memref<1x128xf32, #tpu.memory_space<vmem>>, vector<1x128xf32>,
    return
  }
}

</mosaic_0001>

<llo_original>
// kernel: greedy_search_decoder.1
$region0: #{greedy_search_decoder.1}
  #allocation0 [shape = 'u32[]', space=smem, size = 0x4, offset = 0x4, fixed_abs, tag = 'smem constant byte address 0x4 - core index']
  #allocation1 [shape = 'u32[144,128]{1,0:T(1,128)}', space=vmem, size = 0x12000, scoped, tag = 'internal scratch']
  %s0 = inlined_call_operand.vmem [shape: bf16[8,32], index: 0, kind: input, shape index: {}]
  %s1 = inlined_call_operand.hbm [shape: bf16[416,128], index: 1, kind: input, shape index: {}]
  %s2 = inlined_call_operand.vmem [shape: f32[5,128], index: 2, kind: input, shape index: {}]
  %s3 = inlined_call_operand.vmem [shape: s32[1,128], index: 3, kind: output, shape index: {0}]
  %s4 = inlined_call_operand.vmem [shape: f32[1,128], index: 4, kind: output, shape index: {1}]
  %5 = xla_tuple %s3, %s4
  %s6 = sld [smem:[#allocation0]]
  $region34: #{greedy_search_decoder.1} parent=0
    _
  %s8 = ssub.s32 1, %s6
  %s9 = scalar_select 0, %s8, %s6
  $region1: #{greedy_search_decoder.1} parent=0
    #allocation2 [shape = 'u8[106496]{0}', space=vmem, size = 0x1a000, scoped, tag = 'input window, operand 1, single buffered']
    #allocation3 [shape = 's32[1]{0}', space=sflag, size = 0x4, scoped, tag = 'scoped memory for greedy_search_decoder.1']
    %10 = vsyncpa [#allocation3], 0
    // Predicated region
    $region2: #{greedy_search_decoder.1} parent=1 // pred_check
      _
    $region3: #{greedy_search_decoder.1} parent=1 // pred_check_branch
      %12 = sbr.rel (0) target = $region5
    $region4: #{greedy_search_decoder.1} parent=1 // pred_region
      _
    $region5: #{greedy_search_decoder.1} parent=1 // pred_fallthru
      _
    // Predicated region
    $region6: #{greedy_search_decoder.1} parent=1 // pred_check
      _
    $region7: #{greedy_search_decoder.1} parent=1 // pred_check_branch
      %14 = sbr.rel (0) target = $region9
    $region8: #{greedy_search_decoder.1} parent=1 // pred_region
      %s16 = ssub.s32 3328, 3328
      %17 = vsyncadd [#allocation3], %s16
      %s18 = sshll.u32 [#allocation2], 4
      %s19 = int_to_ptr.vmem [resolvable:$true] %s18
      %24 = dma.hbm_to_vmem [thread:$0]  %s1, 3328, %s19, [#allocation3], 64, 64, 4
    $region9: #{greedy_search_decoder.1} parent=1 // pred_fallthru
      _
    // Predicated region
    $region10: #{greedy_search_decoder.1} parent=1 // pred_check
      _
    $region11: #{greedy_search_decoder.1} parent=1 // pred_check_branch
      %26 = sbr.rel (0) target = $region13
    $region12: #{greedy_search_decoder.1} parent=1 // pred_region
      _
    $region13: #{greedy_search_decoder.1} parent=1 // pred_fallthru
      _
    // Predicated region
    $region14: #{greedy_search_decoder.1} parent=1 // pred_check
      _
    $region15: #{greedy_search_decoder.1} parent=1 // pred_check_branch
      %28 = sbr.rel (0) target = $region17
    $region16: #{greedy_search_decoder.1} parent=1 // pred_region
      %29 = dma.done [#allocation3], 3328
    $region17: #{greedy_search_decoder.1} parent=1 // pred_fallthru
      _
    %v31 = vld [vmem:[%s0] sm:$0xf]
    %v32 = vld [vmem:[#allocation2] sm:$0xf]
    %v33 = vld [vmem:[#allocation2 + $0x4] sm:$0xf]
    %v34 = vld [vmem:[#allocation2 + $0x8] sm:$0xf]
    %v35 = vld [vmem:[#allocation2 + $0xc] sm:$0xf]
    %v40 = vunpack.c.l.b16 %v32
    %v41 = vunpack.c.l.b16 %v33
    %v42 = vunpack.c.l.b16 %v34
    %v43 = vunpack.c.l.b16 %v35
    %v44 = vpack.c.b16 %v41, %v40
    %v45 = vpack.c.b16 %v43, %v42
    %vm48 = vcmask 261120
    %v50 = vsel %vm48, %v31, 0
    %52 = vmatprep.subr.bf16.mxu0 0
    %53 = vmatpush1.bf16.msra.mxu0 %v44
    %54 = vmatprep.subr.bf16.mxu0 0
    %55 = vmatpush1.bf16.msra.mxu0 %v45
    %56 = vmatprep.subr.bf16.mxu0 0
    %57 = vmatpush1.bf16.msra.mxu0 0
    %58 = vmatprep.subr.bf16.mxu0 0
    %59 = vmatpush1.bf16.msra.mxu0 0
    %60 = vmatprep.subr.bf16.mxu0 0
    %61 = vmatpush1.bf16.msra.mxu0 0
    %62 = vmatprep.subr.bf16.mxu0 0
    %63 = vmatpush1.bf16.msra.mxu0 0
    %64 = vmatprep.subr.bf16.mxu0 0
    %65 = vmatpush1.bf16.msra.mxu0 0
    %66 = vmatprep.subr.bf16.mxu0 0
    %67 = vmatpush1.bf16.msra.mxu0 0
    %68 = vmatprep.subr.bf16.mxu0 0
    %69 = vmatpush1.bf16.msra.mxu0 0
    %70 = vmatprep.subr.bf16.mxu0 0
    %71 = vmatpush1.bf16.msra.mxu0 0
    %72 = vmatprep.subr.bf16.mxu0 0
    %73 = vmatpush1.bf16.msra.mxu0 0
    %74 = vmatprep.subr.bf16.mxu0 0
    %75 = vmatpush1.bf16.msra.mxu0 0
    %76 = vmatprep.subr.bf16.mxu0 0
    %77 = vmatpush1.bf16.msra.mxu0 0
    %78 = vmatprep.subr.bf16.mxu0 0
    %79 = vmatpush1.bf16.msra.mxu0 0
    %80 = vmatprep.subr.bf16.mxu0 0
    %81 = vmatpush1.bf16.msra.mxu0 0
    %82 = vmatprep.subr.bf16.mxu0 0
    %83 = vmatpush1.bf16.msra.mxu0 0
    %84 = vmatprep.mubr.bf16.mxu0 0
    %85 = vmatmul.mubr.bf16.gmra.mrb[0].mxu0 %v50
    %v86 = vpop.f32.mrb[0].mxu0
    %v87 = vadd.f32 0.0, %v86
    %v88 = vpop.f32.mrb[0].mxu0
    %v89 = vpop.f32.mrb[0].mxu0
    %v90 = vpop.f32.mrb[0].mxu0
    %91 = vdwg.mxu0
    %v92 = vld [vmem:[#allocation2 + $0x20] sm:$0xf]
    %v93 = vld [vmem:[#allocation2 + $0x24] sm:$0xf]
    %v94 = vld [vmem:[#allocation2 + $0x28] sm:$0xf]
    %v95 = vld [vmem:[#allocation2 + $0x2c] sm:$0xf]
    %v100 = vunpack.c.l.b16 %v92
    %v101 = vunpack.c.l.b16 %v93
    %v102 = vunpack.c.l.b16 %v94
    %v103 = vunpack.c.l.b16 %v95
    %v104 = vpack.c.b16 %v101, %v100
    %v105 = vpack.c.b16 %v103, %v102
    %108 = vmatprep.subr.bf16.mxu0 0
    %109 = vmatpush1.bf16.msra.mxu0 %v104
    %110 = vmatprep.subr.bf16.mxu0 0
    %111 = vmatpush1.bf16.msra.mxu0 %v105
    %112 = vmatprep.subr.bf16.mxu0 0
    %113 = vmatpush1.bf16.msra.mxu0 0
    %114 = vmatprep.subr.bf16.mxu0 0
    %115 = vmatpush1.bf16.msra.mxu0 0
    %116 = vmatprep.subr.bf16.mxu0 0
    %117 = vmatpush1.bf16.msra.mxu0 0
    %118 = vmatprep.subr.bf16.mxu0 0
    %119 = vmatpush1.bf16.msra.mxu0 0
    %120 = vmatprep.subr.bf16.mxu0 0
    %121 = vmatpush1.bf16.msra.mxu0 0
    %122 = vmatprep.subr.bf16.mxu0 0
    %123 = vmatpush1.bf16.msra.mxu0 0
    %124 = vmatprep.subr.bf16.mxu0 0
    %125 = vmatpush1.bf16.msra.mxu0 0
    %126 = vmatprep.subr.bf16.mxu0 0
    %127 = vmatpush1.bf16.msra.mxu0 0
    %128 = vmatprep.subr.bf16.mxu0 0
    %129 = vmatpush1.bf16.msra.mxu0 0
    %130 = vmatprep.subr.bf16.mxu0 0
    %131 = vmatpush1.bf16.msra.mxu0 0
    %132 = vmatprep.subr.bf16.mxu0 0
    %133 = vmatpush1.bf16.msra.mxu0 0
    %134 = vmatprep.subr.bf16.mxu0 0
    %135 = vmatpush1.bf16.msra.mxu0 0
    %136 = vmatprep.subr.bf16.mxu0 0
    %137 = vmatpush1.bf16.msra.mxu0 0
    %138 = vmatprep.subr.bf16.mxu0 0
    %139 = vmatpush1.bf16.msra.mxu0 0
    %140 = vmatprep.mubr.bf16.mxu0 0
    %141 = vmatmul.mubr.bf16.gmra.mrb[0].mxu0 %v50
    %v142 = vpop.f32.mrb[0].mxu0
    %v143 = vadd.f32 0.0, %v142
    %v144 = vpop.f32.mrb[0].mxu0
    %v145 = vpop.f32.mrb[0].mxu0
    %v146 = vpop.f32.mrb[0].mxu0
    %147 = vdwg.mxu0
    %v148 = vld [vmem:[%s2] sm:$0x1]
    %v149 = vld [vmem:[%s2 + $0x1] sm:$0x1]
    %v150 = vld [vmem:[#allocation2 + $0x10] sm:$0xf]
    %v151 = vld [vmem:[#allocation2 + $0x14] sm:$0xf]
    %v152 = vld [vmem:[#allocation2 + $0x18] sm:$0xf]
    %v153 = vld [vmem:[#allocation2 + $0x1c] sm:$0xf]
    %v158 = vunpack.c.l.b16 %v150
    %v159 = vunpack.c.l.b16 %v151
    %v160 = vunpack.c.l.b16 %v152
    %v161 = vunpack.c.l.b16 %v153
    %v162 = vpack.c.b16 %v159, %v158
    %v163 = vpack.c.b16 %v161, %v160
    %v167 = vsel %vm48, 0, 0
    %169 = vmatprep.subr.bf16.mxu0 0
    %170 = vmatpush1.bf16.msra.mxu0 %v162
    %171 = vmatprep.subr.bf16.mxu0 0
    %172 = vmatpush1.bf16.msra.mxu0 %v163
    %173 = vmatprep.subr.bf16.mxu0 0
    %174 = vmatpush1.bf16.msra.mxu0 0
    %175 = vmatprep.subr.bf16.mxu0 0
    %176 = vmatpush1.bf16.msra.mxu0 0
    %177 = vmatprep.subr.bf16.mxu0 0
    %178 = vmatpush1.bf16.msra.mxu0 0
    %179 = vmatprep.subr.bf16.mxu0 0
    %180 = vmatpush1.bf16.msra.mxu0 0
    %181 = vmatprep.subr.bf16.mxu0 0
    %182 = vmatpush1.bf16.msra.mxu0 0
    %183 = vmatprep.subr.bf16.mxu0 0
    %184 = vmatpush1.bf16.msra.mxu0 0
    %185 = vmatprep.subr.bf16.mxu0 0
    %186 = vmatpush1.bf16.msra.mxu0 0
    %187 = vmatprep.subr.bf16.mxu0 0
    %188 = vmatpush1.bf16.msra.mxu0 0
    %189 = vmatprep.subr.bf16.mxu0 0
    %190 = vmatpush1.bf16.msra.mxu0 0
    %191 = vmatprep.subr.bf16.mxu0 0
    %192 = vmatpush1.bf16.msra.mxu0 0
    %193 = vmatprep.subr.bf16.mxu0 0
    %194 = vmatpush1.bf16.msra.mxu0 0
    %195 = vmatprep.subr.bf16.mxu0 0
    %196 = vmatpush1.bf16.msra.mxu0 0
    %197 = vmatprep.subr.bf16.mxu0 0
    %198 = vmatpush1.bf16.msra.mxu0 0
    %199 = vmatprep.subr.bf16.mxu0 0
    %200 = vmatpush1.bf16.msra.mxu0 0
    %201 = vmatprep.mubr.bf16.mxu0 0
    %202 = vmatmul.mubr.bf16.gmra.mrb[0].mxu0 %v167
    %v203 = vpop.f32.mrb[0].mxu0
    %v204 = vadd.f32 0.0, %v203
    %v205 = vpop.f32.mrb[0].mxu0
    %v206 = vpop.f32.mrb[0].mxu0
    %v207 = vpop.f32.mrb[0].mxu0
    %208 = vdwg.mxu0
    %v209 = vadd.f32 %v87, %v204
    %v210 = vadd.f32 %v209, %v148
    %v211 = vxor.u32 %v210, 2147483648
    %v212 = vmul.f32 %v211, 1.442695
    %v213 = vpow.pop %v212
    %v214 = vadd.f32 %v213, 1.0
    %v215 = vrcp.pop %v214
    %v216 = vmul.f32 1.0, %v215
    %218 = vrot.lane.b32.xlu0 %v210, 32
    %v219 = vpop.permute.xlu0 %218
    %v221 = vmul.f32 %v216, %v219
    %223 = vrot.lane.b32.xlu0 %v221, 64
    %v224 = vpop.permute.xlu0 %223
    %v226 = vadd.f32 %v210, %v224
    %v227 = vtanh.pop %v226
    %v228 = vsub.f32 1.0, %v216
    %230 = vrot.lane.b32.xlu0 %v227, 96
    %v231 = vpop.permute.xlu0 %230
    %v233 = vmul.f32 %v228, %v231
    %v234 = vmul.f32 %v216, 0.0
    %v235 = vadd.f32 %v233, %v234
    %v236 = vpack.c.bf16 %v235, %v235
    %238 = vrot.lane.b32.xlu0 %v236, 96
    %v239 = vpop.permute.xlu0 %238
    %v241 = vsel %vm48, %v239, 0
    %243 = vmatprep.subr.bf16.mxu0 0
    %244 = vmatpush1.bf16.msra.mxu0 %v162
    %245 = vmatprep.subr.bf16.mxu0 0
    %246 = vmatpush1.bf16.msra.mxu0 %v163
    %247 = vmatprep.subr.bf16.mxu0 0
    %248 = vmatpush1.bf16.msra.mxu0 0
    %249 = vmatprep.subr.bf16.mxu0 0
    %250 = vmatpush1.bf16.msra.mxu0 0
    %251 = vmatprep.subr.bf16.mxu0 0
    %252 = vmatpush1.bf16.msra.mxu0 0
    %253 = vmatprep.subr.bf16.mxu0 0
    %254 = vmatpush1.bf16.msra.mxu0 0
    %255 = vmatprep.subr.bf16.mxu0 0
    %256 = vmatpush1.bf16.msra.mxu0 0
    %257 = vmatprep.subr.bf16.mxu0 0
    %258 = vmatpush1.bf16.msra.mxu0 0
    %259 = vmatprep.subr.bf16.mxu0 0
    %260 = vmatpush1.bf16.msra.mxu0 0
    %261 = vmatprep.subr.bf16.mxu0 0
    %262 = vmatpush1.bf16.msra.mxu0 0
    %263 = vmatprep.subr.bf16.mxu0 0
    %264 = vmatpush1.bf16.msra.mxu0 0
    %265 = vmatprep.subr.bf16.mxu0 0
    %266 = vmatpush1.bf16.msra.mxu0 0
    %267 = vmatprep.subr.bf16.mxu0 0
    %268 = vmatpush1.bf16.msra.mxu0 0
    %269 = vmatprep.subr.bf16.mxu0 0
    %270 = vmatpush1.bf16.msra.mxu0 0
    %271 = vmatprep.subr.bf16.mxu0 0
    %272 = vmatpush1.bf16.msra.mxu0 0
    %273 = vmatprep.subr.bf16.mxu0 0
    %274 = vmatpush1.bf16.msra.mxu0 0
    %275 = vmatprep.mubr.bf16.mxu0 0
    %276 = vmatmul.mubr.bf16.gmra.mrb[0].mxu0 %v241
    %v277 = vpop.f32.mrb[0].mxu0
    %v278 = vadd.f32 0.0, %v277
    %v279 = vpop.f32.mrb[0].mxu0
    %v280 = vpop.f32.mrb[0].mxu0
    %v281 = vpop.f32.mrb[0].mxu0
    %282 = vdwg.mxu0
    %v284 = vrot.slane %v278, 7
    %v286 = vadd.f32 %v87, %v284
    %v288 = vrot.slane %v148, 7
    %v290 = vadd.f32 %v286, %v288
    %v291 = vxor.u32 %v290, 2147483648
    %v292 = vmul.f32 %v291, 1.442695
    %v293 = vpow.pop %v292
    %v294 = vadd.f32 %v293, 1.0
    %v295 = vrcp.pop %v294
    %v296 = vmul.f32 1.0, %v295
    %298 = vrot.lane.b32.xlu0 %v290, 32
    %v299 = vpop.permute.xlu0 %298
    %v301 = vmul.f32 %v296, %v299
    %303 = vrot.lane.b32.xlu0 %v301, 64
    %v304 = vpop.permute.xlu0 %303
    %v306 = vadd.f32 %v290, %v304
    %v307 = vtanh.pop %v306
    %v308 = vsub.f32 1.0, %v296
    %310 = vrot.lane.b32.xlu0 %v307, 96
    %v311 = vpop.permute.xlu0 %310
    %v313 = vmul.f32 %v308, %v311
    %v315 = vrot.slane %v235, 7
    %v317 = vmul.f32 %v296, %v315
    %v318 = vadd.f32 %v313, %v317
    %v319 = vpack.c.bf16 %v318, %v318
    %v321 = vshrl.u32 %v319, 16
    %323 = vrot.lane.b32.xlu0 %v321, 96
    %v324 = vpop.permute.xlu0 %323
    %v326 = vsel %vm48, %v324, 0
    %328 = vmatprep.subr.bf16.mxu0 0
    %329 = vmatpush1.bf16.msra.mxu0 %v162
    %330 = vmatprep.subr.bf16.mxu0 0
    %331 = vmatpush1.bf16.msra.mxu0 %v163
    %332 = vmatprep.subr.bf16.mxu0 0
    %333 = vmatpush1.bf16.msra.mxu0 0
    %334 = vmatprep.subr.bf16.mxu0 0
    %335 = vmatpush1.bf16.msra.mxu0 0
    %336 = vmatprep.subr.bf16.mxu0 0
    %337 = vmatpush1.bf16.msra.mxu0 0
    %338 = vmatprep.subr.bf16.mxu0 0
    %339 = vmatpush1.bf16.msra.mxu0 0
    %340 = vmatprep.subr.bf16.mxu0 0
    %341 = vmatpush1.bf16.msra.mxu0 0
    %342 = vmatprep.subr.bf16.mxu0 0
    %343 = vmatpush1.bf16.msra.mxu0 0
    %344 = vmatprep.subr.bf16.mxu0 0
    %345 = vmatpush1.bf16.msra.mxu0 0
    %346 = vmatprep.subr.bf16.mxu0 0
    %347 = vmatpush1.bf16.msra.mxu0 0
    %348 = vmatprep.subr.bf16.mxu0 0
    %349 = vmatpush1.bf16.msra.mxu0 0
    %350 = vmatprep.subr.bf16.mxu0 0
    %351 = vmatpush1.bf16.msra.mxu0 0
    %352 = vmatprep.subr.bf16.mxu0 0
    %353 = vmatpush1.bf16.msra.mxu0 0
    %354 = vmatprep.subr.bf16.mxu0 0
    %355 = vmatpush1.bf16.msra.mxu0 0
    %356 = vmatprep.subr.bf16.mxu0 0
    %357 = vmatpush1.bf16.msra.mxu0 0
    %358 = vmatprep.subr.bf16.mxu0 0
    %359 = vmatpush1.bf16.msra.mxu0 0
    %360 = vmatprep.mubr.bf16.mxu0 0
    %361 = vmatmul.mubr.bf16.gmra.mrb[0].mxu0 %v326
    %v362 = vpop.f32.mrb[0].mxu0
    %v363 = vadd.f32 0.0, %v362
    %v364 = vpop.f32.mrb[0].mxu0
    %v365 = vpop.f32.mrb[0].mxu0
    %v366 = vpop.f32.mrb[0].mxu0
    %367 = vdwg.mxu0
    %v369 = vrot.slane %v363, 6
    %v371 = vadd.f32 %v87, %v369
    %v372 = vrot.slane %v148, 6
    %v374 = vadd.f32 %v371, %v372
    %v375 = vxor.u32 %v374, 2147483648
    %v376 = vmul.f32 %v375, 1.442695
    %v377 = vpow.pop %v376
    %v378 = vadd.f32 %v377, 1.0
    %v379 = vrcp.pop %v378
    %v380 = vmul.f32 1.0, %v379
    %382 = vrot.lane.b32.xlu0 %v374, 32
    %v383 = vpop.permute.xlu0 %382
    %v385 = vmul.f32 %v380, %v383
    %387 = vrot.lane.b32.xlu0 %v385, 64
    %v388 = vpop.permute.xlu0 %387
    %v390 = vadd.f32 %v374, %v388
    %v391 = vtanh.pop %v390
    %v392 = vsub.f32 1.0, %v380
    %394 = vrot.lane.b32.xlu0 %v391, 96
    %v395 = vpop.permute.xlu0 %394
    %v397 = vmul.f32 %v392, %v395
    %v399 = vrot.slane %v318, 7
    %v401 = vmul.f32 %v380, %v399
    %v402 = vadd.f32 %v397, %v401
    %v403 = vpack.c.bf16 %v402, %v402
    %v405 = vrot.slane %v403, 1
    %406 = vrot.lane.b32.xlu0 %v405, 96
    %v407 = vpop.permute.xlu0 %406
    %v409 = vsel %vm48, %v407, 0
    %411 = vmatprep.subr.bf16.mxu0 0
    %412 = vmatpush1.bf16.msra.mxu0 %v162
    %413 = vmatprep.subr.bf16.mxu0 0
    %414 = vmatpush1.bf16.msra.mxu0 %v163
    %415 = vmatprep.subr.bf16.mxu0 0
    %416 = vmatpush1.bf16.msra.mxu0 0
    %417 = vmatprep.subr.bf16.mxu0 0
    %418 = vmatpush1.bf16.msra.mxu0 0
    %419 = vmatprep.subr.bf16.mxu0 0
    %420 = vmatpush1.bf16.msra.mxu0 0
    %421 = vmatprep.subr.bf16.mxu0 0
    %422 = vmatpush1.bf16.msra.mxu0 0
    %423 = vmatprep.subr.bf16.mxu0 0
    %424 = vmatpush1.bf16.msra.mxu0 0
    %425 = vmatprep.subr.bf16.mxu0 0
    %426 = vmatpush1.bf16.msra.mxu0 0
    %427 = vmatprep.subr.bf16.mxu0 0
    %428 = vmatpush1.bf16.msra.mxu0 0
    %429 = vmatprep.subr.bf16.mxu0 0
    %430 = vmatpush1.bf16.msra.mxu0 0
    %431 = vmatprep.subr.bf16.mxu0 0
    %432 = vmatpush1.bf16.msra.mxu0 0
    %433 = vmatprep.subr.bf16.mxu0 0
    %434 = vmatpush1.bf16.msra.mxu0 0
    %435 = vmatprep.subr.bf16.mxu0 0
    %436 = vmatpush1.bf16.msra.mxu0 0
    %437 = vmatprep.subr.bf16.mxu0 0
    %438 = vmatpush1.bf16.msra.mxu0 0
    %439 = vmatprep.subr.bf16.mxu0 0
    %440 = vmatpush1.bf16.msra.mxu0 0
    %441 = vmatprep.subr.bf16.mxu0 0
    %442 = vmatpush1.bf16.msra.mxu0 0
    %443 = vmatprep.mubr.bf16.mxu0 0
    %444 = vmatmul.mubr.bf16.gmra.mrb[0].mxu0 %v409
    %v445 = vpop.f32.mrb[0].mxu0
    %v446 = vadd.f32 0.0, %v445
    %v447 = vpop.f32.mrb[0].mxu0
    %v448 = vpop.f32.mrb[0].mxu0
    %v449 = vpop.f32.mrb[0].mxu0
    %450 = vdwg.mxu0
    %v452 = vrot.slane %v446, 5
    %v454 = vadd.f32 %v87, %v452
    %v455 = vrot.slane %v148, 5
    %v457 = vadd.f32 %v454, %v455
    %v458 = vxor.u32 %v457, 2147483648
    %v459 = vmul.f32 %v458, 1.442695
    %v460 = vpow.pop %v459
    %v461 = vadd.f32 %v460, 1.0
    %v462 = vrcp.pop %v461
    %v463 = vmul.f32 1.0, %v462
    %465 = vrot.lane.b32.xlu0 %v457, 32
    %v466 = vpop.permute.xlu0 %465
    %v468 = vmul.f32 %v463, %v466
    %470 = vrot.lane.b32.xlu0 %v468, 64
    %v471 = vpop.permute.xlu0 %470
    %v473 = vadd.f32 %v457, %v471
    %v474 = vtanh.pop %v473
    %v475 = vsub.f32 1.0, %v463
    %477 = vrot.lane.b32.xlu0 %v474, 96
    %v478 = vpop.permute.xlu0 %477
    %v480 = vmul.f32 %v475, %v478
    %v482 = vrot.slane %v402, 7
    %v484 = vmul.f32 %v463, %v482
    %v485 = vadd.f32 %v480, %v484
    %v486 = vpack.c.bf16 %v485, %v485
    %v488 = vshrl.u32 %v486, 16
    %v490 = vrot.slane %v488, 1
    %491 = vrot.lane.b32.xlu0 %v490, 96
    %v492 = vpop.permute.xlu0 %491
    %v494 = vsel %vm48, %v492, 0
    %496 = vmatprep.subr.bf16.mxu0 0
    %497 = vmatpush1.bf16.msra.mxu0 %v162
    %498 = vmatprep.subr.bf16.mxu0 0
    %499 = vmatpush1.bf16.msra.mxu0 %v163
    %500 = vmatprep.subr.bf16.mxu0 0
    %501 = vmatpush1.bf16.msra.mxu0 0
    %502 = vmatprep.subr.bf16.mxu0 0
    %503 = vmatpush1.bf16.msra.mxu0 0
    %504 = vmatprep.subr.bf16.mxu0 0
    %505 = vmatpush1.bf16.msra.mxu0 0
    %506 = vmatprep.subr.bf16.mxu0 0
    %507 = vmatpush1.bf16.msra.mxu0 0
    %508 = vmatprep.subr.bf16.mxu0 0
    %509 = vmatpush1.bf16.msra.mxu0 0
    %510 = vmatprep.subr.bf16.mxu0 0
    %511 = vmatpush1.bf16.msra.mxu0 0
    %512 = vmatprep.subr.bf16.mxu0 0
    %513 = vmatpush1.bf16.msra.mxu0 0
    %514 = vmatprep.subr.bf16.mxu0 0
    %515 = vmatpush1.bf16.msra.mxu0 0
    %516 = vmatprep.subr.bf16.mxu0 0
    %517 = vmatpush1.bf16.msra.mxu0 0
    %518 = vmatprep.subr.bf16.mxu0 0
    %519 = vmatpush1.bf16.msra.mxu0 0
    %520 = vmatprep.subr.bf16.mxu0 0
    %521 = vmatpush1.bf16.msra.mxu0 0
    %522 = vmatprep.subr.bf16.mxu0 0
    %523 = vmatpush1.bf16.msra.mxu0 0
    %524 = vmatprep.subr.bf16.mxu0 0
    %525 = vmatpush1.bf16.msra.mxu0 0
    %526 = vmatprep.subr.bf16.mxu0 0
    %527 = vmatpush1.bf16.msra.mxu0 0
    %528 = vmatprep.mubr.bf16.mxu0 0
    %529 = vmatmul.mubr.bf16.gmra.mrb[0].mxu0 %v494
    %v530 = vpop.f32.mrb[0].mxu0
    %v531 = vadd.f32 0.0, %v530
    %v532 = vpop.f32.mrb[0].mxu0
    %v533 = vpop.f32.mrb[0].mxu0
    %v534 = vpop.f32.mrb[0].mxu0
    %535 = vdwg.mxu0
    %v537 = vrot.slane %v531, 4
    %v539 = vadd.f32 %v87, %v537
    %v540 = vrot.slane %v148, 4
    %v542 = vadd.f32 %v539, %v540
    %v543 = vxor.u32 %v542, 2147483648
    %v544 = vmul.f32 %v543, 1.442695
    %v545 = vpow.pop %v544
    %v546 = vadd.f32 %v545, 1.0
    %v547 = vrcp.pop %v546
    %v548 = vmul.f32 1.0, %v547
    %550 = vrot.lane.b32.xlu0 %v542, 32
    %v551 = vpop.permute.xlu0 %550
    %v553 = vmul.f32 %v548, %v551
    %555 = vrot.lane.b32.xlu0 %v553, 64
    %v556 = vpop.permute.xlu0 %555
    %v558 = vadd.f32 %v542, %v556
    %v559 = vtanh.pop %v558
    %v560 = vsub.f32 1.0, %v548
    %562 = vrot.lane.b32.xlu0 %v559, 96
    %v563 = vpop.permute.xlu0 %562
    %v565 = vmul.f32 %v560, %v563
    %v567 = vrot.slane %v485, 7
    %v569 = vmul.f32 %v548, %v567
    %v570 = vadd.f32 %v565, %v569
    %v571 = vpack.c.bf16 %v570, %v570
    %v573 = vrot.slane %v571, 2
    %574 = vrot.lane.b32.xlu0 %v573, 96
    %v575 = vpop.permute.xlu0 %574
    %v577 = vsel %vm48, %v575, 0
    %579 = vmatprep.subr.bf16.mxu0 0
    %580 = vmatpush1.bf16.msra.mxu0 %v162
    %581 = vmatprep.subr.bf16.mxu0 0
    %582 = vmatpush1.bf16.msra.mxu0 %v163
    %583 = vmatprep.subr.bf16.mxu0 0
    %584 = vmatpush1.bf16.msra.mxu0 0
    %585 = vmatprep.subr.bf16.mxu0 0
    %586 = vmatpush1.bf16.msra.mxu0 0
    %587 = vmatprep.subr.bf16.mxu0 0
    %588 = vmatpush1.bf16.msra.mxu0 0
    %589 = vmatprep.subr.bf16.mxu0 0
    %590 = vmatpush1.bf16.msra.mxu0 0
    %591 = vmatprep.subr.bf16.mxu0 0
    %592 = vmatpush1.bf16.msra.mxu0 0
    %593 = vmatprep.subr.bf16.mxu0 0
    %594 = vmatpush1.bf16.msra.mxu0 0
    %595 = vmatprep.subr.bf16.mxu0 0
    %596 = vmatpush1.bf16.msra.mxu0 0
    %597 = vmatprep.subr.bf16.mxu0 0
    %598 = vmatpush1.bf16.msra.mxu0 0
    %599 = vmatprep.subr.bf16.mxu0 0
    %600 = vmatpush1.bf16.msra.mxu0 0
    %601 = vmatprep.subr.bf16.mxu0 0
    %602 = vmatpush1.bf16.msra.mxu0 0
    %603 = vmatprep.subr.bf16.mxu0 0
    %604 = vmatpush1.bf16.msra.mxu0 0
    %605 = vmatprep.subr.bf16.mxu0 0
    %606 = vmatpush1.bf16.msra.mxu0 0
    %607 = vmatprep.subr.bf16.mxu0 0
    %608 = vmatpush1.bf16.msra.mxu0 0
    %609 = vmatprep.subr.bf16.mxu0 0
    %610 = vmatpush1.bf16.msra.mxu0 0
    %611 = vmatprep.mubr.bf16.mxu0 0
    %612 = vmatmul.mubr.bf16.gmra.mrb[0].mxu0 %v577
    %v613 = vpop.f32.mrb[0].mxu0
    %v614 = vadd.f32 0.0, %v613
    %v615 = vpop.f32.mrb[0].mxu0
    %v616 = vpop.f32.mrb[0].mxu0
    %v617 = vpop.f32.mrb[0].mxu0
    %618 = vdwg.mxu0
    %v620 = vrot.slane %v614, 3
    %v622 = vadd.f32 %v87, %v620
    %v623 = vrot.slane %v148, 3
    %v625 = vadd.f32 %v622, %v623
    %v626 = vxor.u32 %v625, 2147483648
    %v627 = vmul.f32 %v626, 1.442695
    %v628 = vpow.pop %v627
    %v629 = vadd.f32 %v628, 1.0
    %v630 = vrcp.pop %v629
    %v631 = vmul.f32 1.0, %v630
    %633 = vrot.lane.b32.xlu0 %v625, 32
    %v634 = vpop.permute.xlu0 %633
    %v636 = vmul.f32 %v631, %v634
    %638 = vrot.lane.b32.xlu0 %v636, 64
    %v639 = vpop.permute.xlu0 %638
    %v641 = vadd.f32 %v625, %v639
    %v642 = vtanh.pop %v641
    %v643 = vsub.f32 1.0, %v631
    %645 = vrot.lane.b32.xlu0 %v642, 96
    %v646 = vpop.permute.xlu0 %645
    %v648 = vmul.f32 %v643, %v646
    %v650 = vrot.slane %v570, 7
    %v652 = vmul.f32 %v631, %v650
    %v653 = vadd.f32 %v648, %v652
    %v654 = vpack.c.bf16 %v653, %v653
    %v656 = vshrl.u32 %v654, 16
    %v658 = vrot.slane %v656, 2
    %659 = vrot.lane.b32.xlu0 %v658, 96
    %v660 = vpop.permute.xlu0 %659
    %v662 = vsel %vm48, %v660, 0
    %664 = vmatprep.subr.bf16.mxu0 0
    %665 = vmatpush1.bf16.msra.mxu0 %v162
    %666 = vmatprep.subr.bf16.mxu0 0
    %667 = vmatpush1.bf16.msra.mxu0 %v163
    %668 = vmatprep.subr.bf16.mxu0 0
    %669 = vmatpush1.bf16.msra.mxu0 0
    %670 = vmatprep.subr.bf16.mxu0 0
    %671 = vmatpush1.bf16.msra.mxu0 0
    %672 = vmatprep.subr.bf16.mxu0 0
    %673 = vmatpush1.bf16.msra.mxu0 0
    %674 = vmatprep.subr.bf16.mxu0 0
    %675 = vmatpush1.bf16.msra.mxu0 0
    %676 = vmatprep.subr.bf16.mxu0 0
    %677 = vmatpush1.bf16.msra.mxu0 0
    %678 = vmatprep.subr.bf16.mxu0 0
    %679 = vmatpush1.bf16.msra.mxu0 0
    %680 = vmatprep.subr.bf16.mxu0 0
    %681 = vmatpush1.bf16.msra.mxu0 0
    %682 = vmatprep.subr.bf16.mxu0 0
    %683 = vmatpush1.bf16.msra.mxu0 0
    %684 = vmatprep.subr.bf16.mxu0 0
    %685 = vmatpush1.bf16.msra.mxu0 0
    %686 = vmatprep.subr.bf16.mxu0 0
    %687 = vmatpush1.bf16.msra.mxu0 0
    %688 = vmatprep.subr.bf16.mxu0 0
    %689 = vmatpush1.bf16.msra.mxu0 0
    %690 = vmatprep.subr.bf16.mxu0 0
    %691 = vmatpush1.bf16.msra.mxu0 0
    %692 = vmatprep.subr.bf16.mxu0 0
    %693 = vmatpush1.bf16.msra.mxu0 0
    %694 = vmatprep.subr.bf16.mxu0 0
    %695 = vmatpush1.bf16.msra.mxu0 0
    %696 = vmatprep.mubr.bf16.mxu0 0
    %697 = vmatmul.mubr.bf16.gmra.mrb[0].mxu0 %v662
    %v698 = vpop.f32.mrb[0].mxu0
    %v699 = vadd.f32 0.0, %v698
    %v700 = vpop.f32.mrb[0].mxu0
    %v701 = vpop.f32.mrb[0].mxu0
    %v702 = vpop.f32.mrb[0].mxu0
    %703 = vdwg.mxu0
    %v705 = vrot.slane %v699, 2
    %v707 = vadd.f32 %v87, %v705
    %v708 = vrot.slane %v148, 2
    %v710 = vadd.f32 %v707, %v708
    %v711 = vxor.u32 %v710, 2147483648
    %v712 = vmul.f32 %v711, 1.442695
    %v713 = vpow.pop %v712
    %v714 = vadd.f32 %v713, 1.0
    %v715 = vrcp.pop %v714
    %v716 = vmul.f32 1.0, %v715
    %718 = vrot.lane.b32.xlu0 %v710, 32
    %v719 = vpop.permute.xlu0 %718
    %v721 = vmul.f32 %v716, %v719
    %723 = vrot.lane.b32.xlu0 %v721, 64
    %v724 = vpop.permute.xlu0 %723
    %v726 = vadd.f32 %v710, %v724
    %v727 = vtanh.pop %v726
    %v728 = vsub.f32 1.0, %v716
    %730 = vrot.lane.b32.xlu0 %v727, 96
    %v731 = vpop.permute.xlu0 %730
    %v733 = vmul.f32 %v728, %v731
    %v735 = vrot.slane %v653, 7
    %v737 = vmul.f32 %v716, %v735
    %v738 = vadd.f32 %v733, %v737
    %v739 = vpack.c.bf16 %v738, %v738
    %v741 = vrot.slane %v739, 3
    %742 = vrot.lane.b32.xlu0 %v741, 96
    %v743 = vpop.permute.xlu0 %742
    %v745 = vsel %vm48, %v743, 0
    %747 = vmatprep.subr.bf16.mxu0 0
    %748 = vmatpush1.bf16.msra.mxu0 %v162
    %749 = vmatprep.subr.bf16.mxu0 0
    %750 = vmatpush1.bf16.msra.mxu0 %v163
    %751 = vmatprep.subr.bf16.mxu0 0
    %752 = vmatpush1.bf16.msra.mxu0 0
    %753 = vmatprep.subr.bf16.mxu0 0
    %754 = vmatpush1.bf16.msra.mxu0 0
    %755 = vmatprep.subr.bf16.mxu0 0
    %756 = vmatpush1.bf16.msra.mxu0 0
    %757 = vmatprep.subr.bf16.mxu0 0
    %758 = vmatpush1.bf16.msra.mxu0 0
    %759 = vmatprep.subr.bf16.mxu0 0
    %760 = vmatpush1.bf16.msra.mxu0 0
    %761 = vmatprep.subr.bf16.mxu0 0
    %762 = vmatpush1.bf16.msra.mxu0 0
    %763 = vmatprep.subr.bf16.mxu0 0
    %764 = vmatpush1.bf16.msra.mxu0 0
    %765 = vmatprep.subr.bf16.mxu0 0
    %766 = vmatpush1.bf16.msra.mxu0 0
    %767 = vmatprep.subr.bf16.mxu0 0
    %768 = vmatpush1.bf16.msra.mxu0 0
    %769 = vmatprep.subr.bf16.mxu0 0
    %770 = vmatpush1.bf16.msra.mxu0 0
    %771 = vmatprep.subr.bf16.mxu0 0
    %772 = vmatpush1.bf16.msra.mxu0 0
    %773 = vmatprep.subr.bf16.mxu0 0
    %774 = vmatpush1.bf16.msra.mxu0 0
    %775 = vmatprep.subr.bf16.mxu0 0
    %776 = vmatpush1.bf16.msra.mxu0 0
    %777 = vmatprep.subr.bf16.mxu0 0
    %778 = vmatpush1.bf16.msra.mxu0 0
    %779 = vmatprep.mubr.bf16.mxu0 0
    %780 = vmatmul.mubr.bf16.gmra.mrb[0].mxu0 %v745
    %v781 = vpop.f32.mrb[0].mxu0
    %v782 = vadd.f32 0.0, %v781
    %v783 = vpop.f32.mrb[0].mxu0
    %v784 = vpop.f32.mrb[0].mxu0
    %v785 = vpop.f32.mrb[0].mxu0
    %786 = vdwg.mxu0
    %v788 = vrot.slane %v782, 1
    %v790 = vadd.f32 %v87, %v788
    %v791 = vrot.slane %v148, 1
    %v793 = vadd.f32 %v790, %v791
    %v794 = vxor.u32 %v793, 2147483648
    %v795 = vmul.f32 %v794, 1.442695
    %v796 = vpow.pop %v795
    %v797 = vadd.f32 %v796, 1.0
    %v798 = vrcp.pop %v797
    %v799 = vmul.f32 1.0, %v798
    %801 = vrot.lane.b32.xlu0 %v793, 32
    %v802 = vpop.permute.xlu0 %801
    %v804 = vmul.f32 %v799, %v802
    %806 = vrot.lane.b32.xlu0 %v804, 64
    %v807 = vpop.permute.xlu0 %806
    %v809 = vadd.f32 %v793, %v807
    %v810 = vtanh.pop %v809
    %v811 = vsub.f32 1.0, %v799
    %813 = vrot.lane.b32.xlu0 %v810, 96
    %v814 = vpop.permute.xlu0 %813
    %v816 = vmul.f32 %v811, %v814
    %v818 = vrot.slane %v738, 7
    %v820 = vmul.f32 %v799, %v818
    %v821 = vadd.f32 %v816, %v820
    %v822 = vld [vmem:[#allocation2 + $0x30] sm:$0xf]
    %v823 = vld [vmem:[#allocation2 + $0x34] sm:$0xf]
    %v824 = vld [vmem:[#allocation2 + $0x38] sm:$0xf]
    %v825 = vld [vmem:[#allocation2 + $0x3c] sm:$0xf]
    %v830 = vunpack.c.l.b16 %v822
    %v831 = vunpack.c.l.b16 %v823
    %v832 = vunpack.c.l.b16 %v824
    %v833 = vunpack.c.l.b16 %v825
    %v834 = vpack.c.b16 %v831, %v830
    %v835 = vpack.c.b16 %v833, %v832
    %838 = vmatprep.subr.bf16.mxu0 0
    %839 = vmatpush1.bf16.msra.mxu0 %v834
    %840 = vmatprep.subr.bf16.mxu0 0
    %841 = vmatpush1.bf16.msra.mxu0 %v835
    %842 = vmatprep.subr.bf16.mxu0 0
    %843 = vmatpush1.bf16.msra.mxu0 0
    %844 = vmatprep.subr.bf16.mxu0 0
    %845 = vmatpush1.bf16.msra.mxu0 0
    %846 = vmatprep.subr.bf16.mxu0 0
    %847 = vmatpush1.bf16.msra.mxu0 0
    %848 = vmatprep.subr.bf16.mxu0 0
    %849 = vmatpush1.bf16.msra.mxu0 0
    %850 = vmatprep.subr.bf16.mxu0 0
    %851 = vmatpush1.bf16.msra.mxu0 0
    %852 = vmatprep.subr.bf16.mxu0 0
    %853 = vmatpush1.bf16.msra.mxu0 0
    %854 = vmatprep.subr.bf16.mxu0 0
    %855 = vmatpush1.bf16.msra.mxu0 0
    %856 = vmatprep.subr.bf16.mxu0 0
    %857 = vmatpush1.bf16.msra.mxu0 0
    %858 = vmatprep.subr.bf16.mxu0 0
    %859 = vmatpush1.bf16.msra.mxu0 0
    %860 = vmatprep.subr.bf16.mxu0 0
    %861 = vmatpush1.bf16.msra.mxu0 0
    %862 = vmatprep.subr.bf16.mxu0 0
    %863 = vmatpush1.bf16.msra.mxu0 0
    %864 = vmatprep.subr.bf16.mxu0 0
    %865 = vmatpush1.bf16.msra.mxu0 0
    %866 = vmatprep.subr.bf16.mxu0 0
    %867 = vmatpush1.bf16.msra.mxu0 0
    %868 = vmatprep.subr.bf16.mxu0 0
    %869 = vmatpush1.bf16.msra.mxu0 0
    %870 = vmatprep.mubr.bf16.mxu0 0
    %871 = vmatmul.mubr.bf16.gmra.mrb[0].mxu0 %v167
    %v872 = vpop.f32.mrb[0].mxu0
    %v873 = vadd.f32 0.0, %v872
    %v874 = vpop.f32.mrb[0].mxu0
    %v875 = vpop.f32.mrb[0].mxu0
    %v876 = vpop.f32.mrb[0].mxu0
    %877 = vdwg.mxu0
    %v879 = vrot.slane %v873, 1
    %v881 = vadd.f32 %v143, %v879
    %v883 = vrot.slane %v149, 1
    %v885 = vadd.f32 %v881, %v883
    %v886 = vxor.u32 %v885, 2147483648
    %v887 = vmul.f32 %v886, 1.442695
    %v888 = vpow.pop %v887
    %v889 = vadd.f32 %v888, 1.0
    %v890 = vrcp.pop %v889
    %v891 = vmul.f32 1.0, %v890
    %893 = vrot.lane.b32.xlu0 %v885, 32
    %v894 = vpop.permute.xlu0 %893
    %v896 = vmul.f32 %v891, %v894
    %898 = vrot.lane.b32.xlu0 %v896, 64
    %v899 = vpop.permute.xlu0 %898
    %v901 = vadd.f32 %v885, %v899
    %v902 = vtanh.pop %v901
    %v903 = vsub.f32 1.0, %v891
    %905 = vrot.lane.b32.xlu0 %v902, 96
    %v906 = vpop.permute.xlu0 %905
    %v908 = vmul.f32 %v903, %v906
    %v909 = vmul.f32 %v891, 0.0
    %v910 = vadd.f32 %v908, %v909
    %v911 = vpack.c.bf16 %v910, %v910
    %v913 = vshrl.u32 %v911, 16
    %v915 = vrot.slane %v913, 3
    %916 = vrot.lane.b32.xlu0 %v915, 96
    %v917 = vpop.permute.xlu0 %916
    %v919 = vsel %vm48, %v917, 0
    %921 = vmatprep.subr.bf16.mxu0 0
    %922 = vmatpush1.bf16.msra.mxu0 %v834
    %923 = vmatprep.subr.bf16.mxu0 0
    %924 = vmatpush1.bf16.msra.mxu0 %v835
    %925 = vmatprep.subr.bf16.mxu0 0
    %926 = vmatpush1.bf16.msra.mxu0 0
    %927 = vmatprep.subr.bf16.mxu0 0
    %928 = vmatpush1.bf16.msra.mxu0 0
    %929 = vmatprep.subr.bf16.mxu0 0
    %930 = vmatpush1.bf16.msra.mxu0 0
    %931 = vmatprep.subr.bf16.mxu0 0
    %932 = vmatpush1.bf16.msra.mxu0 0
    %933 = vmatprep.subr.bf16.mxu0 0
    %934 = vmatpush1.bf16.msra.mxu0 0
    %935 = vmatprep.subr.bf16.mxu0 0
    %936 = vmatpush1.bf16.msra.mxu0 0
    %937 = vmatprep.subr.bf16.mxu0 0
    %938 = vmatpush1.bf16.msra.mxu0 0
    %939 = vmatprep.subr.bf16.mxu0 0
    %940 = vmatpush1.bf16.msra.mxu0 0
    %941 = vmatprep.subr.bf16.mxu0 0
    %942 = vmatpush1.bf16.msra.mxu0 0
    %943 = vmatprep.subr.bf16.mxu0 0
    %944 = vmatpush1.bf16.msra.mxu0 0
    %945 = vmatprep.subr.bf16.mxu0 0
    %946 = vmatpush1.bf16.msra.mxu0 0
    %947 = vmatprep.subr.bf16.mxu0 0
    %948 = vmatpush1.bf16.msra.mxu0 0
    %949 = vmatprep.subr.bf16.mxu0 0
    %950 = vmatpush1.bf16.msra.mxu0 0
    %951 = vmatprep.subr.bf16.mxu0 0
    %952 = vmatpush1.bf16.msra.mxu0 0
    %953 = vmatprep.mubr.bf16.mxu0 0
    %954 = vmatmul.mubr.bf16.gmra.mrb[0].mxu0 %v919
    %v955 = vpop.f32.mrb[0].mxu0
    %v956 = vadd.f32 0.0, %v955
    %v957 = vpop.f32.mrb[0].mxu0
    %v958 = vpop.f32.mrb[0].mxu0
    %v959 = vpop.f32.mrb[0].mxu0
    %960 = vdwg.mxu0
    %v962 = vrot.slane %v956, 2
    %v964 = vadd.f32 %v143, %v962
    %v965 = vrot.slane %v149, 2
    %v967 = vadd.f32 %v964, %v965
    %v968 = vxor.u32 %v967, 2147483648
    %v969 = vmul.f32 %v968, 1.442695
    %v970 = vpow.pop %v969
    %v971 = vadd.f32 %v970, 1.0
    %v972 = vrcp.pop %v971
    %v973 = vmul.f32 1.0, %v972
    %975 = vrot.lane.b32.xlu0 %v967, 32
    %v976 = vpop.permute.xlu0 %975
    %v978 = vmul.f32 %v973, %v976
    %980 = vrot.lane.b32.xlu0 %v978, 64
    %v981 = vpop.permute.xlu0 %980
    %v983 = vadd.f32 %v967, %v981
    %v984 = vtanh.pop %v983
    %v985 = vsub.f32 1.0, %v973
    %987 = vrot.lane.b32.xlu0 %v984, 96
    %v988 = vpop.permute.xlu0 %987
    %v990 = vmul.f32 %v985, %v988
    %v992 = vrot.slane %v910, 1
    %v994 = vmul.f32 %v973, %v992
    %v995 = vadd.f32 %v990, %v994
    %v996 = vpack.c.bf16 %v995, %v995
    %v998 = vrot.slane %v996, 3
    %999 = vrot.lane.b32.xlu0 %v998, 96
    %v1000 = vpop.permute.xlu0 %999
    %v1002 = vsel %vm48, %v1000, 0
    %1004 = vmatprep.subr.bf16.mxu0 0
    %1005 = vmatpush1.bf16.msra.mxu0 %v834
    %1006 = vmatprep.subr.bf16.mxu0 0
    %1007 = vmatpush1.bf16.msra.mxu0 %v835
    %1008 = vmatprep.subr.bf16.mxu0 0
    %1009 = vmatpush1.bf16.msra.mxu0 0
    %1010 = vmatprep.subr.bf16.mxu0 0
    %1011 = vmatpush1.bf16.msra.mxu0 0
    %1012 = vmatprep.subr.bf16.mxu0 0
    %1013 = vmatpush1.bf16.msra.mxu0 0
    %1014 = vmatprep.subr.bf16.mxu0 0
    %1015 = vmatpush1.bf16.msra.mxu0 0
    %1016 = vmatprep.subr.bf16.mxu0 0
    %1017 = vmatpush1.bf16.msra.mxu0 0
    %1018 = vmatprep.subr.bf16.mxu0 0
    %1019 = vmatpush1.bf16.msra.mxu0 0
    %1020 = vmatprep.subr.bf16.mxu0 0
    %1021 = vmatpush1.bf16.msra.mxu0 0
    %1022 = vmatprep.subr.bf16.mxu0 0
    %1023 = vmatpush1.bf16.msra.mxu0 0
    %1024 = vmatprep.subr.bf16.mxu0 0
    %1025 = vmatpush1.bf16.msra.mxu0 0
    %1026 = vmatprep.subr.bf16.mxu0 0
    %1027 = vmatpush1.bf16.msra.mxu0 0
    %1028 = vmatprep.subr.bf16.mxu0 0
    %1029 = vmatpush1.bf16.msra.mxu0 0
    %1030 = vmatprep.subr.bf16.mxu0 0
    %1031 = vmatpush1.bf16.msra.mxu0 0
    %1032 = vmatprep.subr.bf16.mxu0 0
    %1033 = vmatpush1.bf16.msra.mxu0 0
    %1034 = vmatprep.subr.bf16.mxu0 0
    %1035 = vmatpush1.bf16.msra.mxu0 0
    %1036 = vmatprep.mubr.bf16.mxu0 0
    %1037 = vmatmul.mubr.bf16.gmra.mrb[0].mxu0 %v1002
    %v1038 = vpop.f32.mrb[0].mxu0
    %v1039 = vadd.f32 0.0, %v1038
    %v1040 = vpop.f32.mrb[0].mxu0
    %v1041 = vpop.f32.mrb[0].mxu0
    %v1042 = vpop.f32.mrb[0].mxu0
    %1043 = vdwg.mxu0
    %v1045 = vrot.slane %v1039, 3
    %v1047 = vadd.f32 %v143, %v1045
    %v1048 = vrot.slane %v149, 3
    %v1050 = vadd.f32 %v1047, %v1048
    %v1051 = vxor.u32 %v1050, 2147483648
    %v1052 = vmul.f32 %v1051, 1.442695
    %v1053 = vpow.pop %v1052
    %v1054 = vadd.f32 %v1053, 1.0
    %v1055 = vrcp.pop %v1054
    %v1056 = vmul.f32 1.0, %v1055
    %1058 = vrot.lane.b32.xlu0 %v1050, 32
    %v1059 = vpop.permute.xlu0 %1058
    %v1061 = vmul.f32 %v1056, %v1059
    %1063 = vrot.lane.b32.xlu0 %v1061, 64
    %v1064 = vpop.permute.xlu0 %1063
    %v1066 = vadd.f32 %v1050, %v1064
    %v1067 = vtanh.pop %v1066
    %v1068 = vsub.f32 1.0, %v1056
    %1070 = vrot.lane.b32.xlu0 %v1067, 96
    %v1071 = vpop.permute.xlu0 %1070
    %v1073 = vmul.f32 %v1068, %v1071
    %v1075 = vrot.slane %v995, 1
    %v1077 = vmul.f32 %v1056, %v1075
    %v1078 = vadd.f32 %v1073, %v1077
    %v1079 = vpack.c.bf16 %v1078, %v1078
    %v1081 = vshrl.u32 %v1079, 16
    %v1083 = vrot.slane %v1081, 2
    %1084 = vrot.lane.b32.xlu0 %v1083, 96
    %v1085 = vpop.permute.xlu0 %1084
    %v1087 = vsel %vm48, %v1085, 0
    %1089 = vmatprep.subr.bf16.mxu0 0
    %1090 = vmatpush1.bf16.msra.mxu0 %v834
    %1091 = vmatprep.subr.bf16.mxu0 0
    %1092 = vmatpush1.bf16.msra.mxu0 %v835
    %1093 = vmatprep.subr.bf16.mxu0 0
    %1094 = vmatpush1.bf16.msra.mxu0 0
    %1095 = vmatprep.subr.bf16.mxu0 0
    %1096 = vmatpush1.bf16.msra.mxu0 0
    %1097 = vmatprep.subr.bf16.mxu0 0
    %1098 = vmatpush1.bf16.msra.mxu0 0
    %1099 = vmatprep.subr.bf16.mxu0 0
    %1100 = vmatpush1.bf16.msra.mxu0 0
    %1101 = vmatprep.subr.bf16.mxu0 0
    %1102 = vmatpush1.bf16.msra.mxu0 0
    %1103 = vmatprep.subr.bf16.mxu0 0
    %1104 = vmatpush1.bf16.msra.mxu0 0
    %1105 = vmatprep.subr.bf16.mxu0 0
    %1106 = vmatpush1.bf16.msra.mxu0 0
    %1107 = vmatprep.subr.bf16.mxu0 0
    %1108 = vmatpush1.bf16.msra.mxu0 0
    %1109 = vmatprep.subr.bf16.mxu0 0
    %1110 = vmatpush1.bf16.msra.mxu0 0
    %1111 = vmatprep.subr.bf16.mxu0 0
    %1112 = vmatpush1.bf16.msra.mxu0 0
    %1113 = vmatprep.subr.bf16.mxu0 0
    %1114 = vmatpush1.bf16.msra.mxu0 0
    %1115 = vmatprep.subr.bf16.mxu0 0
    %1116 = vmatpush1.bf16.msra.mxu0 0
    %1117 = vmatprep.subr.bf16.mxu0 0
    %1118 = vmatpush1.bf16.msra.mxu0 0
    %1119 = vmatprep.subr.bf16.mxu0 0
    %1120 = vmatpush1.bf16.msra.mxu0 0
    %1121 = vmatprep.mubr.bf16.mxu0 0
    %1122 = vmatmul.mubr.bf16.gmra.mrb[0].mxu0 %v1087
    %v1123 = vpop.f32.mrb[0].mxu0
    %v1124 = vadd.f32 0.0, %v1123
    %v1125 = vpop.f32.mrb[0].mxu0
    %v1126 = vpop.f32.mrb[0].mxu0
    %v1127 = vpop.f32.mrb[0].mxu0
    %1128 = vdwg.mxu0
    %v1130 = vrot.slane %v1124, 4
    %v1132 = vadd.f32 %v143, %v1130
    %v1133 = vrot.slane %v149, 4
    %v1135 = vadd.f32 %v1132, %v1133
    %v1136 = vxor.u32 %v1135, 2147483648
    %v1137 = vmul.f32 %v1136, 1.442695
    %v1138 = vpow.pop %v1137
    %v1139 = vadd.f32 %v1138, 1.0
    %v1140 = vrcp.pop %v1139
    %v1141 = vmul.f32 1.0, %v1140
    %1143 = vrot.lane.b32.xlu0 %v1135, 32
    %v1144 = vpop.permute.xlu0 %1143
    %v1146 = vmul.f32 %v1141, %v1144
    %1148 = vrot.lane.b32.xlu0 %v1146, 64
    %v1149 = vpop.permute.xlu0 %1148
    %v1151 = vadd.f32 %v1135, %v1149
    %v1152 = vtanh.pop %v1151
    %v1153 = vsub.f32 1.0, %v1141
    %1155 = vrot.lane.b32.xlu0 %v1152, 96
    %v1156 = vpop.permute.xlu0 %1155
    %v1158 = vmul.f32 %v1153, %v1156
    %v1160 = vrot.slane %v1078, 1
    %v1162 = vmul.f32 %v1141, %v1160
    %v1163 = vadd.f32 %v1158, %v1162
    %v1164 = vpack.c.bf16 %v1163, %v1163
    %v1166 = vrot.slane %v1164, 2
    %1167 = vrot.lane.b32.xlu0 %v1166, 96
    %v1168 = vpop.permute.xlu0 %1167
    %v1170 = vsel %vm48, %v1168, 0
    %1172 = vmatprep.subr.bf16.mxu0 0
    %1173 = vmatpush1.bf16.msra.mxu0 %v834
    %1174 = vmatprep.subr.bf16.mxu0 0
    %1175 = vmatpush1.bf16.msra.mxu0 %v835
    %1176 = vmatprep.subr.bf16.mxu0 0
    %1177 = vmatpush1.bf16.msra.mxu0 0
    %1178 = vmatprep.subr.bf16.mxu0 0
    %1179 = vmatpush1.bf16.msra.mxu0 0
    %1180 = vmatprep.subr.bf16.mxu0 0
    %1181 = vmatpush1.bf16.msra.mxu0 0
    %1182 = vmatprep.subr.bf16.mxu0 0
    %1183 = vmatpush1.bf16.msra.mxu0 0
    %1184 = vmatprep.subr.bf16.mxu0 0
    %1185 = vmatpush1.bf16.msra.mxu0 0
    %1186 = vmatprep.subr.bf16.mxu0 0
    %1187 = vmatpush1.bf16.msra.mxu0 0
    %1188 = vmatprep.subr.bf16.mxu0 0
    %1189 = vmatpush1.bf16.msra.mxu0 0
    %1190 = vmatprep.subr.bf16.mxu0 0
    %1191 = vmatpush1.bf16.msra.mxu0 0
    %1192 = vmatprep.subr.bf16.mxu0 0
    %1193 = vmatpush1.bf16.msra.mxu0 0
    %1194 = vmatprep.subr.bf16.mxu0 0
    %1195 = vmatpush1.bf16.msra.mxu0 0
    %1196 = vmatprep.subr.bf16.mxu0 0
    %1197 = vmatpush1.bf16.msra.mxu0 0
    %1198 = vmatprep.subr.bf16.mxu0 0
    %1199 = vmatpush1.bf16.msra.mxu0 0
    %1200 = vmatprep.subr.bf16.mxu0 0
    %1201 = vmatpush1.bf16.msra.mxu0 0
    %1202 = vmatprep.subr.bf16.mxu0 0
    %1203 = vmatpush1.bf16.msra.mxu0 0
    %1204 = vmatprep.mubr.bf16.mxu0 0
    %1205 = vmatmul.mubr.bf16.gmra.mrb[0].mxu0 %v1170
    %v1206 = vpop.f32.mrb[0].mxu0
    %v1207 = vadd.f32 0.0, %v1206
    %v1208 = vpop.f32.mrb[0].mxu0
    %v1209 = vpop.f32.mrb[0].mxu0
    %v1210 = vpop.f32.mrb[0].mxu0
    %1211 = vdwg.mxu0
    %v1213 = vrot.slane %v1207, 5
    %v1215 = vadd.f32 %v143, %v1213
    %v1216 = vrot.slane %v149, 5
    %v1218 = vadd.f32 %v1215, %v1216
    %v1219 = vxor.u32 %v1218, 2147483648
    %v1220 = vmul.f32 %v1219, 1.442695
    %v1221 = vpow.pop %v1220
    %v1222 = vadd.f32 %v1221, 1.0
    %v1223 = vrcp.pop %v1222
    %v1224 = vmul.f32 1.0, %v1223
    %1226 = vrot.lane.b32.xlu0 %v1218, 32
    %v1227 = vpop.permute.xlu0 %1226
    %v1229 = vmul.f32 %v1224, %v1227
    %1231 = vrot.lane.b32.xlu0 %v1229, 64
    %v1232 = vpop.permute.xlu0 %1231
    %v1234 = vadd.f32 %v1218, %v1232
    %v1235 = vtanh.pop %v1234
    %v1236 = vsub.f32 1.0, %v1224
    %1238 = vrot.lane.b32.xlu0 %v1235, 96
    %v1239 = vpop.permute.xlu0 %1238
    %v1241 = vmul.f32 %v1236, %v1239
    %v1243 = vrot.slane %v1163, 1
    %v1245 = vmul.f32 %v1224, %v1243
    %v1246 = vadd.f32 %v1241, %v1245
    %v1247 = vpack.c.bf16 %v1246, %v1246
    %v1249 = vshrl.u32 %v1247, 16
    %v1251 = vrot.slane %v1249, 1
    %1252 = vrot.lane.b32.xlu0 %v1251, 96
    %v1253 = vpop.permute.xlu0 %1252
    %v1255 = vsel %vm48, %v1253, 0
    %1257 = vmatprep.subr.bf16.mxu0 0
    %1258 = vmatpush1.bf16.msra.mxu0 %v834
    %1259 = vmatprep.subr.bf16.mxu0 0
    %1260 = vmatpush1.bf16.msra.mxu0 %v835
    %1261 = vmatprep.subr.bf16.mxu0 0
    %1262 = vmatpush1.bf16.msra.mxu0 0
    %1263 = vmatprep.subr.bf16.mxu0 0
    %1264 = vmatpush1.bf16.msra.mxu0 0
    %1265 = vmatprep.subr.bf16.mxu0 0
    %1266 = vmatpush1.bf16.msra.mxu0 0
    %1267 = vmatprep.subr.bf16.mxu0 0
    %1268 = vmatpush1.bf16.msra.mxu0 0
    %1269 = vmatprep.subr.bf16.mxu0 0
    %1270 = vmatpush1.bf16.msra.mxu0 0
    %1271 = vmatprep.subr.bf16.mxu0 0
    %1272 = vmatpush1.bf16.msra.mxu0 0
    %1273 = vmatprep.subr.bf16.mxu0 0
    %1274 = vmatpush1.bf16.msra.mxu0 0
    %1275 = vmatprep.subr.bf16.mxu0 0
    %1276 = vmatpush1.bf16.msra.mxu0 0
    %1277 = vmatprep.subr.bf16.mxu0 0
    %1278 = vmatpush1.bf16.msra.mxu0 0
    %1279 = vmatprep.subr.bf16.mxu0 0
    %1280 = vmatpush1.bf16.msra.mxu0 0
    %1281 = vmatprep.subr.bf16.mxu0 0
    %1282 = vmatpush1.bf16.msra.mxu0 0
    %1283 = vmatprep.subr.bf16.mxu0 0
    %1284 = vmatpush1.bf16.msra.mxu0 0
    %1285 = vmatprep.subr.bf16.mxu0 0
    %1286 = vmatpush1.bf16.msra.mxu0 0
    %1287 = vmatprep.subr.bf16.mxu0 0
    %1288 = vmatpush1.bf16.msra.mxu0 0
    %1289 = vmatprep.mubr.bf16.mxu0 0
    %1290 = vmatmul.mubr.bf16.gmra.mrb[0].mxu0 %v1255
    %v1291 = vpop.f32.mrb[0].mxu0
    %v1292 = vadd.f32 0.0, %v1291
    %v1293 = vpop.f32.mrb[0].mxu0
    %v1294 = vpop.f32.mrb[0].mxu0
    %v1295 = vpop.f32.mrb[0].mxu0
    %1296 = vdwg.mxu0
    %v1298 = vrot.slane %v1292, 6
    %v1300 = vadd.f32 %v143, %v1298
    %v1301 = vrot.slane %v149, 6
    %v1303 = vadd.f32 %v1300, %v1301
    %v1304 = vxor.u32 %v1303, 2147483648
    %v1305 = vmul.f32 %v1304, 1.442695
    %v1306 = vpow.pop %v1305
    %v1307 = vadd.f32 %v1306, 1.0
    %v1308 = vrcp.pop %v1307
    %v1309 = vmul.f32 1.0, %v1308
    %1311 = vrot.lane.b32.xlu0 %v1303, 32
    %v1312 = vpop.permute.xlu0 %1311
    %v1314 = vmul.f32 %v1309, %v1312
    %1316 = vrot.lane.b32.xlu0 %v1314, 64
    %v1317 = vpop.permute.xlu0 %1316
    %v1319 = vadd.f32 %v1303, %v1317
    %v1320 = vtanh.pop %v1319
    %v1321 = vsub.f32 1.0, %v1309
    %1323 = vrot.lane.b32.xlu0 %v1320, 96
    %v1324 = vpop.permute.xlu0 %1323
    %v1326 = vmul.f32 %v1321, %v1324
    %v1328 = vrot.slane %v1246, 1
    %v1330 = vmul.f32 %v1309, %v1328
    %v1331 = vadd.f32 %v1326, %v1330
    %v1332 = vpack.c.bf16 %v1331, %v1331
    %v1334 = vrot.slane %v1332, 1
    %1335 = vrot.lane.b32.xlu0 %v1334, 96
    %v1336 = vpop.permute.xlu0 %1335
    %v1338 = vsel %vm48, %v1336, 0
    %1340 = vmatprep.subr.bf16.mxu0 0
    %1341 = vmatpush1.bf16.msra.mxu0 %v834
    %1342 = vmatprep.subr.bf16.mxu0 0
    %1343 = vmatpush1.bf16.msra.mxu0 %v835
    %1344 = vmatprep.subr.bf16.mxu0 0
    %1345 = vmatpush1.bf16.msra.mxu0 0
    %1346 = vmatprep.subr.bf16.mxu0 0
    %1347 = vmatpush1.bf16.msra.mxu0 0
    %1348 = vmatprep.subr.bf16.mxu0 0
    %1349 = vmatpush1.bf16.msra.mxu0 0
    %1350 = vmatprep.subr.bf16.mxu0 0
    %1351 = vmatpush1.bf16.msra.mxu0 0
    %1352 = vmatprep.subr.bf16.mxu0 0
    %1353 = vmatpush1.bf16.msra.mxu0 0
    %1354 = vmatprep.subr.bf16.mxu0 0
    %1355 = vmatpush1.bf16.msra.mxu0 0
    %1356 = vmatprep.subr.bf16.mxu0 0
    %1357 = vmatpush1.bf16.msra.mxu0 0
    %1358 = vmatprep.subr.bf16.mxu0 0
    %1359 = vmatpush1.bf16.msra.mxu0 0
    %1360 = vmatprep.subr.bf16.mxu0 0
    %1361 = vmatpush1.bf16.msra.mxu0 0
    %1362 = vmatprep.subr.bf16.mxu0 0
    %1363 = vmatpush1.bf16.msra.mxu0 0
    %1364 = vmatprep.subr.bf16.mxu0 0
    %1365 = vmatpush1.bf16.msra.mxu0 0
    %1366 = vmatprep.subr.bf16.mxu0 0
    %1367 = vmatpush1.bf16.msra.mxu0 0
    %1368 = vmatprep.subr.bf16.mxu0 0
    %1369 = vmatpush1.bf16.msra.mxu0 0
    %1370 = vmatprep.subr.bf16.mxu0 0
    %1371 = vmatpush1.bf16.msra.mxu0 0
    %1372 = vmatprep.mubr.bf16.mxu0 0
    %1373 = vmatmul.mubr.bf16.gmra.mrb[0].mxu0 %v1338
    %v1374 = vpop.f32.mrb[0].mxu0
    %v1375 = vadd.f32 0.0, %v1374
    %v1376 = vpop.f32.mrb[0].mxu0
    %v1377 = vpop.f32.mrb[0].mxu0
    %v1378 = vpop.f32.mrb[0].mxu0
    %1379 = vdwg.mxu0
    %v1381 = vrot.slane %v1375, 7
    %v1383 = vadd.f32 %v143, %v1381
    %v1384 = vrot.slane %v149, 7
    %v1386 = vadd.f32 %v1383, %v1384
    %v1387 = vxor.u32 %v1386, 2147483648
    %v1388 = vmul.f32 %v1387, 1.442695
    %v1389 = vpow.pop %v1388
    %v1390 = vadd.f32 %v1389, 1.0
    %v1391 = vrcp.pop %v1390
    %v1392 = vmul.f32 1.0, %v1391
    %1394 = vrot.lane.b32.xlu0 %v1386, 32
    %v1395 = vpop.permute.xlu0 %1394
    %v1397 = vmul.f32 %v1392, %v1395
    %1399 = vrot.lane.b32.xlu0 %v1397, 64
    %v1400 = vpop.permute.xlu0 %1399
    %v1402 = vadd.f32 %v1386, %v1400
    %v1403 = vtanh.pop %v1402
    %v1404 = vsub.f32 1.0, %v1392
    %1406 = vrot.lane.b32.xlu0 %v1403, 96
    %v1407 = vpop.permute.xlu0 %1406
    %v1409 = vmul.f32 %v1404, %v1407
    %v1411 = vrot.slane %v1331, 1
    %v1413 = vmul.f32 %v1392, %v1411
    %v1414 = vadd.f32 %v1409, %v1413
    %v1415 = vpack.c.bf16 %v1414, %v1414
    %v1417 = vshrl.u32 %v1415, 16
    %1419 = vrot.lane.b32.xlu0 %v1417, 96
    %v1420 = vpop.permute.xlu0 %1419
    %v1422 = vsel %vm48, %v1420, 0
    %1424 = vmatprep.subr.bf16.mxu0 0
    %1425 = vmatpush1.bf16.msra.mxu0 %v834
    %1426 = vmatprep.subr.bf16.mxu0 0
    %1427 = vmatpush1.bf16.msra.mxu0 %v835
    %1428 = vmatprep.subr.bf16.mxu0 0
    %1429 = vmatpush1.bf16.msra.mxu0 0
    %1430 = vmatprep.subr.bf16.mxu0 0
    %1431 = vmatpush1.bf16.msra.mxu0 0
    %1432 = vmatprep.subr.bf16.mxu0 0
    %1433 = vmatpush1.bf16.msra.mxu0 0
    %1434 = vmatprep.subr.bf16.mxu0 0
    %1435 = vmatpush1.bf16.msra.mxu0 0
    %1436 = vmatprep.subr.bf16.mxu0 0
    %1437 = vmatpush1.bf16.msra.mxu0 0
    %1438 = vmatprep.subr.bf16.mxu0 0
    %1439 = vmatpush1.bf16.msra.mxu0 0
    %1440 = vmatprep.subr.bf16.mxu0 0
    %1441 = vmatpush1.bf16.msra.mxu0 0
    %1442 = vmatprep.subr.bf16.mxu0 0
    %1443 = vmatpush1.bf16.msra.mxu0 0
    %1444 = vmatprep.subr.bf16.mxu0 0
    %1445 = vmatpush1.bf16.msra.mxu0 0
    %1446 = vmatprep.subr.bf16.mxu0 0
    %1447 = vmatpush1.bf16.msra.mxu0 0
    %1448 = vmatprep.subr.bf16.mxu0 0
    %1449 = vmatpush1.bf16.msra.mxu0 0
    %1450 = vmatprep.subr.bf16.mxu0 0
    %1451 = vmatpush1.bf16.msra.mxu0 0
    %1452 = vmatprep.subr.bf16.mxu0 0
    %1453 = vmatpush1.bf16.msra.mxu0 0
    %1454 = vmatprep.subr.bf16.mxu0 0
    %1455 = vmatpush1.bf16.msra.mxu0 0
    %1456 = vmatprep.mubr.bf16.mxu0 0
    %1457 = vmatmul.mubr.bf16.gmra.mrb[0].mxu0 %v1422
    %v1458 = vpop.f32.mrb[0].mxu0
    %v1459 = vadd.f32 0.0, %v1458
    %v1460 = vpop.f32.mrb[0].mxu0
    %v1461 = vpop.f32.mrb[0].mxu0
    %v1462 = vpop.f32.mrb[0].mxu0
    %1463 = vdwg.mxu0
    %v1464 = vadd.f32 %v143, %v1459
    %v1465 = vadd.f32 %v1464, %v149
    %v1466 = vxor.u32 %v1465, 2147483648
    %v1467 = vmul.f32 %v1466, 1.442695
    %v1468 = vpow.pop %v1467
    %v1469 = vadd.f32 %v1468, 1.0
    %v1470 = vrcp.pop %v1469
    %v1471 = vmul.f32 1.0, %v1470
    %1473 = vrot.lane.b32.xlu0 %v1465, 32
    %v1474 = vpop.permute.xlu0 %1473
    %v1476 = vmul.f32 %v1471, %v1474
    %1478 = vrot.lane.b32.xlu0 %v1476, 64
    %v1479 = vpop.permute.xlu0 %1478
    %v1481 = vadd.f32 %v1465, %v1479
    %v1482 = vtanh.pop %v1481
    %v1483 = vsub.f32 1.0, %v1471
    %1485 = vrot.lane.b32.xlu0 %v1482, 96
    %v1486 = vpop.permute.xlu0 %1485
    %v1488 = vmul.f32 %v1483, %v1486
    %v1490 = vrot.slane %v1414, 1
    %v1492 = vmul.f32 %v1471, %v1490
    %v1493 = vadd.f32 %v1488, %v1492
    %vm1494 = vcmask 1040384
    %v1495 = vsel %vm1494, %v235, %v318
    %vm1496 = vcmask 1041408
    %v1497 = vsel %vm1496, %v1495, %v402
    %vm1498 = vcmask 1042432
    %v1499 = vsel %vm1498, %v1497, %v485
    %vm1500 = vcmask 1043456
    %v1501 = vsel %vm1500, %v1499, %v570
    %vm1502 = vcmask 1044480
    %v1503 = vsel %vm1502, %v1501, %v653
    %vm1504 = vcmask 1045504
    %v1505 = vsel %vm1504, %v1503, %v738
    %vm1506 = vcmask 1046528
    %v1507 = vsel %vm1506, %v1505, %v821
    %v1508 = vsel %vm1494, %v1493, %v1414
    %v1509 = vsel %vm1496, %v1508, %v1331
    %v1510 = vsel %vm1498, %v1509, %v1246
    %v1511 = vsel %vm1500, %v1510, %v1163
    %v1512 = vsel %vm1502, %v1511, %v1078
    %v1513 = vsel %vm1504, %v1512, %v995
    %v1514 = vsel %vm1506, %v1513, %v910
    %v1515 = vadd.f32 %v1507, %v1514
    %v1516 = vpack.c.bf16 %v1515, %v1515
    %1518 = vrot.lane.b32.xlu0 %v1515, 96
    %v1519 = vpop.permute.xlu0 %1518
    %1521 = vxpose.xlu0.b32.start [1/16] %v1519, 128
    %1522 = vxpose.xlu0.b32.cont [2/16] 0.0, 128
    %1523 = vxpose.xlu0.b32.cont [3/16] 0.0, 128
    %1524 = vxpose.xlu0.b32.cont [4/16] 0.0, 128
    %1525 = vxpose.xlu0.b32.cont [5/16] 0.0, 128
    %1526 = vxpose.xlu0.b32.cont [6/16] 0.0, 128
    %1527 = vxpose.xlu0.b32.cont [7/16] 0.0, 128
    %1528 = vxpose.xlu0.b32.cont [8/16] 0.0, 128
    %1529 = vxpose.xlu0.b32.cont [9/16] 0.0, 128
    %1530 = vxpose.xlu0.b32.cont [10/16] 0.0, 128
    %1531 = vxpose.xlu0.b32.cont [11/16] 0.0, 128
    %1532 = vxpose.xlu0.b32.cont [12/16] 0.0, 128
    %1533 = vxpose.xlu0.b32.cont [13/16] 0.0, 128
    %1534 = vxpose.xlu0.b32.cont [14/16] 0.0, 128
    %1535 = vxpose.xlu0.b32.cont [15/16] 0.0, 128
    %1536 = vxpose.xlu0.b32.end [16/16] 0.0, 128
    %v1537 = vpop.trf.xlu0
    %v1538 = vpop.trf.xlu0
    %v1539 = vpop.trf.xlu0
    %v1540 = vpop.trf.xlu0
    %v1541 = vpop.trf.xlu0
    %v1542 = vpop.trf.xlu0
    %v1543 = vpop.trf.xlu0
    %v1544 = vpop.trf.xlu0
    %v1545 = vpop.trf.xlu0
    %v1546 = vpop.trf.xlu0
    %v1547 = vpop.trf.xlu0
    %v1548 = vpop.trf.xlu0
    %v1549 = vpop.trf.xlu0
    %v1550 = vpop.trf.xlu0
    %v1551 = vpop.trf.xlu0
    %v1552 = vpop.trf.xlu0
    %v1553 = vpack.c.bf16 %v1538, %v1537
    %v1554 = vpack.c.bf16 %v1540, %v1539
    %v1555 = vld [vmem:[%s2 + $0x2] sm:$0x1]
    %v1556 = vld [vmem:[%s2 + $0x3] sm:$0x1]
    %v1557 = vld [vmem:[%s2 + $0x4] sm:$0x1]
    %v1558 = vlaneseq
    %v1559 = vand.u32 %v1558, 127
    %vm1560 = vcmp.eq.s32.totalorder %v1559, 1
    %v1561 = vsel %vm1560, 1, 0
    %v1562 = vcvt.s32.f32 %v1561
    %v1563 = vpack.c.bf16 %v1562, %v1562
    %v1564 = vld [vmem:[#allocation2 + $0x50] sm:$0xf]
    %v1565 = vld [vmem:[#allocation2 + $0x54] sm:$0xf]
    %v1566 = vld [vmem:[#allocation2 + $0x58] sm:$0xf]
    %v1567 = vld [vmem:[#allocation2 + $0x5c] sm:$0xf]
    %v1568 = vld [vmem:[#allocation2 + $0x60] sm:$0xf]
    %v1569 = vld [vmem:[#allocation2 + $0x64] sm:$0xf]
    %v1570 = vld [vmem:[#allocation2 + $0x68] sm:$0xf]
    %v1571 = vld [vmem:[#allocation2 + $0x6c] sm:$0xf]
    %v1572 = vpack.c.bf16 %v821, %v821
    %v1573 = vld [vmem:[#allocation2 + $0x40] sm:$0xf]
    %v1574 = vld [vmem:[#allocation2 + $0x44] sm:$0xf]
    %v1575 = vld [vmem:[#allocation2 + $0x48] sm:$0xf]
    %v1576 = vld [vmem:[#allocation2 + $0x4c] sm:$0xf]
    %v1578 = vshrl.u32 %v1572, 16
    %v1580 = vrot.slane %v1578, 3
    %1581 = vrot.lane.b32.xlu0 %v1580, 96
    %v1582 = vpop.permute.xlu0 %1581
    %v1587 = vunpack.c.l.b16 %v1573
    %v1588 = vunpack.c.l.b16 %v1574
    %v1589 = vunpack.c.l.b16 %v1575
    %v1590 = vunpack.c.l.b16 %v1576
    %v1591 = vpack.c.b16 %v1588, %v1587
    %v1592 = vpack.c.b16 %v1590, %v1589
    %v1596 = vsel %vm48, %v1582, 0
    %1598 = vmatprep.subr.bf16.mxu0 0
    %1599 = vmatpush1.bf16.msra.mxu0 %v1591
    %1600 = vmatprep.subr.bf16.mxu0 0
    %1601 = vmatpush1.bf16.msra.mxu0 %v1592
    %1602 = vmatprep.subr.bf16.mxu0 0
    %1603 = vmatpush1.bf16.msra.mxu0 0
    %1604 = vmatprep.subr.bf16.mxu0 0
    %1605 = vmatpush1.bf16.msra.mxu0 0
    %1606 = vmatprep.subr.bf16.mxu0 0
    %1607 = vmatpush1.bf16.msra.mxu0 0
    %1608 = vmatprep.subr.bf16.mxu0 0
    %1609 = vmatpush1.bf16.msra.mxu0 0
    %1610 = vmatprep.subr.bf16.mxu0 0
    %1611 = vmatpush1.bf16.msra.mxu0 0
    %1612 = vmatprep.subr.bf16.mxu0 0
    %1613 = vmatpush1.bf16.msra.mxu0 0
    %1614 = vmatprep.subr.bf16.mxu0 0
    %1615 = vmatpush1.bf16.msra.mxu0 0
    %1616 = vmatprep.subr.bf16.mxu0 0
    %1617 = vmatpush1.bf16.msra.mxu0 0
    %1618 = vmatprep.subr.bf16.mxu0 0
    %1619 = vmatpush1.bf16.msra.mxu0 0
    %1620 = vmatprep.subr.bf16.mxu0 0
    %1621 = vmatpush1.bf16.msra.mxu0 0
    %1622 = vmatprep.subr.bf16.mxu0 0
    %1623 = vmatpush1.bf16.msra.mxu0 0
    %1624 = vmatprep.subr.bf16.mxu0 0
    %1625 = vmatpush1.bf16.msra.mxu0 0
    %1626 = vmatprep.subr.bf16.mxu0 0
    %1627 = vmatpush1.bf16.msra.mxu0 0
    %1628 = vmatprep.subr.bf16.mxu0 0
    %1629 = vmatpush1.bf16.msra.mxu0 0
    %1630 = vmatprep.mubr.bf16.mxu0 0
    %1631 = vmatmul.mubr.bf16.gmra.mrb[0].mxu0 %v1596
    %v1632 = vpop.f32.mrb[0].mxu0
    %v1633 = vadd.f32 0.0, %v1632
    %v1634 = vpop.f32.mrb[0].mxu0
    %v1635 = vpop.f32.mrb[0].mxu0
    %v1636 = vpop.f32.mrb[0].mxu0
    %1637 = vdwg.mxu0
    %v1646 = vunpack.c.l.b16 %v1564
    %v1647 = vunpack.c.l.b16 %v1565
    %v1648 = vunpack.c.l.b16 %v1566
    %v1649 = vunpack.c.l.b16 %v1567
    %v1650 = vunpack.c.l.b16 %v1568
    %v1651 = vunpack.c.l.b16 %v1569
    %v1652 = vunpack.c.l.b16 %v1570
    %v1653 = vunpack.c.l.b16 %v1571
    %v1654 = vpack.c.b16 %v1647, %v1646
    %v1655 = vpack.c.b16 %v1649, %v1648
    %v1656 = vpack.c.b16 %v1651, %v1650
    %v1657 = vpack.c.b16 %v1653, %v1652
    %vm1662 = vcmask 523264
    %v1664 = vsel %vm1662, %v1563, 0
    %1666 = vmatprep.subr.bf16.mxu0 0
    %1667 = vmatpush1.bf16.msra.mxu0 %v1654
    %1668 = vmatprep.subr.bf16.mxu0 0
    %1669 = vmatpush1.bf16.msra.mxu0 %v1655
    %1670 = vmatprep.subr.bf16.mxu0 0
    %1671 = vmatpush1.bf16.msra.mxu0 %v1656
    %1672 = vmatprep.subr.bf16.mxu0 0
    %1673 = vmatpush1.bf16.msra.mxu0 %v1657
    %1674 = vmatprep.subr.bf16.mxu0 0
    %1675 = vmatpush1.bf16.msra.mxu0 0
    %1676 = vmatprep.subr.bf16.mxu0 0
    %1677 = vmatpush1.bf16.msra.mxu0 0
    %1678 = vmatprep.subr.bf16.mxu0 0
    %1679 = vmatpush1.bf16.msra.mxu0 0
    %1680 = vmatprep.subr.bf16.mxu0 0
    %1681 = vmatpush1.bf16.msra.mxu0 0
    %1682 = vmatprep.subr.bf16.mxu0 0
    %1683 = vmatpush1.bf16.msra.mxu0 0
    %1684 = vmatprep.subr.bf16.mxu0 0
    %1685 = vmatpush1.bf16.msra.mxu0 0
    %1686 = vmatprep.subr.bf16.mxu0 0
    %1687 = vmatpush1.bf16.msra.mxu0 0
    %1688 = vmatprep.subr.bf16.mxu0 0
    %1689 = vmatpush1.bf16.msra.mxu0 0
    %1690 = vmatprep.subr.bf16.mxu0 0
    %1691 = vmatpush1.bf16.msra.mxu0 0
    %1692 = vmatprep.subr.bf16.mxu0 0
    %1693 = vmatpush1.bf16.msra.mxu0 0
    %1694 = vmatprep.subr.bf16.mxu0 0
    %1695 = vmatpush1.bf16.msra.mxu0 0
    %1696 = vmatprep.subr.bf16.mxu0 0
    %1697 = vmatpush1.bf16.msra.mxu0 0
    %1698 = vmatprep.mubr.bf16.mxu0 0
    %1699 = vmatmul.mubr.bf16.gmra.mrb[0].mxu0 %v1664
    %v1700 = vpop.f32.mrb[0].mxu0
    %v1701 = vadd.f32 %v1633, %v1700
    %v1702 = vpop.f32.mrb[0].mxu0
    %v1703 = vpop.f32.mrb[0].mxu0
    %v1704 = vpop.f32.mrb[0].mxu0
    %1705 = vdwg.mxu0
    %v1706 = vadd.f32 %v1701, %v1555
    %v1707 = vxor.u32 %v1706, 2147483648
    %v1708 = vmul.f32 %v1707, 1.442695
    %v1709 = vpow.pop %v1708
    %v1710 = vadd.f32 %v1709, 1.0
    %v1711 = vrcp.pop %v1710
    %v1712 = vmul.f32 1.0, %v1711
    %1714 = vrot.lane.b32.xlu0 %v1706, 32
    %v1715 = vpop.permute.xlu0 %1714
    %v1717 = vmul.f32 %v1712, %v1715
    %1719 = vrot.lane.b32.xlu0 %v1717, 64
    %v1720 = vpop.permute.xlu0 %1719
    %v1722 = vadd.f32 %v1706, %v1720
    %v1723 = vtanh.pop %v1722
    %v1724 = vsub.f32 1.0, %v1712
    %1726 = vrot.lane.b32.xlu0 %v1723, 96
    %v1727 = vpop.permute.xlu0 %1726
    %v1729 = vmul.f32 %v1724, %v1727
    %v1731 = vrot.slane %v821, 7
    %v1733 = vmul.f32 %v1712, %v1731
    %v1734 = vadd.f32 %v1729, %v1733
    %v1735 = vpack.c.bf16 %v1734, %v1734
    %1737 = vrot.lane.b32.xlu0 %v1735, 96
    %v1738 = vpop.permute.xlu0 %1737
    %v1740 = vsel %vm48, %v1738, 0
    %1742 = vmatprep.subr.bf16.mxu0 0
    %1743 = vmatpush1.bf16.msra.mxu0 %v1553
    %1744 = vmatprep.subr.bf16.mxu0 0
    %1745 = vmatpush1.bf16.msra.mxu0 %v1554
    %1746 = vmatprep.subr.bf16.mxu0 0
    %1747 = vmatpush1.bf16.msra.mxu0 0
    %1748 = vmatprep.subr.bf16.mxu0 0
    %1749 = vmatpush1.bf16.msra.mxu0 0
    %1750 = vmatprep.subr.bf16.mxu0 0
    %1751 = vmatpush1.bf16.msra.mxu0 0
    %1752 = vmatprep.subr.bf16.mxu0 0
    %1753 = vmatpush1.bf16.msra.mxu0 0
    %1754 = vmatprep.subr.bf16.mxu0 0
    %1755 = vmatpush1.bf16.msra.mxu0 0
    %1756 = vmatprep.subr.bf16.mxu0 0
    %1757 = vmatpush1.bf16.msra.mxu0 0
    %1758 = vmatprep.subr.bf16.mxu0 0
    %1759 = vmatpush1.bf16.msra.mxu0 0
    %1760 = vmatprep.subr.bf16.mxu0 0
    %1761 = vmatpush1.bf16.msra.mxu0 0
    %1762 = vmatprep.subr.bf16.mxu0 0
    %1763 = vmatpush1.bf16.msra.mxu0 0
    %1764 = vmatprep.subr.bf16.mxu0 0
    %1765 = vmatpush1.bf16.msra.mxu0 0
    %1766 = vmatprep.subr.bf16.mxu0 0
    %1767 = vmatpush1.bf16.msra.mxu0 0
    %1768 = vmatprep.subr.bf16.mxu0 0
    %1769 = vmatpush1.bf16.msra.mxu0 0
    %1770 = vmatprep.subr.bf16.mxu0 0
    %1771 = vmatpush1.bf16.msra.mxu0 0
    %1772 = vmatprep.subr.bf16.mxu0 0
    %1773 = vmatpush1.bf16.msra.mxu0 0
    %1774 = vmatprep.mubr.bf16.mxu0 0
    %1775 = vmatmul.mubr.bf16.gmra.mrb[0].mxu0 %v1740
    %v1776 = vpop.f32.mrb[0].mxu0
    %v1777 = vadd.f32 0.0, %v1776
    %v1778 = vpop.f32.mrb[0].mxu0
    %v1779 = vpop.f32.mrb[0].mxu0
    %v1780 = vpop.f32.mrb[0].mxu0
    %1781 = vdwg.mxu0
    %vm1782 = vcmask 57344
    %v1783 = vsel %vm1782, %v1777, -inf
    %1784 = vmax.xlane.f32.xlu0 %v1783
    %v1785 = vpop.xlane.xlu0 %1784
    %v1786 = vsub.f32 %v1777, %v1785
    %v1787 = vmul.f32 %v1786, 1.442695
    %v1788 = vpow.pop %v1787
    %v1789 = vsel %vm1782, %v1788, 0.0
    %1790 = vadd.xlane.f32.xlu0 %v1789
    %v1791 = vpop.xlane.xlu0 %1790
    %v1792 = vrcp.pop %v1791
    %v1793 = vmul.f32 %v1788, %v1792
    %v1794 = vpack.c.bf16 %v1793, %v1793
    %1796 = vrot.lane.b32.xlu0 %v1516, 96
    %v1797 = vpop.permute.xlu0 %1796
    %vm1798 = vcmask 64512
    %v1800 = vsel %vm1798, %v1794, 0
    %v1803 = vsel %vm1500, %v1797, 0
    %1805 = vmatprep.subr.bf16.mxu0 0
    %1806 = vmatpush1.bf16.msra.mxu0 %v1803
    %1807 = vmatprep.subr.bf16.mxu0 0
    %1808 = vmatpush1.bf16.msra.mxu0 0
    %1809 = vmatprep.subr.bf16.mxu0 0
    %1810 = vmatpush1.bf16.msra.mxu0 0
    %1811 = vmatprep.subr.bf16.mxu0 0
    %1812 = vmatpush1.bf16.msra.mxu0 0
    %1813 = vmatprep.subr.bf16.mxu0 0
    %1814 = vmatpush1.bf16.msra.mxu0 0
    %1815 = vmatprep.subr.bf16.mxu0 0
    %1816 = vmatpush1.bf16.msra.mxu0 0
    %1817 = vmatprep.subr.bf16.mxu0 0
    %1818 = vmatpush1.bf16.msra.mxu0 0
    %1819 = vmatprep.subr.bf16.mxu0 0
    %1820 = vmatpush1.bf16.msra.mxu0 0
    %1821 = vmatprep.subr.bf16.mxu0 0
    %1822 = vmatpush1.bf16.msra.mxu0 0
    %1823 = vmatprep.subr.bf16.mxu0 0
    %1824 = vmatpush1.bf16.msra.mxu0 0
    %1825 = vmatprep.subr.bf16.mxu0 0
    %1826 = vmatpush1.bf16.msra.mxu0 0
    %1827 = vmatprep.subr.bf16.mxu0 0
    %1828 = vmatpush1.bf16.msra.mxu0 0
    %1829 = vmatprep.subr.bf16.mxu0 0
    %1830 = vmatpush1.bf16.msra.mxu0 0
    %1831 = vmatprep.subr.bf16.mxu0 0
    %1832 = vmatpush1.bf16.msra.mxu0 0
    %1833 = vmatprep.subr.bf16.mxu0 0
    %1834 = vmatpush1.bf16.msra.mxu0 0
    %1835 = vmatprep.subr.bf16.mxu0 0
    %1836 = vmatpush1.bf16.msra.mxu0 0
    %1837 = vmatprep.mubr.bf16.mxu0 0
    %1838 = vmatmul.mubr.bf16.gmra.mrb[0].mxu0 %v1800
    %v1839 = vpop.f32.mrb[0].mxu0
    %v1840 = vadd.f32 0.0, %v1839
    %v1841 = vpop.f32.mrb[0].mxu0
    %v1842 = vpop.f32.mrb[0].mxu0
    %v1843 = vpop.f32.mrb[0].mxu0
    %1844 = vdwg.mxu0
    %v1845 = vld [vmem:[#allocation2 + $0x70] sm:$0xf]
    %v1846 = vld [vmem:[#allocation2 + $0x74] sm:$0xf]
    %v1847 = vld [vmem:[#allocation2 + $0x78] sm:$0xf]
    %v1848 = vld [vmem:[#allocation2 + $0x7c] sm:$0xf]
    %v1849 = vpack.c.bf16 %v1840, %v1840
    %v1850 = vld [vmem:[#allocation2 + $0x80] sm:$0xf]
    %v1851 = vld [vmem:[#allocation2 + $0x84] sm:$0xf]
    %v1852 = vld [vmem:[#allocation2 + $0x88] sm:$0xf]
    %v1853 = vld [vmem:[#allocation2 + $0x8c] sm:$0xf]
    %v1858 = vunpack.c.l.b16 %v1850
    %v1859 = vunpack.c.l.b16 %v1851
    %v1860 = vunpack.c.l.b16 %v1852
    %v1861 = vunpack.c.l.b16 %v1853
    %v1862 = vpack.c.b16 %v1859, %v1858
    %v1863 = vpack.c.b16 %v1861, %v1860
    %v1867 = vsel %vm48, %v1849, 0
    %1869 = vmatprep.subr.bf16.mxu0 0
    %1870 = vmatpush1.bf16.msra.mxu0 %v1862
    %1871 = vmatprep.subr.bf16.mxu0 0
    %1872 = vmatpush1.bf16.msra.mxu0 %v1863
    %1873 = vmatprep.subr.bf16.mxu0 0
    %1874 = vmatpush1.bf16.msra.mxu0 0
    %1875 = vmatprep.subr.bf16.mxu0 0
    %1876 = vmatpush1.bf16.msra.mxu0 0
    %1877 = vmatprep.subr.bf16.mxu0 0
    %1878 = vmatpush1.bf16.msra.mxu0 0
    %1879 = vmatprep.subr.bf16.mxu0 0
    %1880 = vmatpush1.bf16.msra.mxu0 0
    %1881 = vmatprep.subr.bf16.mxu0 0
    %1882 = vmatpush1.bf16.msra.mxu0 0
    %1883 = vmatprep.subr.bf16.mxu0 0
    %1884 = vmatpush1.bf16.msra.mxu0 0
    %1885 = vmatprep.subr.bf16.mxu0 0
    %1886 = vmatpush1.bf16.msra.mxu0 0
    %1887 = vmatprep.subr.bf16.mxu0 0
    %1888 = vmatpush1.bf16.msra.mxu0 0
    %1889 = vmatprep.subr.bf16.mxu0 0
    %1890 = vmatpush1.bf16.msra.mxu0 0
    %1891 = vmatprep.subr.bf16.mxu0 0
    %1892 = vmatpush1.bf16.msra.mxu0 0
    %1893 = vmatprep.subr.bf16.mxu0 0
    %1894 = vmatpush1.bf16.msra.mxu0 0
    %1895 = vmatprep.subr.bf16.mxu0 0
    %1896 = vmatpush1.bf16.msra.mxu0 0
    %1897 = vmatprep.subr.bf16.mxu0 0
    %1898 = vmatpush1.bf16.msra.mxu0 0
    %1899 = vmatprep.subr.bf16.mxu0 0
    %1900 = vmatpush1.bf16.msra.mxu0 0
    %1901 = vmatprep.mubr.bf16.mxu0 0
    %1902 = vmatmul.mubr.bf16.gmra.mrb[0].mxu0 %v1867
    %v1903 = vpop.f32.mrb[0].mxu0
    %v1904 = vadd.f32 0.0, %v1903
    %v1905 = vpop.f32.mrb[0].mxu0
    %v1906 = vpop.f32.mrb[0].mxu0
    %v1907 = vpop.f32.mrb[0].mxu0
    %1908 = vdwg.mxu0
    %v1913 = vunpack.c.l.b16 %v1845
    %v1914 = vunpack.c.l.b16 %v1846
    %v1915 = vunpack.c.l.b16 %v1847
    %v1916 = vunpack.c.l.b16 %v1848
    %v1917 = vpack.c.b16 %v1914, %v1913
    %v1918 = vpack.c.b16 %v1916, %v1915
    %1921 = vmatprep.subr.bf16.mxu0 0
    %1922 = vmatpush1.bf16.msra.mxu0 %v1917
    %1923 = vmatprep.subr.bf16.mxu0 0
    %1924 = vmatpush1.bf16.msra.mxu0 %v1918
    %1925 = vmatprep.subr.bf16.mxu0 0
    %1926 = vmatpush1.bf16.msra.mxu0 0
    %1927 = vmatprep.subr.bf16.mxu0 0
    %1928 = vmatpush1.bf16.msra.mxu0 0
    %1929 = vmatprep.subr.bf16.mxu0 0
    %1930 = vmatpush1.bf16.msra.mxu0 0
    %1931 = vmatprep.subr.bf16.mxu0 0
    %1932 = vmatpush1.bf16.msra.mxu0 0
    %1933 = vmatprep.subr.bf16.mxu0 0
    %1934 = vmatpush1.bf16.msra.mxu0 0
    %1935 = vmatprep.subr.bf16.mxu0 0
    %1936 = vmatpush1.bf16.msra.mxu0 0
    %1937 = vmatprep.subr.bf16.mxu0 0
    %1938 = vmatpush1.bf16.msra.mxu0 0
    %1939 = vmatprep.subr.bf16.mxu0 0
    %1940 = vmatpush1.bf16.msra.mxu0 0
    %1941 = vmatprep.subr.bf16.mxu0 0
    %1942 = vmatpush1.bf16.msra.mxu0 0
    %1943 = vmatprep.subr.bf16.mxu0 0
    %1944 = vmatpush1.bf16.msra.mxu0 0
    %1945 = vmatprep.subr.bf16.mxu0 0
    %1946 = vmatpush1.bf16.msra.mxu0 0
    %1947 = vmatprep.subr.bf16.mxu0 0
    %1948 = vmatpush1.bf16.msra.mxu0 0
    %1949 = vmatprep.subr.bf16.mxu0 0
    %1950 = vmatpush1.bf16.msra.mxu0 0
    %1951 = vmatprep.subr.bf16.mxu0 0
    %1952 = vmatpush1.bf16.msra.mxu0 0
    %1953 = vmatprep.mubr.bf16.mxu0 0
    %1954 = vmatmul.mubr.bf16.gmra.mrb[0].mxu0 %v1740
    %v1955 = vpop.f32.mrb[0].mxu0
    %v1956 = vadd.f32 %v1904, %v1955
    %v1957 = vpop.f32.mrb[0].mxu0
    %v1958 = vpop.f32.mrb[0].mxu0
    %v1959 = vpop.f32.mrb[0].mxu0
    %1960 = vdwg.mxu0
    %v1961 = vadd.f32 %v1956, %v1556
    %v1962 = vtanh.pop %v1961
    %v1963 = vpack.c.bf16 %v1962, %v1962
    %v1964 = vld [vmem:[#allocation2 + $0x90] sm:$0xf]
    %v1965 = vld [vmem:[#allocation2 + $0x94] sm:$0xf]
    %v1966 = vld [vmem:[#allocation2 + $0x98] sm:$0xf]
    %v1967 = vld [vmem:[#allocation2 + $0x9c] sm:$0xf]
    %v1968 = vld [vmem:[#allocation2 + $0xa0] sm:$0xf]
    %v1969 = vld [vmem:[#allocation2 + $0xa4] sm:$0xf]
    %v1970 = vld [vmem:[#allocation2 + $0xa8] sm:$0xf]
    %v1971 = vld [vmem:[#allocation2 + $0xac] sm:$0xf]
    %v1972 = vld [vmem:[#allocation2 + $0xb0] sm:$0xf]
    %v1973 = vld [vmem:[#allocation2 + $0xb4] sm:$0xf]
    %v1974 = vld [vmem:[#allocation2 + $0xb8] sm:$0xf]
    %v1975 = vld [vmem:[#allocation2 + $0xbc] sm:$0xf]
    %v1976 = vld [vmem:[#allocation2 + $0xc0] sm:$0xf]
    %v1977 = vld [vmem:[#allocation2 + $0xc4] sm:$0xf]
    %v1978 = vld [vmem:[#allocation2 + $0xc8] sm:$0xf]
    %v1979 = vld [vmem:[#allocation2 + $0xcc] sm:$0xf]
    %v1996 = vunpack.c.l.b16 %v1964
    %v1997 = vunpack.c.l.b16 %v1965
    %v1998 = vunpack.c.l.b16 %v1966
    %v1999 = vunpack.c.l.b16 %v1967
    %v2000 = vunpack.c.l.b16 %v1968
    %v2001 = vunpack.c.l.b16 %v1969
    %v2002 = vunpack.c.l.b16 %v1970
    %v2003 = vunpack.c.l.b16 %v1971
    %v2004 = vunpack.c.l.b16 %v1972
    %v2005 = vunpack.c.l.b16 %v1973
    %v2006 = vunpack.c.l.b16 %v1974
    %v2007 = vunpack.c.l.b16 %v1975
    %v2008 = vunpack.c.l.b16 %v1976
    %v2009 = vunpack.c.l.b16 %v1977
    %v2010 = vunpack.c.l.b16 %v1978
    %v2011 = vunpack.c.l.b16 %v1979
    %v2012 = vpack.c.b16 %v1997, %v1996
    %v2013 = vpack.c.b16 %v1999, %v1998
    %v2014 = vpack.c.b16 %v2001, %v2000
    %v2015 = vpack.c.b16 %v2003, %v2002
    %v2016 = vpack.c.b16 %v2005, %v2004
    %v2017 = vpack.c.b16 %v2007, %v2006
    %v2018 = vpack.c.b16 %v2009, %v2008
    %v2019 = vpack.c.b16 %v2011, %v2010
    %2028 = vmatprep.subr.bf16.mxu0 0
    %2029 = vmatpush1.bf16.msra.mxu0 %v2012
    %2030 = vmatprep.subr.bf16.mxu0 0
    %2031 = vmatpush1.bf16.msra.mxu0 %v2013
    %2032 = vmatprep.subr.bf16.mxu0 0
    %2033 = vmatpush1.bf16.msra.mxu0 %v2014
    %2034 = vmatprep.subr.bf16.mxu0 0
    %2035 = vmatpush1.bf16.msra.mxu0 %v2015
    %2036 = vmatprep.subr.bf16.mxu0 0
    %2037 = vmatpush1.bf16.msra.mxu0 %v2016
    %2038 = vmatprep.subr.bf16.mxu0 0
    %2039 = vmatpush1.bf16.msra.mxu0 %v2017
    %2040 = vmatprep.subr.bf16.mxu0 0
    %2041 = vmatpush1.bf16.msra.mxu0 %v2018
    %2042 = vmatprep.subr.bf16.mxu0 0
    %2043 = vmatpush1.bf16.msra.mxu0 %v2019
    %2044 = vmatprep.subr.bf16.mxu0 0
    %2045 = vmatpush1.bf16.msra.mxu0 0
    %2046 = vmatprep.subr.bf16.mxu0 0
    %2047 = vmatpush1.bf16.msra.mxu0 0
    %2048 = vmatprep.subr.bf16.mxu0 0
    %2049 = vmatpush1.bf16.msra.mxu0 0
    %2050 = vmatprep.subr.bf16.mxu0 0
    %2051 = vmatpush1.bf16.msra.mxu0 0
    %2052 = vmatprep.subr.bf16.mxu0 0
    %2053 = vmatpush1.bf16.msra.mxu0 0
    %2054 = vmatprep.subr.bf16.mxu0 0
    %2055 = vmatpush1.bf16.msra.mxu0 0
    %2056 = vmatprep.subr.bf16.mxu0 0
    %2057 = vmatpush1.bf16.msra.mxu0 0
    %2058 = vmatprep.subr.bf16.mxu0 0
    %2059 = vmatpush1.bf16.msra.mxu0 0
    %2060 = vmatprep.mubr.bf16.mxu0 0
    %2061 = vmatmul.mubr.bf16.gmra.mrb[0].mxu0 %v1963
    %v2062 = vpop.f32.mrb[0].mxu0
    %v2063 = vadd.f32 %v1557, %v2062
    %v2064 = vpop.f32.mrb[0].mxu0
    %v2065 = vpop.f32.mrb[0].mxu0
    %v2066 = vpop.f32.mrb[0].mxu0
    %2067 = vdwg.mxu0
    %v2068 = vsel %vm1494, %v2063, -inf
    %2069 = vmax.xlane.f32.xlu0 %v2068
    %v2070 = vpop.xlane.xlu0 %2069
    %v2071 = vsub.f32 %v2063, %v2070
    %v2072 = vmul.f32 %v2071, 1.442695
    %v2073 = vpow.pop %v2072
    %v2074 = vsel %vm1494, %v2073, 0.0
    %2075 = vadd.xlane.f32.xlu0 %v2074
    %v2076 = vpop.xlane.xlu0 %2075
    %v2077 = vrcp.pop %v2076
    %vm2078 = vcmp.ge.f32.partialorder %v2063, %v2070
    %v2079 = vsel %vm2078, %v1559, 128
    %v2080 = vsel %vm1494, %v2079, 2147483647
    %v2081 = vand.u32 %v2080, 65535
    %v2082 = vshra.s32 %v2080, 16
    %v2083 = vcvt.s32.f32 %v2081
    %v2084 = vcvt.s32.f32 %v2082
    %2085 = vmin.xlane.f32.xlu0 %v2084
    %v2086 = vpop.xlane.xlu0 %2085
    %vm2087 = vcmp.eq.f32.partialorder %v2084, %v2086
    %v2088 = vsel %vm2087, %v2083, inf
    %2089 = vmin.xlane.f32.xlu0 %v2088
    %v2090 = vpop.xlane.xlu0 %2089
    %v2091 = vcvt.f32.s32 %v2090
    %v2092 = vcvt.f32.s32 %v2086
    %v2093 = vshll.u32 %v2092, 16
    %v2094 = vadd.s32 %v2093, %v2091
    %vm2095 = vcmp.eq.s32.totalorder %v1559, 0
    %v2096 = vsel %vm2095, %v2094, 0
    %v2097 = vsel %vm2095, %v2077, 0.0
    %vm2098 = vcmp.eq.s32.totalorder %v1559, %v2094
    %v2099 = vsel %vm2098, 1, 0
    %v2100 = vcvt.s32.f32 %v2099
    %v2101 = vpack.c.bf16 %v2100, %v2100
    %2102 = vmatprep.subr.bf16.mxu0 0
    %2103 = vmatpush1.bf16.msra.mxu0 %v1591
    %2104 = vmatprep.subr.bf16.mxu0 0
    %2105 = vmatpush1.bf16.msra.mxu0 %v1592
    %2106 = vmatprep.subr.bf16.mxu0 0
    %2107 = vmatpush1.bf16.msra.mxu0 0
    %2108 = vmatprep.subr.bf16.mxu0 0
    %2109 = vmatpush1.bf16.msra.mxu0 0
    %2110 = vmatprep.subr.bf16.mxu0 0
    %2111 = vmatpush1.bf16.msra.mxu0 0
    %2112 = vmatprep.subr.bf16.mxu0 0
    %2113 = vmatpush1.bf16.msra.mxu0 0
    %2114 = vmatprep.subr.bf16.mxu0 0
    %2115 = vmatpush1.bf16.msra.mxu0 0
    %2116 = vmatprep.subr.bf16.mxu0 0
    %2117 = vmatpush1.bf16.msra.mxu0 0
    %2118 = vmatprep.subr.bf16.mxu0 0
    %2119 = vmatpush1.bf16.msra.mxu0 0
    %2120 = vmatprep.subr.bf16.mxu0 0
    %2121 = vmatpush1.bf16.msra.mxu0 0
    %2122 = vmatprep.subr.bf16.mxu0 0
    %2123 = vmatpush1.bf16.msra.mxu0 0
    %2124 = vmatprep.subr.bf16.mxu0 0
    %2125 = vmatpush1.bf16.msra.mxu0 0
    %2126 = vmatprep.subr.bf16.mxu0 0
    %2127 = vmatpush1.bf16.msra.mxu0 0
    %2128 = vmatprep.subr.bf16.mxu0 0
    %2129 = vmatpush1.bf16.msra.mxu0 0
    %2130 = vmatprep.subr.bf16.mxu0 0
    %2131 = vmatpush1.bf16.msra.mxu0 0
    %2132 = vmatprep.subr.bf16.mxu0 0
    %2133 = vmatpush1.bf16.msra.mxu0 0
    %2134 = vmatprep.mubr.bf16.mxu0 0
    %2135 = vmatmul.mubr.bf16.gmra.mrb[0].mxu0 %v1740
    %v2136 = vpop.f32.mrb[0].mxu0
    %v2137 = vadd.f32 0.0, %v2136
    %v2138 = vpop.f32.mrb[0].mxu0
    %v2139 = vpop.f32.mrb[0].mxu0
    %v2140 = vpop.f32.mrb[0].mxu0
    %2141 = vdwg.mxu0
    %v2143 = vsel %vm1662, %v2101, 0
    %2145 = vmatprep.subr.bf16.mxu0 0
    %2146 = vmatpush1.bf16.msra.mxu0 %v1654
    %2147 = vmatprep.subr.bf16.mxu0 0
    %2148 = vmatpush1.bf16.msra.mxu0 %v1655
    %2149 = vmatprep.subr.bf16.mxu0 0
    %2150 = vmatpush1.bf16.msra.mxu0 %v1656
    %2151 = vmatprep.subr.bf16.mxu0 0
    %2152 = vmatpush1.bf16.msra.mxu0 %v1657
    %2153 = vmatprep.subr.bf16.mxu0 0
    %2154 = vmatpush1.bf16.msra.mxu0 0
    %2155 = vmatprep.subr.bf16.mxu0 0
    %2156 = vmatpush1.bf16.msra.mxu0 0
    %2157 = vmatprep.subr.bf16.mxu0 0
    %2158 = vmatpush1.bf16.msra.mxu0 0
    %2159 = vmatprep.subr.bf16.mxu0 0
    %2160 = vmatpush1.bf16.msra.mxu0 0
    %2161 = vmatprep.subr.bf16.mxu0 0
    %2162 = vmatpush1.bf16.msra.mxu0 0
    %2163 = vmatprep.subr.bf16.mxu0 0
    %2164 = vmatpush1.bf16.msra.mxu0 0
    %2165 = vmatprep.subr.bf16.mxu0 0
    %2166 = vmatpush1.bf16.msra.mxu0 0
    %2167 = vmatprep.subr.bf16.mxu0 0
    %2168 = vmatpush1.bf16.msra.mxu0 0
    %2169 = vmatprep.subr.bf16.mxu0 0
    %2170 = vmatpush1.bf16.msra.mxu0 0
    %2171 = vmatprep.subr.bf16.mxu0 0
    %2172 = vmatpush1.bf16.msra.mxu0 0
    %2173 = vmatprep.subr.bf16.mxu0 0
    %2174 = vmatpush1.bf16.msra.mxu0 0
    %2175 = vmatprep.subr.bf16.mxu0 0
    %2176 = vmatpush1.bf16.msra.mxu0 0
    %2177 = vmatprep.mubr.bf16.mxu0 0
    %2178 = vmatmul.mubr.bf16.gmra.mrb[0].mxu0 %v2143
    %v2179 = vpop.f32.mrb[0].mxu0
    %v2180 = vadd.f32 %v2137, %v2179
    %v2181 = vpop.f32.mrb[0].mxu0
    %v2182 = vpop.f32.mrb[0].mxu0
    %v2183 = vpop.f32.mrb[0].mxu0
    %2184 = vdwg.mxu0
    %v2185 = vadd.f32 %v2180, %v1555
    %v2186 = vxor.u32 %v2185, 2147483648
    %v2187 = vmul.f32 %v2186, 1.442695
    %v2188 = vpow.pop %v2187
    %v2189 = vadd.f32 %v2188, 1.0
    %v2190 = vrcp.pop %v2189
    %v2191 = vmul.f32 1.0, %v2190
    %2193 = vrot.lane.b32.xlu0 %v2185, 32
    %v2194 = vpop.permute.xlu0 %2193
    %v2196 = vmul.f32 %v2191, %v2194
    %2198 = vrot.lane.b32.xlu0 %v2196, 64
    %v2199 = vpop.permute.xlu0 %2198
    %v2201 = vadd.f32 %v2185, %v2199
    %v2202 = vtanh.pop %v2201
    %v2203 = vsub.f32 1.0, %v2191
    %2205 = vrot.lane.b32.xlu0 %v2202, 96
    %v2206 = vpop.permute.xlu0 %2205
    %v2208 = vmul.f32 %v2203, %v2206
    %v2209 = vmul.f32 %v2191, %v1734
    %v2210 = vadd.f32 %v2208, %v2209
    %v2211 = vpack.c.bf16 %v2210, %v2210
    %2213 = vrot.lane.b32.xlu0 %v2211, 96
    %v2214 = vpop.permute.xlu0 %2213
    %v2216 = vsel %vm48, %v2214, 0
    %2218 = vmatprep.subr.bf16.mxu0 0
    %2219 = vmatpush1.bf16.msra.mxu0 %v1553
    %2220 = vmatprep.subr.bf16.mxu0 0
    %2221 = vmatpush1.bf16.msra.mxu0 %v1554
    %2222 = vmatprep.subr.bf16.mxu0 0
    %2223 = vmatpush1.bf16.msra.mxu0 0
    %2224 = vmatprep.subr.bf16.mxu0 0
    %2225 = vmatpush1.bf16.msra.mxu0 0
    %2226 = vmatprep.subr.bf16.mxu0 0
    %2227 = vmatpush1.bf16.msra.mxu0 0
    %2228 = vmatprep.subr.bf16.mxu0 0
    %2229 = vmatpush1.bf16.msra.mxu0 0
    %2230 = vmatprep.subr.bf16.mxu0 0
    %2231 = vmatpush1.bf16.msra.mxu0 0
    %2232 = vmatprep.subr.bf16.mxu0 0
    %2233 = vmatpush1.bf16.msra.mxu0 0
    %2234 = vmatprep.subr.bf16.mxu0 0
    %2235 = vmatpush1.bf16.msra.mxu0 0
    %2236 = vmatprep.subr.bf16.mxu0 0
    %2237 = vmatpush1.bf16.msra.mxu0 0
    %2238 = vmatprep.subr.bf16.mxu0 0
    %2239 = vmatpush1.bf16.msra.mxu0 0
    %2240 = vmatprep.subr.bf16.mxu0 0
    %2241 = vmatpush1.bf16.msra.mxu0 0
    %2242 = vmatprep.subr.bf16.mxu0 0
    %2243 = vmatpush1.bf16.msra.mxu0 0
    %2244 = vmatprep.subr.bf16.mxu0 0
    %2245 = vmatpush1.bf16.msra.mxu0 0
    %2246 = vmatprep.subr.bf16.mxu0 0
    %2247 = vmatpush1.bf16.msra.mxu0 0
    %2248 = vmatprep.subr.bf16.mxu0 0
    %2249 = vmatpush1.bf16.msra.mxu0 0
    %2250 = vmatprep.mubr.bf16.mxu0 0
    %2251 = vmatmul.mubr.bf16.gmra.mrb[0].mxu0 %v2216
    %v2252 = vpop.f32.mrb[0].mxu0
    %v2253 = vadd.f32 0.0, %v2252
    %v2254 = vpop.f32.mrb[0].mxu0
    %v2255 = vpop.f32.mrb[0].mxu0
    %v2256 = vpop.f32.mrb[0].mxu0
    %2257 = vdwg.mxu0
    %v2258 = vsel %vm1782, %v2253, -inf
    %2259 = vmax.xlane.f32.xlu0 %v2258
    %v2260 = vpop.xlane.xlu0 %2259
    %v2261 = vsub.f32 %v2253, %v2260
    %v2262 = vmul.f32 %v2261, 1.442695
    %v2263 = vpow.pop %v2262
    %v2264 = vsel %vm1782, %v2263, 0.0
    %2265 = vadd.xlane.f32.xlu0 %v2264
    %v2266 = vpop.xlane.xlu0 %2265
    %v2267 = vrcp.pop %v2266
    %v2268 = vmul.f32 %v2263, %v2267
    %v2269 = vpack.c.bf16 %v2268, %v2268
    %v2271 = vsel %vm1798, %v2269, 0
    %2273 = vmatprep.subr.bf16.mxu0 0
    %2274 = vmatpush1.bf16.msra.mxu0 %v1803
    %2275 = vmatprep.subr.bf16.mxu0 0
    %2276 = vmatpush1.bf16.msra.mxu0 0
    %2277 = vmatprep.subr.bf16.mxu0 0
    %2278 = vmatpush1.bf16.msra.mxu0 0
    %2279 = vmatprep.subr.bf16.mxu0 0
    %2280 = vmatpush1.bf16.msra.mxu0 0
    %2281 = vmatprep.subr.bf16.mxu0 0
    %2282 = vmatpush1.bf16.msra.mxu0 0
    %2283 = vmatprep.subr.bf16.mxu0 0
    %2284 = vmatpush1.bf16.msra.mxu0 0
    %2285 = vmatprep.subr.bf16.mxu0 0
    %2286 = vmatpush1.bf16.msra.mxu0 0
    %2287 = vmatprep.subr.bf16.mxu0 0
    %2288 = vmatpush1.bf16.msra.mxu0 0
    %2289 = vmatprep.subr.bf16.mxu0 0
    %2290 = vmatpush1.bf16.msra.mxu0 0
    %2291 = vmatprep.subr.bf16.mxu0 0
    %2292 = vmatpush1.bf16.msra.mxu0 0
    %2293 = vmatprep.subr.bf16.mxu0 0
    %2294 = vmatpush1.bf16.msra.mxu0 0
    %2295 = vmatprep.subr.bf16.mxu0 0
    %2296 = vmatpush1.bf16.msra.mxu0 0
    %2297 = vmatprep.subr.bf16.mxu0 0
    %2298 = vmatpush1.bf16.msra.mxu0 0
    %2299 = vmatprep.subr.bf16.mxu0 0
    %2300 = vmatpush1.bf16.msra.mxu0 0
    %2301 = vmatprep.subr.bf16.mxu0 0
    %2302 = vmatpush1.bf16.msra.mxu0 0
    %2303 = vmatprep.subr.bf16.mxu0 0
    %2304 = vmatpush1.bf16.msra.mxu0 0
    %2305 = vmatprep.mubr.bf16.mxu0 0
    %2306 = vmatmul.mubr.bf16.gmra.mrb[0].mxu0 %v2271
    %v2307 = vpop.f32.mrb[0].mxu0
    %v2308 = vadd.f32 0.0, %v2307
    %v2309 = vpop.f32.mrb[0].mxu0
    %v2310 = vpop.f32.mrb[0].mxu0
    %v2311 = vpop.f32.mrb[0].mxu0
    %2312 = vdwg.mxu0
    %v2313 = vpack.c.bf16 %v2308, %v2308
    %v2315 = vsel %vm48, %v2313, 0
    %2317 = vmatprep.subr.bf16.mxu0 0
    %2318 = vmatpush1.bf16.msra.mxu0 %v1862
    %2319 = vmatprep.subr.bf16.mxu0 0
    %2320 = vmatpush1.bf16.msra.mxu0 %v1863
    %2321 = vmatprep.subr.bf16.mxu0 0
    %2322 = vmatpush1.bf16.msra.mxu0 0
    %2323 = vmatprep.subr.bf16.mxu0 0
    %2324 = vmatpush1.bf16.msra.mxu0 0
    %2325 = vmatprep.subr.bf16.mxu0 0
    %2326 = vmatpush1.bf16.msra.mxu0 0
    %2327 = vmatprep.subr.bf16.mxu0 0
    %2328 = vmatpush1.bf16.msra.mxu0 0
    %2329 = vmatprep.subr.bf16.mxu0 0
    %2330 = vmatpush1.bf16.msra.mxu0 0
    %2331 = vmatprep.subr.bf16.mxu0 0
    %2332 = vmatpush1.bf16.msra.mxu0 0
    %2333 = vmatprep.subr.bf16.mxu0 0
    %2334 = vmatpush1.bf16.msra.mxu0 0
    %2335 = vmatprep.subr.bf16.mxu0 0
    %2336 = vmatpush1.bf16.msra.mxu0 0
    %2337 = vmatprep.subr.bf16.mxu0 0
    %2338 = vmatpush1.bf16.msra.mxu0 0
    %2339 = vmatprep.subr.bf16.mxu0 0
    %2340 = vmatpush1.bf16.msra.mxu0 0
    %2341 = vmatprep.subr.bf16.mxu0 0
    %2342 = vmatpush1.bf16.msra.mxu0 0
    %2343 = vmatprep.subr.bf16.mxu0 0
    %2344 = vmatpush1.bf16.msra.mxu0 0
    %2345 = vmatprep.subr.bf16.mxu0 0
    %2346 = vmatpush1.bf16.msra.mxu0 0
    %2347 = vmatprep.subr.bf16.mxu0 0
    %2348 = vmatpush1.bf16.msra.mxu0 0
    %2349 = vmatprep.mubr.bf16.mxu0 0
    %2350 = vmatmul.mubr.bf16.gmra.mrb[0].mxu0 %v2315
    %v2351 = vpop.f32.mrb[0].mxu0
    %v2352 = vadd.f32 0.0, %v2351
    %v2353 = vpop.f32.mrb[0].mxu0
    %v2354 = vpop.f32.mrb[0].mxu0
    %v2355 = vpop.f32.mrb[0].mxu0
    %2356 = vdwg.mxu0
    %2357 = vmatprep.subr.bf16.mxu0 0
    %2358 = vmatpush1.bf16.msra.mxu0 %v1917
    %2359 = vmatprep.subr.bf16.mxu0 0
    %2360 = vmatpush1.bf16.msra.mxu0 %v1918
    %2361 = vmatprep.subr.bf16.mxu0 0
    %2362 = vmatpush1.bf16.msra.mxu0 0
    %2363 = vmatprep.subr.bf16.mxu0 0
    %2364 = vmatpush1.bf16.msra.mxu0 0
    %2365 = vmatprep.subr.bf16.mxu0 0
    %2366 = vmatpush1.bf16.msra.mxu0 0
    %2367 = vmatprep.subr.bf16.mxu0 0
    %2368 = vmatpush1.bf16.msra.mxu0 0
    %2369 = vmatprep.subr.bf16.mxu0 0
    %2370 = vmatpush1.bf16.msra.mxu0 0
    %2371 = vmatprep.subr.bf16.mxu0 0
    %2372 = vmatpush1.bf16.msra.mxu0 0
    %2373 = vmatprep.subr.bf16.mxu0 0
    %2374 = vmatpush1.bf16.msra.mxu0 0
    %2375 = vmatprep.subr.bf16.mxu0 0
    %2376 = vmatpush1.bf16.msra.mxu0 0
    %2377 = vmatprep.subr.bf16.mxu0 0
    %2378 = vmatpush1.bf16.msra.mxu0 0
    %2379 = vmatprep.subr.bf16.mxu0 0
    %2380 = vmatpush1.bf16.msra.mxu0 0
    %2381 = vmatprep.subr.bf16.mxu0 0
    %2382 = vmatpush1.bf16.msra.mxu0 0
    %2383 = vmatprep.subr.bf16.mxu0 0
    %2384 = vmatpush1.bf16.msra.mxu0 0
    %2385 = vmatprep.subr.bf16.mxu0 0
    %2386 = vmatpush1.bf16.msra.mxu0 0
    %2387 = vmatprep.subr.bf16.mxu0 0
    %2388 = vmatpush1.bf16.msra.mxu0 0
    %2389 = vmatprep.mubr.bf16.mxu0 0
    %2390 = vmatmul.mubr.bf16.gmra.mrb[0].mxu0 %v2216
    %v2391 = vpop.f32.mrb[0].mxu0
    %v2392 = vadd.f32 %v2352, %v2391
    %v2393 = vpop.f32.mrb[0].mxu0
    %v2394 = vpop.f32.mrb[0].mxu0
    %v2395 = vpop.f32.mrb[0].mxu0
    %2396 = vdwg.mxu0
    %v2397 = vadd.f32 %v2392, %v1556
    %v2398 = vtanh.pop %v2397
    %v2399 = vpack.c.bf16 %v2398, %v2398
    %2400 = vmatprep.subr.bf16.mxu0 0
    %2401 = vmatpush1.bf16.msra.mxu0 %v2012
    %2402 = vmatprep.subr.bf16.mxu0 0
    %2403 = vmatpush1.bf16.msra.mxu0 %v2013
    %2404 = vmatprep.subr.bf16.mxu0 0
    %2405 = vmatpush1.bf16.msra.mxu0 %v2014
    %2406 = vmatprep.subr.bf16.mxu0 0
    %2407 = vmatpush1.bf16.msra.mxu0 %v2015
    %2408 = vmatprep.subr.bf16.mxu0 0
    %2409 = vmatpush1.bf16.msra.mxu0 %v2016
    %2410 = vmatprep.subr.bf16.mxu0 0
    %2411 = vmatpush1.bf16.msra.mxu0 %v2017
    %2412 = vmatprep.subr.bf16.mxu0 0
    %2413 = vmatpush1.bf16.msra.mxu0 %v2018
    %2414 = vmatprep.subr.bf16.mxu0 0
    %2415 = vmatpush1.bf16.msra.mxu0 %v2019
    %2416 = vmatprep.subr.bf16.mxu0 0
    %2417 = vmatpush1.bf16.msra.mxu0 0
    %2418 = vmatprep.subr.bf16.mxu0 0
    %2419 = vmatpush1.bf16.msra.mxu0 0
    %2420 = vmatprep.subr.bf16.mxu0 0
    %2421 = vmatpush1.bf16.msra.mxu0 0
    %2422 = vmatprep.subr.bf16.mxu0 0
    %2423 = vmatpush1.bf16.msra.mxu0 0
    %2424 = vmatprep.subr.bf16.mxu0 0
    %2425 = vmatpush1.bf16.msra.mxu0 0
    %2426 = vmatprep.subr.bf16.mxu0 0
    %2427 = vmatpush1.bf16.msra.mxu0 0
    %2428 = vmatprep.subr.bf16.mxu0 0
    %2429 = vmatpush1.bf16.msra.mxu0 0
    %2430 = vmatprep.subr.bf16.mxu0 0
    %2431 = vmatpush1.bf16.msra.mxu0 0
    %2432 = vmatprep.mubr.bf16.mxu0 0
    %2433 = vmatmul.mubr.bf16.gmra.mrb[0].mxu0 %v2399
    %v2434 = vpop.f32.mrb[0].mxu0
    %v2435 = vadd.f32 %v1557, %v2434
    %v2436 = vpop.f32.mrb[0].mxu0
    %v2437 = vpop.f32.mrb[0].mxu0
    %v2438 = vpop.f32.mrb[0].mxu0
    %2439 = vdwg.mxu0
    %v2440 = vsel %vm1494, %v2435, -inf
    %2441 = vmax.xlane.f32.xlu0 %v2440
    %v2442 = vpop.xlane.xlu0 %2441
    %v2443 = vsub.f32 %v2435, %v2442
    %v2444 = vmul.f32 %v2443, 1.442695
    %v2445 = vpow.pop %v2444
    %v2446 = vsel %vm1494, %v2445, 0.0
    %2447 = vadd.xlane.f32.xlu0 %v2446
    %v2448 = vpop.xlane.xlu0 %2447
    %v2449 = vrcp.pop %v2448
    %vm2450 = vcmp.ge.f32.partialorder %v2435, %v2442
    %v2451 = vsel %vm2450, %v1559, 128
    %v2452 = vsel %vm1494, %v2451, 2147483647
    %v2453 = vand.u32 %v2452, 65535
    %v2454 = vshra.s32 %v2452, 16
    %v2455 = vcvt.s32.f32 %v2453
    %v2456 = vcvt.s32.f32 %v2454
    %2457 = vmin.xlane.f32.xlu0 %v2456
    %v2458 = vpop.xlane.xlu0 %2457
    %vm2459 = vcmp.eq.f32.partialorder %v2456, %v2458
    %v2460 = vsel %vm2459, %v2455, inf
    %2461 = vmin.xlane.f32.xlu0 %v2460
    %v2462 = vpop.xlane.xlu0 %2461
    %v2463 = vcvt.f32.s32 %v2462
    %v2464 = vcvt.f32.s32 %v2458
    %v2465 = vshll.u32 %v2464, 16
    %v2466 = vadd.s32 %v2465, %v2463
    %v2467 = vsel %vm1560, %v2466, %v2096
    %v2468 = vsel %vm1560, %v2449, %v2097
    %vm2469 = vcmp.eq.s32.totalorder %v1559, %v2466
    %v2470 = vsel %vm2469, 1, 0
    %v2471 = vcvt.s32.f32 %v2470
    %v2472 = vpack.c.bf16 %v2471, %v2471
    %2473 = vmatprep.subr.bf16.mxu0 0
    %2474 = vmatpush1.bf16.msra.mxu0 %v1591
    %2475 = vmatprep.subr.bf16.mxu0 0
    %2476 = vmatpush1.bf16.msra.mxu0 %v1592
    %2477 = vmatprep.subr.bf16.mxu0 0
    %2478 = vmatpush1.bf16.msra.mxu0 0
    %2479 = vmatprep.subr.bf16.mxu0 0
    %2480 = vmatpush1.bf16.msra.mxu0 0
    %2481 = vmatprep.subr.bf16.mxu0 0
    %2482 = vmatpush1.bf16.msra.mxu0 0
    %2483 = vmatprep.subr.bf16.mxu0 0
    %2484 = vmatpush1.bf16.msra.mxu0 0
    %2485 = vmatprep.subr.bf16.mxu0 0
    %2486 = vmatpush1.bf16.msra.mxu0 0
    %2487 = vmatprep.subr.bf16.mxu0 0
    %2488 = vmatpush1.bf16.msra.mxu0 0
    %2489 = vmatprep.subr.bf16.mxu0 0
    %2490 = vmatpush1.bf16.msra.mxu0 0
    %2491 = vmatprep.subr.bf16.mxu0 0
    %2492 = vmatpush1.bf16.msra.mxu0 0
    %2493 = vmatprep.subr.bf16.mxu0 0
    %2494 = vmatpush1.bf16.msra.mxu0 0
    %2495 = vmatprep.subr.bf16.mxu0 0
    %2496 = vmatpush1.bf16.msra.mxu0 0
    %2497 = vmatprep.subr.bf16.mxu0 0
    %2498 = vmatpush1.bf16.msra.mxu0 0
    %2499 = vmatprep.subr.bf16.mxu0 0
    %2500 = vmatpush1.bf16.msra.mxu0 0
    %2501 = vmatprep.subr.bf16.mxu0 0
    %2502 = vmatpush1.bf16.msra.mxu0 0
    %2503 = vmatprep.subr.bf16.mxu0 0
    %2504 = vmatpush1.bf16.msra.mxu0 0
    %2505 = vmatprep.mubr.bf16.mxu0 0
    %2506 = vmatmul.mubr.bf16.gmra.mrb[0].mxu0 %v2216
    %v2507 = vpop.f32.mrb[0].mxu0
    %v2508 = vadd.f32 0.0, %v2507
    %v2509 = vpop.f32.mrb[0].mxu0
    %v2510 = vpop.f32.mrb[0].mxu0
    %v2511 = vpop.f32.mrb[0].mxu0
    %2512 = vdwg.mxu0
    %v2514 = vsel %vm1662, %v2472, 0
    %2516 = vmatprep.subr.bf16.mxu0 0
    %2517 = vmatpush1.bf16.msra.mxu0 %v1654
    %2518 = vmatprep.subr.bf16.mxu0 0
    %2519 = vmatpush1.bf16.msra.mxu0 %v1655
    %2520 = vmatprep.subr.bf16.mxu0 0
    %2521 = vmatpush1.bf16.msra.mxu0 %v1656
    %2522 = vmatprep.subr.bf16.mxu0 0
    %2523 = vmatpush1.bf16.msra.mxu0 %v1657
    %2524 = vmatprep.subr.bf16.mxu0 0
    %2525 = vmatpush1.bf16.msra.mxu0 0
    %2526 = vmatprep.subr.bf16.mxu0 0
    %2527 = vmatpush1.bf16.msra.mxu0 0
    %2528 = vmatprep.subr.bf16.mxu0 0
    %2529 = vmatpush1.bf16.msra.mxu0 0
    %2530 = vmatprep.subr.bf16.mxu0 0
    %2531 = vmatpush1.bf16.msra.mxu0 0
    %2532 = vmatprep.subr.bf16.mxu0 0
    %2533 = vmatpush1.bf16.msra.mxu0 0
    %2534 = vmatprep.subr.bf16.mxu0 0
    %2535 = vmatpush1.bf16.msra.mxu0 0
    %2536 = vmatprep.subr.bf16.mxu0 0
    %2537 = vmatpush1.bf16.msra.mxu0 0
    %2538 = vmatprep.subr.bf16.mxu0 0
    %2539 = vmatpush1.bf16.msra.mxu0 0
    %2540 = vmatprep.subr.bf16.mxu0 0
    %2541 = vmatpush1.bf16.msra.mxu0 0
    %2542 = vmatprep.subr.bf16.mxu0 0
    %2543 = vmatpush1.bf16.msra.mxu0 0
    %2544 = vmatprep.subr.bf16.mxu0 0
    %2545 = vmatpush1.bf16.msra.mxu0 0
    %2546 = vmatprep.subr.bf16.mxu0 0
    %2547 = vmatpush1.bf16.msra.mxu0 0
    %2548 = vmatprep.mubr.bf16.mxu0 0
    %2549 = vmatmul.mubr.bf16.gmra.mrb[0].mxu0 %v2514
    %v2550 = vpop.f32.mrb[0].mxu0
    %v2551 = vadd.f32 %v2508, %v2550
    %v2552 = vpop.f32.mrb[0].mxu0
    %v2553 = vpop.f32.mrb[0].mxu0
    %v2554 = vpop.f32.mrb[0].mxu0
    %2555 = vdwg.mxu0
    %v2556 = vadd.f32 %v2551, %v1555
    %v2557 = vxor.u32 %v2556, 2147483648
    %v2558 = vmul.f32 %v2557, 1.442695
    %v2559 = vpow.pop %v2558
    %v2560 = vadd.f32 %v2559, 1.0
    %v2561 = vrcp.pop %v2560
    %v2562 = vmul.f32 1.0, %v2561
    %2564 = vrot.lane.b32.xlu0 %v2556, 32
    %v2565 = vpop.permute.xlu0 %2564
    %v2567 = vmul.f32 %v2562, %v2565
    %2569 = vrot.lane.b32.xlu0 %v2567, 64
    %v2570 = vpop.permute.xlu0 %2569
    %v2572 = vadd.f32 %v2556, %v2570
    %v2573 = vtanh.pop %v2572
    %v2574 = vsub.f32 1.0, %v2562
    %2576 = vrot.lane.b32.xlu0 %v2573, 96
    %v2577 = vpop.permute.xlu0 %2576
    %v2579 = vmul.f32 %v2574, %v2577
    %v2580 = vmul.f32 %v2562, %v2210
    %v2581 = vadd.f32 %v2579, %v2580
    %v2582 = vpack.c.bf16 %v2581, %v2581
    %2584 = vrot.lane.b32.xlu0 %v2582, 96
    %v2585 = vpop.permute.xlu0 %2584
    %v2587 = vsel %vm48, %v2585, 0
    %2589 = vmatprep.subr.bf16.mxu0 0
    %2590 = vmatpush1.bf16.msra.mxu0 %v1553
    %2591 = vmatprep.subr.bf16.mxu0 0
    %2592 = vmatpush1.bf16.msra.mxu0 %v1554
    %2593 = vmatprep.subr.bf16.mxu0 0
    %2594 = vmatpush1.bf16.msra.mxu0 0
    %2595 = vmatprep.subr.bf16.mxu0 0
    %2596 = vmatpush1.bf16.msra.mxu0 0
    %2597 = vmatprep.subr.bf16.mxu0 0
    %2598 = vmatpush1.bf16.msra.mxu0 0
    %2599 = vmatprep.subr.bf16.mxu0 0
    %2600 = vmatpush1.bf16.msra.mxu0 0
    %2601 = vmatprep.subr.bf16.mxu0 0
    %2602 = vmatpush1.bf16.msra.mxu0 0
    %2603 = vmatprep.subr.bf16.mxu0 0
    %2604 = vmatpush1.bf16.msra.mxu0 0
    %2605 = vmatprep.subr.bf16.mxu0 0
    %2606 = vmatpush1.bf16.msra.mxu0 0
    %2607 = vmatprep.subr.bf16.mxu0 0
    %2608 = vmatpush1.bf16.msra.mxu0 0
    %2609 = vmatprep.subr.bf16.mxu0 0
    %2610 = vmatpush1.bf16.msra.mxu0 0
    %2611 = vmatprep.subr.bf16.mxu0 0
    %2612 = vmatpush1.bf16.msra.mxu0 0
    %2613 = vmatprep.subr.bf16.mxu0 0
    %2614 = vmatpush1.bf16.msra.mxu0 0
    %2615 = vmatprep.subr.bf16.mxu0 0
    %2616 = vmatpush1.bf16.msra.mxu0 0
    %2617 = vmatprep.subr.bf16.mxu0 0
    %2618 = vmatpush1.bf16.msra.mxu0 0
    %2619 = vmatprep.subr.bf16.mxu0 0
    %2620 = vmatpush1.bf16.msra.mxu0 0
    %2621 = vmatprep.mubr.bf16.mxu0 0
    %2622 = vmatmul.mubr.bf16.gmra.mrb[0].mxu0 %v2587
    %v2623 = vpop.f32.mrb[0].mxu0
    %v2624 = vadd.f32 0.0, %v2623
    %v2625 = vpop.f32.mrb[0].mxu0
    %v2626 = vpop.f32.mrb[0].mxu0
    %v2627 = vpop.f32.mrb[0].mxu0
    %2628 = vdwg.mxu0
    %v2629 = vsel %vm1782, %v2624, -inf
    %2630 = vmax.xlane.f32.xlu0 %v2629
    %v2631 = vpop.xlane.xlu0 %2630
    %v2632 = vsub.f32 %v2624, %v2631
    %v2633 = vmul.f32 %v2632, 1.442695
    %v2634 = vpow.pop %v2633
    %v2635 = vsel %vm1782, %v2634, 0.0
    %2636 = vadd.xlane.f32.xlu0 %v2635
    %v2637 = vpop.xlane.xlu0 %2636
    %v2638 = vrcp.pop %v2637
    %v2639 = vmul.f32 %v2634, %v2638
    %v2640 = vpack.c.bf16 %v2639, %v2639
    %v2642 = vsel %vm1798, %v2640, 0
    %2644 = vmatprep.subr.bf16.mxu0 0
    %2645 = vmatpush1.bf16.msra.mxu0 %v1803
    %2646 = vmatprep.subr.bf16.mxu0 0
    %2647 = vmatpush1.bf16.msra.mxu0 0
    %2648 = vmatprep.subr.bf16.mxu0 0
    %2649 = vmatpush1.bf16.msra.mxu0 0
    %2650 = vmatprep.subr.bf16.mxu0 0
    %2651 = vmatpush1.bf16.msra.mxu0 0
    %2652 = vmatprep.subr.bf16.mxu0 0
    %2653 = vmatpush1.bf16.msra.mxu0 0
    %2654 = vmatprep.subr.bf16.mxu0 0
    %2655 = vmatpush1.bf16.msra.mxu0 0
    %2656 = vmatprep.subr.bf16.mxu0 0
    %2657 = vmatpush1.bf16.msra.mxu0 0
    %2658 = vmatprep.subr.bf16.mxu0 0
    %2659 = vmatpush1.bf16.msra.mxu0 0
    %2660 = vmatprep.subr.bf16.mxu0 0
    %2661 = vmatpush1.bf16.msra.mxu0 0
    %2662 = vmatprep.subr.bf16.mxu0 0
    %2663 = vmatpush1.bf16.msra.mxu0 0
    %2664 = vmatprep.subr.bf16.mxu0 0
    %2665 = vmatpush1.bf16.msra.mxu0 0
    %2666 = vmatprep.subr.bf16.mxu0 0
    %2667 = vmatpush1.bf16.msra.mxu0 0
    %2668 = vmatprep.subr.bf16.mxu0 0
    %2669 = vmatpush1.bf16.msra.mxu0 0
    %2670 = vmatprep.subr.bf16.mxu0 0
    %2671 = vmatpush1.bf16.msra.mxu0 0
    %2672 = vmatprep.subr.bf16.mxu0 0
    %2673 = vmatpush1.bf16.msra.mxu0 0
    %2674 = vmatprep.subr.bf16.mxu0 0
    %2675 = vmatpush1.bf16.msra.mxu0 0
    %2676 = vmatprep.mubr.bf16.mxu0 0
    %2677 = vmatmul.mubr.bf16.gmra.mrb[0].mxu0 %v2642
    %v2678 = vpop.f32.mrb[0].mxu0
    %v2679 = vadd.f32 0.0, %v2678
    %v2680 = vpop.f32.mrb[0].mxu0
    %v2681 = vpop.f32.mrb[0].mxu0
    %v2682 = vpop.f32.mrb[0].mxu0
    %2683 = vdwg.mxu0
    %v2684 = vpack.c.bf16 %v2679, %v2679
    %v2686 = vsel %vm48, %v2684, 0
    %2688 = vmatprep.subr.bf16.mxu0 0
    %2689 = vmatpush1.bf16.msra.mxu0 %v1862
    %2690 = vmatprep.subr.bf16.mxu0 0
    %2691 = vmatpush1.bf16.msra.mxu0 %v1863
    %2692 = vmatprep.subr.bf16.mxu0 0
    %2693 = vmatpush1.bf16.msra.mxu0 0
    %2694 = vmatprep.subr.bf16.mxu0 0
    %2695 = vmatpush1.bf16.msra.mxu0 0
    %2696 = vmatprep.subr.bf16.mxu0 0
    %2697 = vmatpush1.bf16.msra.mxu0 0
    %2698 = vmatprep.subr.bf16.mxu0 0
    %2699 = vmatpush1.bf16.msra.mxu0 0
    %2700 = vmatprep.subr.bf16.mxu0 0
    %2701 = vmatpush1.bf16.msra.mxu0 0
    %2702 = vmatprep.subr.bf16.mxu0 0
    %2703 = vmatpush1.bf16.msra.mxu0 0
    %2704 = vmatprep.subr.bf16.mxu0 0
    %2705 = vmatpush1.bf16.msra.mxu0 0
    %2706 = vmatprep.subr.bf16.mxu0 0
    %2707 = vmatpush1.bf16.msra.mxu0 0
    %2708 = vmatprep.subr.bf16.mxu0 0
    %2709 = vmatpush1.bf16.msra.mxu0 0
    %2710 = vmatprep.subr.bf16.mxu0 0
    %2711 = vmatpush1.bf16.msra.mxu0 0
    %2712 = vmatprep.subr.bf16.mxu0 0
    %2713 = vmatpush1.bf16.msra.mxu0 0
    %2714 = vmatprep.subr.bf16.mxu0 0
    %2715 = vmatpush1.bf16.msra.mxu0 0
    %2716 = vmatprep.subr.bf16.mxu0 0
    %2717 = vmatpush1.bf16.msra.mxu0 0
    %2718 = vmatprep.subr.bf16.mxu0 0
    %2719 = vmatpush1.bf16.msra.mxu0 0
    %2720 = vmatprep.mubr.bf16.mxu0 0
    %2721 = vmatmul.mubr.bf16.gmra.mrb[0].mxu0 %v2686
    %v2722 = vpop.f32.mrb[0].mxu0
    %v2723 = vadd.f32 0.0, %v2722
    %v2724 = vpop.f32.mrb[0].mxu0
    %v2725 = vpop.f32.mrb[0].mxu0
    %v2726 = vpop.f32.mrb[0].mxu0
    %2727 = vdwg.mxu0
    %2728 = vmatprep.subr.bf16.mxu0 0
    %2729 = vmatpush1.bf16.msra.mxu0 %v1917
    %2730 = vmatprep.subr.bf16.mxu0 0
    %2731 = vmatpush1.bf16.msra.mxu0 %v1918
    %2732 = vmatprep.subr.bf16.mxu0 0
    %2733 = vmatpush1.bf16.msra.mxu0 0
    %2734 = vmatprep.subr.bf16.mxu0 0
    %2735 = vmatpush1.bf16.msra.mxu0 0
    %2736 = vmatprep.subr.bf16.mxu0 0
    %2737 = vmatpush1.bf16.msra.mxu0 0
    %2738 = vmatprep.subr.bf16.mxu0 0
    %2739 = vmatpush1.bf16.msra.mxu0 0
    %2740 = vmatprep.subr.bf16.mxu0 0
    %2741 = vmatpush1.bf16.msra.mxu0 0
    %2742 = vmatprep.subr.bf16.mxu0 0
    %2743 = vmatpush1.bf16.msra.mxu0 0
    %2744 = vmatprep.subr.bf16.mxu0 0
    %2745 = vmatpush1.bf16.msra.mxu0 0
    %2746 = vmatprep.subr.bf16.mxu0 0
    %2747 = vmatpush1.bf16.msra.mxu0 0
    %2748 = vmatprep.subr.bf16.mxu0 0
    %2749 = vmatpush1.bf16.msra.mxu0 0
    %2750 = vmatprep.subr.bf16.mxu0 0
    %2751 = vmatpush1.bf16.msra.mxu0 0
    %2752 = vmatprep.subr.bf16.mxu0 0
    %2753 = vmatpush1.bf16.msra.mxu0 0
    %2754 = vmatprep.subr.bf16.mxu0 0
    %2755 = vmatpush1.bf16.msra.mxu0 0
    %2756 = vmatprep.subr.bf16.mxu0 0
    %2757 = vmatpush1.bf16.msra.mxu0 0
    %2758 = vmatprep.subr.bf16.mxu0 0
    %2759 = vmatpush1.bf16.msra.mxu0 0
    %2760 = vmatprep.mubr.bf16.mxu0 0
    %2761 = vmatmul.mubr.bf16.gmra.mrb[0].mxu0 %v2587
    %v2762 = vpop.f32.mrb[0].mxu0
    %v2763 = vadd.f32 %v2723, %v2762
    %v2764 = vpop.f32.mrb[0].mxu0
    %v2765 = vpop.f32.mrb[0].mxu0
    %v2766 = vpop.f32.mrb[0].mxu0
    %2767 = vdwg.mxu0
    %v2768 = vadd.f32 %v2763, %v1556
    %v2769 = vtanh.pop %v2768
    %v2770 = vpack.c.bf16 %v2769, %v2769
    %2771 = vmatprep.subr.bf16.mxu0 0
    %2772 = vmatpush1.bf16.msra.mxu0 %v2012
    %2773 = vmatprep.subr.bf16.mxu0 0
    %2774 = vmatpush1.bf16.msra.mxu0 %v2013
    %2775 = vmatprep.subr.bf16.mxu0 0
    %2776 = vmatpush1.bf16.msra.mxu0 %v2014
    %2777 = vmatprep.subr.bf16.mxu0 0
    %2778 = vmatpush1.bf16.msra.mxu0 %v2015
    %2779 = vmatprep.subr.bf16.mxu0 0
    %2780 = vmatpush1.bf16.msra.mxu0 %v2016
    %2781 = vmatprep.subr.bf16.mxu0 0
    %2782 = vmatpush1.bf16.msra.mxu0 %v2017
    %2783 = vmatprep.subr.bf16.mxu0 0
    %2784 = vmatpush1.bf16.msra.mxu0 %v2018
    %2785 = vmatprep.subr.bf16.mxu0 0
    %2786 = vmatpush1.bf16.msra.mxu0 %v2019
    %2787 = vmatprep.subr.bf16.mxu0 0
    %2788 = vmatpush1.bf16.msra.mxu0 0
    %2789 = vmatprep.subr.bf16.mxu0 0
    %2790 = vmatpush1.bf16.msra.mxu0 0
    %2791 = vmatprep.subr.bf16.mxu0 0
    %2792 = vmatpush1.bf16.msra.mxu0 0
    %2793 = vmatprep.subr.bf16.mxu0 0
    %2794 = vmatpush1.bf16.msra.mxu0 0
    %2795 = vmatprep.subr.bf16.mxu0 0
    %2796 = vmatpush1.bf16.msra.mxu0 0
    %2797 = vmatprep.subr.bf16.mxu0 0
    %2798 = vmatpush1.bf16.msra.mxu0 0
    %2799 = vmatprep.subr.bf16.mxu0 0
    %2800 = vmatpush1.bf16.msra.mxu0 0
    %2801 = vmatprep.subr.bf16.mxu0 0
    %2802 = vmatpush1.bf16.msra.mxu0 0
    %2803 = vmatprep.mubr.bf16.mxu0 0
    %2804 = vmatmul.mubr.bf16.gmra.mrb[0].mxu0 %v2770
    %v2805 = vpop.f32.mrb[0].mxu0
    %v2806 = vadd.f32 %v1557, %v2805
    %v2807 = vpop.f32.mrb[0].mxu0
    %v2808 = vpop.f32.mrb[0].mxu0
    %v2809 = vpop.f32.mrb[0].mxu0
    %2810 = vdwg.mxu0
    %v2811 = vsel %vm1494, %v2806, -inf
    %2812 = vmax.xlane.f32.xlu0 %v2811
    %v2813 = vpop.xlane.xlu0 %2812
    %v2814 = vsub.f32 %v2806, %v2813
    %v2815 = vmul.f32 %v2814, 1.442695
    %v2816 = vpow.pop %v2815
    %v2817 = vsel %vm1494, %v2816, 0.0
    %2818 = vadd.xlane.f32.xlu0 %v2817
    %v2819 = vpop.xlane.xlu0 %2818
    %v2820 = vrcp.pop %v2819
    %vm2821 = vcmp.ge.f32.partialorder %v2806, %v2813
    %v2822 = vsel %vm2821, %v1559, 128
    %v2823 = vsel %vm1494, %v2822, 2147483647
    %v2824 = vand.u32 %v2823, 65535
    %v2825 = vshra.s32 %v2823, 16
    %v2826 = vcvt.s32.f32 %v2824
    %v2827 = vcvt.s32.f32 %v2825
    %2828 = vmin.xlane.f32.xlu0 %v2827
    %v2829 = vpop.xlane.xlu0 %2828
    %vm2830 = vcmp.eq.f32.partialorder %v2827, %v2829
    %v2831 = vsel %vm2830, %v2826, inf
    %2832 = vmin.xlane.f32.xlu0 %v2831
    %v2833 = vpop.xlane.xlu0 %2832
    %v2834 = vcvt.f32.s32 %v2833
    %v2835 = vcvt.f32.s32 %v2829
    %v2836 = vshll.u32 %v2835, 16
    %v2837 = vadd.s32 %v2836, %v2834
    %vm2838 = vcmp.eq.s32.totalorder %v1559, 2
    %v2839 = vsel %vm2838, %v2837, %v2467
    %v2840 = vsel %vm2838, %v2820, %v2468
    %vm2841 = vcmp.eq.s32.totalorder %v1559, %v2837
    %v2842 = vsel %vm2841, 1, 0
    %v2843 = vcvt.s32.f32 %v2842
    %v2844 = vpack.c.bf16 %v2843, %v2843
    %2845 = vmatprep.subr.bf16.mxu0 0
    %2846 = vmatpush1.bf16.msra.mxu0 %v1591
    %2847 = vmatprep.subr.bf16.mxu0 0
    %2848 = vmatpush1.bf16.msra.mxu0 %v1592
    %2849 = vmatprep.subr.bf16.mxu0 0
    %2850 = vmatpush1.bf16.msra.mxu0 0
    %2851 = vmatprep.subr.bf16.mxu0 0
    %2852 = vmatpush1.bf16.msra.mxu0 0
    %2853 = vmatprep.subr.bf16.mxu0 0
    %2854 = vmatpush1.bf16.msra.mxu0 0
    %2855 = vmatprep.subr.bf16.mxu0 0
    %2856 = vmatpush1.bf16.msra.mxu0 0
    %2857 = vmatprep.subr.bf16.mxu0 0
    %2858 = vmatpush1.bf16.msra.mxu0 0
    %2859 = vmatprep.subr.bf16.mxu0 0
    %2860 = vmatpush1.bf16.msra.mxu0 0
    %2861 = vmatprep.subr.bf16.mxu0 0
    %2862 = vmatpush1.bf16.msra.mxu0 0
    %2863 = vmatprep.subr.bf16.mxu0 0
    %2864 = vmatpush1.bf16.msra.mxu0 0
    %2865 = vmatprep.subr.bf16.mxu0 0
    %2866 = vmatpush1.bf16.msra.mxu0 0
    %2867 = vmatprep.subr.bf16.mxu0 0
    %2868 = vmatpush1.bf16.msra.mxu0 0
    %2869 = vmatprep.subr.bf16.mxu0 0
    %2870 = vmatpush1.bf16.msra.mxu0 0
    %2871 = vmatprep.subr.bf16.mxu0 0
    %2872 = vmatpush1.bf16.msra.mxu0 0
    %2873 = vmatprep.subr.bf16.mxu0 0
    %2874 = vmatpush1.bf16.msra.mxu0 0
    %2875 = vmatprep.subr.bf16.mxu0 0
    %2876 = vmatpush1.bf16.msra.mxu0 0
    %2877 = vmatprep.mubr.bf16.mxu0 0
    %2878 = vmatmul.mubr.bf16.gmra.mrb[0].mxu0 %v2587
    %v2879 = vpop.f32.mrb[0].mxu0
    %v2880 = vadd.f32 0.0, %v2879
    %v2881 = vpop.f32.mrb[0].mxu0
    %v2882 = vpop.f32.mrb[0].mxu0
    %v2883 = vpop.f32.mrb[0].mxu0
    %2884 = vdwg.mxu0
    %v2886 = vsel %vm1662, %v2844, 0
    %2888 = vmatprep.subr.bf16.mxu0 0
    %2889 = vmatpush1.bf16.msra.mxu0 %v1654
    %2890 = vmatprep.subr.bf16.mxu0 0
    %2891 = vmatpush1.bf16.msra.mxu0 %v1655
    %2892 = vmatprep.subr.bf16.mxu0 0
    %2893 = vmatpush1.bf16.msra.mxu0 %v1656
    %2894 = vmatprep.subr.bf16.mxu0 0
    %2895 = vmatpush1.bf16.msra.mxu0 %v1657
    %2896 = vmatprep.subr.bf16.mxu0 0
    %2897 = vmatpush1.bf16.msra.mxu0 0
    %2898 = vmatprep.subr.bf16.mxu0 0
    %2899 = vmatpush1.bf16.msra.mxu0 0
    %2900 = vmatprep.subr.bf16.mxu0 0
    %2901 = vmatpush1.bf16.msra.mxu0 0
    %2902 = vmatprep.subr.bf16.mxu0 0
    %2903 = vmatpush1.bf16.msra.mxu0 0
    %2904 = vmatprep.subr.bf16.mxu0 0
    %2905 = vmatpush1.bf16.msra.mxu0 0
    %2906 = vmatprep.subr.bf16.mxu0 0
    %2907 = vmatpush1.bf16.msra.mxu0 0
    %2908 = vmatprep.subr.bf16.mxu0 0
    %2909 = vmatpush1.bf16.msra.mxu0 0
    %2910 = vmatprep.subr.bf16.mxu0 0
    %2911 = vmatpush1.bf16.msra.mxu0 0
    %2912 = vmatprep.subr.bf16.mxu0 0
    %2913 = vmatpush1.bf16.msra.mxu0 0
    %2914 = vmatprep.subr.bf16.mxu0 0
    %2915 = vmatpush1.bf16.msra.mxu0 0
    %2916 = vmatprep.subr.bf16.mxu0 0
    %2917 = vmatpush1.bf16.msra.mxu0 0
    %2918 = vmatprep.subr.bf16.mxu0 0
    %2919 = vmatpush1.bf16.msra.mxu0 0
    %2920 = vmatprep.mubr.bf16.mxu0 0
    %2921 = vmatmul.mubr.bf16.gmra.mrb[0].mxu0 %v2886
    %v2922 = vpop.f32.mrb[0].mxu0
    %v2923 = vadd.f32 %v2880, %v2922
    %v2924 = vpop.f32.mrb[0].mxu0
    %v2925 = vpop.f32.mrb[0].mxu0
    %v2926 = vpop.f32.mrb[0].mxu0
    %2927 = vdwg.mxu0
    %v2928 = vadd.f32 %v2923, %v1555
    %v2929 = vxor.u32 %v2928, 2147483648
    %v2930 = vmul.f32 %v2929, 1.442695
    %v2931 = vpow.pop %v2930
    %v2932 = vadd.f32 %v2931, 1.0
    %v2933 = vrcp.pop %v2932
    %v2934 = vmul.f32 1.0, %v2933
    %2936 = vrot.lane.b32.xlu0 %v2928, 32
    %v2937 = vpop.permute.xlu0 %2936
    %v2939 = vmul.f32 %v2934, %v2937
    %2941 = vrot.lane.b32.xlu0 %v2939, 64
    %v2942 = vpop.permute.xlu0 %2941
    %v2944 = vadd.f32 %v2928, %v2942
    %v2945 = vtanh.pop %v2944
    %v2946 = vsub.f32 1.0, %v2934
    %2948 = vrot.lane.b32.xlu0 %v2945, 96
    %v2949 = vpop.permute.xlu0 %2948
    %v2951 = vmul.f32 %v2946, %v2949
    %v2952 = vmul.f32 %v2934, %v2581
    %v2953 = vadd.f32 %v2951, %v2952
    %v2954 = vpack.c.bf16 %v2953, %v2953
    %2956 = vrot.lane.b32.xlu0 %v2954, 96
    %v2957 = vpop.permute.xlu0 %2956
    %v2959 = vsel %vm48, %v2957, 0
    %2961 = vmatprep.subr.bf16.mxu0 0
    %2962 = vmatpush1.bf16.msra.mxu0 %v1553
    %2963 = vmatprep.subr.bf16.mxu0 0
    %2964 = vmatpush1.bf16.msra.mxu0 %v1554
    %2965 = vmatprep.subr.bf16.mxu0 0
    %2966 = vmatpush1.bf16.msra.mxu0 0
    %2967 = vmatprep.subr.bf16.mxu0 0
    %2968 = vmatpush1.bf16.msra.mxu0 0
    %2969 = vmatprep.subr.bf16.mxu0 0
    %2970 = vmatpush1.bf16.msra.mxu0 0
    %2971 = vmatprep.subr.bf16.mxu0 0
    %2972 = vmatpush1.bf16.msra.mxu0 0
    %2973 = vmatprep.subr.bf16.mxu0 0
    %2974 = vmatpush1.bf16.msra.mxu0 0
    %2975 = vmatprep.subr.bf16.mxu0 0
    %2976 = vmatpush1.bf16.msra.mxu0 0
    %2977 = vmatprep.subr.bf16.mxu0 0
    %2978 = vmatpush1.bf16.msra.mxu0 0
    %2979 = vmatprep.subr.bf16.mxu0 0
    %2980 = vmatpush1.bf16.msra.mxu0 0
    %2981 = vmatprep.subr.bf16.mxu0 0
    %2982 = vmatpush1.bf16.msra.mxu0 0
    %2983 = vmatprep.subr.bf16.mxu0 0
    %2984 = vmatpush1.bf16.msra.mxu0 0
    %2985 = vmatprep.subr.bf16.mxu0 0
    %2986 = vmatpush1.bf16.msra.mxu0 0
    %2987 = vmatprep.subr.bf16.mxu0 0
    %2988 = vmatpush1.bf16.msra.mxu0 0
    %2989 = vmatprep.subr.bf16.mxu0 0
    %2990 = vmatpush1.bf16.msra.mxu0 0
    %2991 = vmatprep.subr.bf16.mxu0 0
    %2992 = vmatpush1.bf16.msra.mxu0 0
    %2993 = vmatprep.mubr.bf16.mxu0 0
    %2994 = vmatmul.mubr.bf16.gmra.mrb[0].mxu0 %v2959
    %v2995 = vpop.f32.mrb[0].mxu0
    %v2996 = vadd.f32 0.0, %v2995
    %v2997 = vpop.f32.mrb[0].mxu0
    %v2998 = vpop.f32.mrb[0].mxu0
    %v2999 = vpop.f32.mrb[0].mxu0
    %3000 = vdwg.mxu0
    %v3001 = vsel %vm1782, %v2996, -inf
    %3002 = vmax.xlane.f32.xlu0 %v3001
    %v3003 = vpop.xlane.xlu0 %3002
    %v3004 = vsub.f32 %v2996, %v3003
    %v3005 = vmul.f32 %v3004, 1.442695
    %v3006 = vpow.pop %v3005
    %v3007 = vsel %vm1782, %v3006, 0.0
    %3008 = vadd.xlane.f32.xlu0 %v3007
    %v3009 = vpop.xlane.xlu0 %3008
    %v3010 = vrcp.pop %v3009
    %v3011 = vmul.f32 %v3006, %v3010
    %v3012 = vpack.c.bf16 %v3011, %v3011
    %v3014 = vsel %vm1798, %v3012, 0
    %3016 = vmatprep.subr.bf16.mxu0 0
    %3017 = vmatpush1.bf16.msra.mxu0 %v1803
    %3018 = vmatprep.subr.bf16.mxu0 0
    %3019 = vmatpush1.bf16.msra.mxu0 0
    %3020 = vmatprep.subr.bf16.mxu0 0
    %3021 = vmatpush1.bf16.msra.mxu0 0
    %3022 = vmatprep.subr.bf16.mxu0 0
    %3023 = vmatpush1.bf16.msra.mxu0 0
    %3024 = vmatprep.subr.bf16.mxu0 0
    %3025 = vmatpush1.bf16.msra.mxu0 0
    %3026 = vmatprep.subr.bf16.mxu0 0
    %3027 = vmatpush1.bf16.msra.mxu0 0
    %3028 = vmatprep.subr.bf16.mxu0 0
    %3029 = vmatpush1.bf16.msra.mxu0 0
    %3030 = vmatprep.subr.bf16.mxu0 0
    %3031 = vmatpush1.bf16.msra.mxu0 0
    %3032 = vmatprep.subr.bf16.mxu0 0
    %3033 = vmatpush1.bf16.msra.mxu0 0
    %3034 = vmatprep.subr.bf16.mxu0 0
    %3035 = vmatpush1.bf16.msra.mxu0 0
    %3036 = vmatprep.subr.bf16.mxu0 0
    %3037 = vmatpush1.bf16.msra.mxu0 0
    %3038 = vmatprep.subr.bf16.mxu0 0
    %3039 = vmatpush1.bf16.msra.mxu0 0
    %3040 = vmatprep.subr.bf16.mxu0 0
    %3041 = vmatpush1.bf16.msra.mxu0 0
    %3042 = vmatprep.subr.bf16.mxu0 0
    %3043 = vmatpush1.bf16.msra.mxu0 0
    %3044 = vmatprep.subr.bf16.mxu0 0
    %3045 = vmatpush1.bf16.msra.mxu0 0
    %3046 = vmatprep.subr.bf16.mxu0 0
    %3047 = vmatpush1.bf16.msra.mxu0 0
    %3048 = vmatprep.mubr.bf16.mxu0 0
    %3049 = vmatmul.mubr.bf16.gmra.mrb[0].mxu0 %v3014
    %v3050 = vpop.f32.mrb[0].mxu0
    %v3051 = vadd.f32 0.0, %v3050
    %v3052 = vpop.f32.mrb[0].mxu0
    %v3053 = vpop.f32.mrb[0].mxu0
    %v3054 = vpop.f32.mrb[0].mxu0
    %3055 = vdwg.mxu0
    %v3056 = vpack.c.bf16 %v3051, %v3051
    %v3058 = vsel %vm48, %v3056, 0
    %3060 = vmatprep.subr.bf16.mxu0 0
    %3061 = vmatpush1.bf16.msra.mxu0 %v1862
    %3062 = vmatprep.subr.bf16.mxu0 0
    %3063 = vmatpush1.bf16.msra.mxu0 %v1863
    %3064 = vmatprep.subr.bf16.mxu0 0
    %3065 = vmatpush1.bf16.msra.mxu0 0
    %3066 = vmatprep.subr.bf16.mxu0 0
    %3067 = vmatpush1.bf16.msra.mxu0 0
    %3068 = vmatprep.subr.bf16.mxu0 0
    %3069 = vmatpush1.bf16.msra.mxu0 0
    %3070 = vmatprep.subr.bf16.mxu0 0
    %3071 = vmatpush1.bf16.msra.mxu0 0
    %3072 = vmatprep.subr.bf16.mxu0 0
    %3073 = vmatpush1.bf16.msra.mxu0 0
    %3074 = vmatprep.subr.bf16.mxu0 0
    %3075 = vmatpush1.bf16.msra.mxu0 0
    %3076 = vmatprep.subr.bf16.mxu0 0
    %3077 = vmatpush1.bf16.msra.mxu0 0
    %3078 = vmatprep.subr.bf16.mxu0 0
    %3079 = vmatpush1.bf16.msra.mxu0 0
    %3080 = vmatprep.subr.bf16.mxu0 0
    %3081 = vmatpush1.bf16.msra.mxu0 0
    %3082 = vmatprep.subr.bf16.mxu0 0
    %3083 = vmatpush1.bf16.msra.mxu0 0
    %3084 = vmatprep.subr.bf16.mxu0 0
    %3085 = vmatpush1.bf16.msra.mxu0 0
    %3086 = vmatprep.subr.bf16.mxu0 0
    %3087 = vmatpush1.bf16.msra.mxu0 0
    %3088 = vmatprep.subr.bf16.mxu0 0
    %3089 = vmatpush1.bf16.msra.mxu0 0
    %3090 = vmatprep.subr.bf16.mxu0 0
    %3091 = vmatpush1.bf16.msra.mxu0 0
    %3092 = vmatprep.mubr.bf16.mxu0 0
    %3093 = vmatmul.mubr.bf16.gmra.mrb[0].mxu0 %v3058
    %v3094 = vpop.f32.mrb[0].mxu0
    %v3095 = vadd.f32 0.0, %v3094
    %v3096 = vpop.f32.mrb[0].mxu0
    %v3097 = vpop.f32.mrb[0].mxu0
    %v3098 = vpop.f32.mrb[0].mxu0
    %3099 = vdwg.mxu0
    %3100 = vmatprep.subr.bf16.mxu0 0
    %3101 = vmatpush1.bf16.msra.mxu0 %v1917
    %3102 = vmatprep.subr.bf16.mxu0 0
    %3103 = vmatpush1.bf16.msra.mxu0 %v1918
    %3104 = vmatprep.subr.bf16.mxu0 0
    %3105 = vmatpush1.bf16.msra.mxu0 0
    %3106 = vmatprep.subr.bf16.mxu0 0
    %3107 = vmatpush1.bf16.msra.mxu0 0
    %3108 = vmatprep.subr.bf16.mxu0 0
    %3109 = vmatpush1.bf16.msra.mxu0 0
    %3110 = vmatprep.subr.bf16.mxu0 0
    %3111 = vmatpush1.bf16.msra.mxu0 0
    %3112 = vmatprep.subr.bf16.mxu0 0
    %3113 = vmatpush1.bf16.msra.mxu0 0
    %3114 = vmatprep.subr.bf16.mxu0 0
    %3115 = vmatpush1.bf16.msra.mxu0 0
    %3116 = vmatprep.subr.bf16.mxu0 0
    %3117 = vmatpush1.bf16.msra.mxu0 0
    %3118 = vmatprep.subr.bf16.mxu0 0
    %3119 = vmatpush1.bf16.msra.mxu0 0
    %3120 = vmatprep.subr.bf16.mxu0 0
    %3121 = vmatpush1.bf16.msra.mxu0 0
    %3122 = vmatprep.subr.bf16.mxu0 0
    %3123 = vmatpush1.bf16.msra.mxu0 0
    %3124 = vmatprep.subr.bf16.mxu0 0
    %3125 = vmatpush1.bf16.msra.mxu0 0
    %3126 = vmatprep.subr.bf16.mxu0 0
    %3127 = vmatpush1.bf16.msra.mxu0 0
    %3128 = vmatprep.subr.bf16.mxu0 0
    %3129 = vmatpush1.bf16.msra.mxu0 0
    %3130 = vmatprep.subr.bf16.mxu0 0
    %3131 = vmatpush1.bf16.msra.mxu0 0
    %3132 = vmatprep.mubr.bf16.mxu0 0
    %3133 = vmatmul.mubr.bf16.gmra.mrb[0].mxu0 %v2959
    %v3134 = vpop.f32.mrb[0].mxu0
    %v3135 = vadd.f32 %v3095, %v3134
    %v3136 = vpop.f32.mrb[0].mxu0
    %v3137 = vpop.f32.mrb[0].mxu0
    %v3138 = vpop.f32.mrb[0].mxu0
    %3139 = vdwg.mxu0
    %v3140 = vadd.f32 %v3135, %v1556
    %v3141 = vtanh.pop %v3140
    %v3142 = vpack.c.bf16 %v3141, %v3141
    %3143 = vmatprep.subr.bf16.mxu0 0
    %3144 = vmatpush1.bf16.msra.mxu0 %v2012
    %3145 = vmatprep.subr.bf16.mxu0 0
    %3146 = vmatpush1.bf16.msra.mxu0 %v2013
    %3147 = vmatprep.subr.bf16.mxu0 0
    %3148 = vmatpush1.bf16.msra.mxu0 %v2014
    %3149 = vmatprep.subr.bf16.mxu0 0
    %3150 = vmatpush1.bf16.msra.mxu0 %v2015
    %3151 = vmatprep.subr.bf16.mxu0 0
    %3152 = vmatpush1.bf16.msra.mxu0 %v2016
    %3153 = vmatprep.subr.bf16.mxu0 0
    %3154 = vmatpush1.bf16.msra.mxu0 %v2017
    %3155 = vmatprep.subr.bf16.mxu0 0
    %3156 = vmatpush1.bf16.msra.mxu0 %v2018
    %3157 = vmatprep.subr.bf16.mxu0 0
    %3158 = vmatpush1.bf16.msra.mxu0 %v2019
    %3159 = vmatprep.subr.bf16.mxu0 0
    %3160 = vmatpush1.bf16.msra.mxu0 0
    %3161 = vmatprep.subr.bf16.mxu0 0
    %3162 = vmatpush1.bf16.msra.mxu0 0
    %3163 = vmatprep.subr.bf16.mxu0 0
    %3164 = vmatpush1.bf16.msra.mxu0 0
    %3165 = vmatprep.subr.bf16.mxu0 0
    %3166 = vmatpush1.bf16.msra.mxu0 0
    %3167 = vmatprep.subr.bf16.mxu0 0
    %3168 = vmatpush1.bf16.msra.mxu0 0
    %3169 = vmatprep.subr.bf16.mxu0 0
    %3170 = vmatpush1.bf16.msra.mxu0 0
    %3171 = vmatprep.subr.bf16.mxu0 0
    %3172 = vmatpush1.bf16.msra.mxu0 0
    %3173 = vmatprep.subr.bf16.mxu0 0
    %3174 = vmatpush1.bf16.msra.mxu0 0
    %3175 = vmatprep.mubr.bf16.mxu0 0
    %3176 = vmatmul.mubr.bf16.gmra.mrb[0].mxu0 %v3142
    %v3177 = vpop.f32.mrb[0].mxu0
    %v3178 = vadd.f32 %v1557, %v3177
    %v3179 = vpop.f32.mrb[0].mxu0
    %v3180 = vpop.f32.mrb[0].mxu0
    %v3181 = vpop.f32.mrb[0].mxu0
    %3182 = vdwg.mxu0
    %v3183 = vsel %vm1494, %v3178, -inf
    %3184 = vmax.xlane.f32.xlu0 %v3183
    %v3185 = vpop.xlane.xlu0 %3184
    %v3186 = vsub.f32 %v3178, %v3185
    %v3187 = vmul.f32 %v3186, 1.442695
    %v3188 = vpow.pop %v3187
    %v3189 = vsel %vm1494, %v3188, 0.0
    %3190 = vadd.xlane.f32.xlu0 %v3189
    %v3191 = vpop.xlane.xlu0 %3190
    %v3192 = vrcp.pop %v3191
    %vm3193 = vcmp.ge.f32.partialorder %v3178, %v3185
    %v3194 = vsel %vm3193, %v1559, 128
    %v3195 = vsel %vm1494, %v3194, 2147483647
    %v3196 = vand.u32 %v3195, 65535
    %v3197 = vshra.s32 %v3195, 16
    %v3198 = vcvt.s32.f32 %v3196
    %v3199 = vcvt.s32.f32 %v3197
    %3200 = vmin.xlane.f32.xlu0 %v3199
    %v3201 = vpop.xlane.xlu0 %3200
    %vm3202 = vcmp.eq.f32.partialorder %v3199, %v3201
    %v3203 = vsel %vm3202, %v3198, inf
    %3204 = vmin.xlane.f32.xlu0 %v3203
    %v3205 = vpop.xlane.xlu0 %3204
    %v3206 = vcvt.f32.s32 %v3205
    %v3207 = vcvt.f32.s32 %v3201
    %v3208 = vshll.u32 %v3207, 16
    %v3209 = vadd.s32 %v3208, %v3206
    %vm3210 = vcmp.eq.s32.totalorder %v1559, 3
    %v3211 = vsel %vm3210, %v3209, %v2839
    %v3212 = vsel %vm3210, %v3192, %v2840
    %vm3213 = vcmp.eq.s32.totalorder %v1559, %v3209
    %v3214 = vsel %vm3213, 1, 0
    %v3215 = vcvt.s32.f32 %v3214
    %v3216 = vpack.c.bf16 %v3215, %v3215
    %3217 = vmatprep.subr.bf16.mxu0 0
    %3218 = vmatpush1.bf16.msra.mxu0 %v1591
    %3219 = vmatprep.subr.bf16.mxu0 0
    %3220 = vmatpush1.bf16.msra.mxu0 %v1592
    %3221 = vmatprep.subr.bf16.mxu0 0
    %3222 = vmatpush1.bf16.msra.mxu0 0
    %3223 = vmatprep.subr.bf16.mxu0 0
    %3224 = vmatpush1.bf16.msra.mxu0 0
    %3225 = vmatprep.subr.bf16.mxu0 0
    %3226 = vmatpush1.bf16.msra.mxu0 0
    %3227 = vmatprep.subr.bf16.mxu0 0
    %3228 = vmatpush1.bf16.msra.mxu0 0
    %3229 = vmatprep.subr.bf16.mxu0 0
    %3230 = vmatpush1.bf16.msra.mxu0 0
    %3231 = vmatprep.subr.bf16.mxu0 0
    %3232 = vmatpush1.bf16.msra.mxu0 0
    %3233 = vmatprep.subr.bf16.mxu0 0
    %3234 = vmatpush1.bf16.msra.mxu0 0
    %3235 = vmatprep.subr.bf16.mxu0 0
    %3236 = vmatpush1.bf16.msra.mxu0 0
    %3237 = vmatprep.subr.bf16.mxu0 0
    %3238 = vmatpush1.bf16.msra.mxu0 0
    %3239 = vmatprep.subr.bf16.mxu0 0
    %3240 = vmatpush1.bf16.msra.mxu0 0
    %3241 = vmatprep.subr.bf16.mxu0 0
    %3242 = vmatpush1.bf16.msra.mxu0 0
    %3243 = vmatprep.subr.bf16.mxu0 0
    %3244 = vmatpush1.bf16.msra.mxu0 0
    %3245 = vmatprep.subr.bf16.mxu0 0
    %3246 = vmatpush1.bf16.msra.mxu0 0
    %3247 = vmatprep.subr.bf16.mxu0 0
    %3248 = vmatpush1.bf16.msra.mxu0 0
    %3249 = vmatprep.mubr.bf16.mxu0 0
    %3250 = vmatmul.mubr.bf16.gmra.mrb[0].mxu0 %v2959
    %v3251 = vpop.f32.mrb[0].mxu0
    %v3252 = vadd.f32 0.0, %v3251
    %v3253 = vpop.f32.mrb[0].mxu0
    %v3254 = vpop.f32.mrb[0].mxu0
    %v3255 = vpop.f32.mrb[0].mxu0
    %3256 = vdwg.mxu0
    %v3258 = vsel %vm1662, %v3216, 0
    %3260 = vmatprep.subr.bf16.mxu0 0
    %3261 = vmatpush1.bf16.msra.mxu0 %v1654
    %3262 = vmatprep.subr.bf16.mxu0 0
    %3263 = vmatpush1.bf16.msra.mxu0 %v1655
    %3264 = vmatprep.subr.bf16.mxu0 0
    %3265 = vmatpush1.bf16.msra.mxu0 %v1656
    %3266 = vmatprep.subr.bf16.mxu0 0
    %3267 = vmatpush1.bf16.msra.mxu0 %v1657
    %3268 = vmatprep.subr.bf16.mxu0 0
    %3269 = vmatpush1.bf16.msra.mxu0 0
    %3270 = vmatprep.subr.bf16.mxu0 0
    %3271 = vmatpush1.bf16.msra.mxu0 0
    %3272 = vmatprep.subr.bf16.mxu0 0
    %3273 = vmatpush1.bf16.msra.mxu0 0
    %3274 = vmatprep.subr.bf16.mxu0 0
    %3275 = vmatpush1.bf16.msra.mxu0 0
    %3276 = vmatprep.subr.bf16.mxu0 0
    %3277 = vmatpush1.bf16.msra.mxu0 0
    %3278 = vmatprep.subr.bf16.mxu0 0
    %3279 = vmatpush1.bf16.msra.mxu0 0
    %3280 = vmatprep.subr.bf16.mxu0 0
    %3281 = vmatpush1.bf16.msra.mxu0 0
    %3282 = vmatprep.subr.bf16.mxu0 0
    %3283 = vmatpush1.bf16.msra.mxu0 0
    %3284 = vmatprep.subr.bf16.mxu0 0
    %3285 = vmatpush1.bf16.msra.mxu0 0
    %3286 = vmatprep.subr.bf16.mxu0 0
    %3287 = vmatpush1.bf16.msra.mxu0 0
    %3288 = vmatprep.subr.bf16.mxu0 0
    %3289 = vmatpush1.bf16.msra.mxu0 0
    %3290 = vmatprep.subr.bf16.mxu0 0
    %3291 = vmatpush1.bf16.msra.mxu0 0
    %3292 = vmatprep.mubr.bf16.mxu0 0
    %3293 = vmatmul.mubr.bf16.gmra.mrb[0].mxu0 %v3258
    %v3294 = vpop.f32.mrb[0].mxu0
    %v3295 = vadd.f32 %v3252, %v3294
    %v3296 = vpop.f32.mrb[0].mxu0
    %v3297 = vpop.f32.mrb[0].mxu0
    %v3298 = vpop.f32.mrb[0].mxu0
    %3299 = vdwg.mxu0
    %v3300 = vadd.f32 %v3295, %v1555
    %v3301 = vxor.u32 %v3300, 2147483648
    %v3302 = vmul.f32 %v3301, 1.442695
    %v3303 = vpow.pop %v3302
    %v3304 = vadd.f32 %v3303, 1.0
    %v3305 = vrcp.pop %v3304
    %v3306 = vmul.f32 1.0, %v3305
    %3308 = vrot.lane.b32.xlu0 %v3300, 32
    %v3309 = vpop.permute.xlu0 %3308
    %v3311 = vmul.f32 %v3306, %v3309
    %3313 = vrot.lane.b32.xlu0 %v3311, 64
    %v3314 = vpop.permute.xlu0 %3313
    %v3316 = vadd.f32 %v3300, %v3314
    %v3317 = vtanh.pop %v3316
    %v3318 = vsub.f32 1.0, %v3306
    %3320 = vrot.lane.b32.xlu0 %v3317, 96
    %v3321 = vpop.permute.xlu0 %3320
    %v3323 = vmul.f32 %v3318, %v3321
    %v3324 = vmul.f32 %v3306, %v2953
    %v3325 = vadd.f32 %v3323, %v3324
    %v3326 = vpack.c.bf16 %v3325, %v3325
    %3328 = vrot.lane.b32.xlu0 %v3326, 96
    %v3329 = vpop.permute.xlu0 %3328
    %v3331 = vsel %vm48, %v3329, 0
    %3333 = vmatprep.subr.bf16.mxu0 0
    %3334 = vmatpush1.bf16.msra.mxu0 %v1553
    %3335 = vmatprep.subr.bf16.mxu0 0
    %3336 = vmatpush1.bf16.msra.mxu0 %v1554
    %3337 = vmatprep.subr.bf16.mxu0 0
    %3338 = vmatpush1.bf16.msra.mxu0 0
    %3339 = vmatprep.subr.bf16.mxu0 0
    %3340 = vmatpush1.bf16.msra.mxu0 0
    %3341 = vmatprep.subr.bf16.mxu0 0
    %3342 = vmatpush1.bf16.msra.mxu0 0
    %3343 = vmatprep.subr.bf16.mxu0 0
    %3344 = vmatpush1.bf16.msra.mxu0 0
    %3345 = vmatprep.subr.bf16.mxu0 0
    %3346 = vmatpush1.bf16.msra.mxu0 0
    %3347 = vmatprep.subr.bf16.mxu0 0
    %3348 = vmatpush1.bf16.msra.mxu0 0
    %3349 = vmatprep.subr.bf16.mxu0 0
    %3350 = vmatpush1.bf16.msra.mxu0 0
    %3351 = vmatprep.subr.bf16.mxu0 0
    %3352 = vmatpush1.bf16.msra.mxu0 0
    %3353 = vmatprep.subr.bf16.mxu0 0
    %3354 = vmatpush1.bf16.msra.mxu0 0
    %3355 = vmatprep.subr.bf16.mxu0 0
    %3356 = vmatpush1.bf16.msra.mxu0 0
    %3357 = vmatprep.subr.bf16.mxu0 0
    %3358 = vmatpush1.bf16.msra.mxu0 0
    %3359 = vmatprep.subr.bf16.mxu0 0
    %3360 = vmatpush1.bf16.msra.mxu0 0
    %3361 = vmatprep.subr.bf16.mxu0 0
    %3362 = vmatpush1.bf16.msra.mxu0 0
    %3363 = vmatprep.subr.bf16.mxu0 0
    %3364 = vmatpush1.bf16.msra.mxu0 0
    %3365 = vmatprep.mubr.bf16.mxu0 0
    %3366 = vmatmul.mubr.bf16.gmra.mrb[0].mxu0 %v3331
    %v3367 = vpop.f32.mrb[0].mxu0
    %v3368 = vadd.f32 0.0, %v3367
    %v3369 = vpop.f32.mrb[0].mxu0
    %v3370 = vpop.f32.mrb[0].mxu0
    %v3371 = vpop.f32.mrb[0].mxu0
    %3372 = vdwg.mxu0
    %v3373 = vsel %vm1782, %v3368, -inf
    %3374 = vmax.xlane.f32.xlu0 %v3373
    %v3375 = vpop.xlane.xlu0 %3374
    %v3376 = vsub.f32 %v3368, %v3375
    %v3377 = vmul.f32 %v3376, 1.442695
    %v3378 = vpow.pop %v3377
    %v3379 = vsel %vm1782, %v3378, 0.0
    %3380 = vadd.xlane.f32.xlu0 %v3379
    %v3381 = vpop.xlane.xlu0 %3380
    %v3382 = vrcp.pop %v3381
    %v3383 = vmul.f32 %v3378, %v3382
    %v3384 = vpack.c.bf16 %v3383, %v3383
    %v3386 = vsel %vm1798, %v3384, 0
    %3388 = vmatprep.subr.bf16.mxu0 0
    %3389 = vmatpush1.bf16.msra.mxu0 %v1803
    %3390 = vmatprep.subr.bf16.mxu0 0
    %3391 = vmatpush1.bf16.msra.mxu0 0
    %3392 = vmatprep.subr.bf16.mxu0 0
    %3393 = vmatpush1.bf16.msra.mxu0 0
    %3394 = vmatprep.subr.bf16.mxu0 0
    %3395 = vmatpush1.bf16.msra.mxu0 0
    %3396 = vmatprep.subr.bf16.mxu0 0
    %3397 = vmatpush1.bf16.msra.mxu0 0
    %3398 = vmatprep.subr.bf16.mxu0 0
    %3399 = vmatpush1.bf16.msra.mxu0 0
    %3400 = vmatprep.subr.bf16.mxu0 0
    %3401 = vmatpush1.bf16.msra.mxu0 0
    %3402 = vmatprep.subr.bf16.mxu0 0
    %3403 = vmatpush1.bf16.msra.mxu0 0
    %3404 = vmatprep.subr.bf16.mxu0 0
    %3405 = vmatpush1.bf16.msra.mxu0 0
    %3406 = vmatprep.subr.bf16.mxu0 0
    %3407 = vmatpush1.bf16.msra.mxu0 0
    %3408 = vmatprep.subr.bf16.mxu0 0
    %3409 = vmatpush1.bf16.msra.mxu0 0
    %3410 = vmatprep.subr.bf16.mxu0 0
    %3411 = vmatpush1.bf16.msra.mxu0 0
    %3412 = vmatprep.subr.bf16.mxu0 0
    %3413 = vmatpush1.bf16.msra.mxu0 0
    %3414 = vmatprep.subr.bf16.mxu0 0
    %3415 = vmatpush1.bf16.msra.mxu0 0
    %3416 = vmatprep.subr.bf16.mxu0 0
    %3417 = vmatpush1.bf16.msra.mxu0 0
    %3418 = vmatprep.subr.bf16.mxu0 0
    %3419 = vmatpush1.bf16.msra.mxu0 0
    %3420 = vmatprep.mubr.bf16.mxu0 0
    %3421 = vmatmul.mubr.bf16.gmra.mrb[0].mxu0 %v3386
    %v3422 = vpop.f32.mrb[0].mxu0
    %v3423 = vadd.f32 0.0, %v3422
    %v3424 = vpop.f32.mrb[0].mxu0
    %v3425 = vpop.f32.mrb[0].mxu0
    %v3426 = vpop.f32.mrb[0].mxu0
    %3427 = vdwg.mxu0
    %v3428 = vpack.c.bf16 %v3423, %v3423
    %v3430 = vsel %vm48, %v3428, 0
    %3432 = vmatprep.subr.bf16.mxu0 0
    %3433 = vmatpush1.bf16.msra.mxu0 %v1862
    %3434 = vmatprep.subr.bf16.mxu0 0
    %3435 = vmatpush1.bf16.msra.mxu0 %v1863
    %3436 = vmatprep.subr.bf16.mxu0 0
    %3437 = vmatpush1.bf16.msra.mxu0 0
    %3438 = vmatprep.subr.bf16.mxu0 0
    %3439 = vmatpush1.bf16.msra.mxu0 0
    %3440 = vmatprep.subr.bf16.mxu0 0
    %3441 = vmatpush1.bf16.msra.mxu0 0
    %3442 = vmatprep.subr.bf16.mxu0 0
    %3443 = vmatpush1.bf16.msra.mxu0 0
    %3444 = vmatprep.subr.bf16.mxu0 0
    %3445 = vmatpush1.bf16.msra.mxu0 0
    %3446 = vmatprep.subr.bf16.mxu0 0
    %3447 = vmatpush1.bf16.msra.mxu0 0
    %3448 = vmatprep.subr.bf16.mxu0 0
    %3449 = vmatpush1.bf16.msra.mxu0 0
    %3450 = vmatprep.subr.bf16.mxu0 0
    %3451 = vmatpush1.bf16.msra.mxu0 0
    %3452 = vmatprep.subr.bf16.mxu0 0
    %3453 = vmatpush1.bf16.msra.mxu0 0
    %3454 = vmatprep.subr.bf16.mxu0 0
    %3455 = vmatpush1.bf16.msra.mxu0 0
    %3456 = vmatprep.subr.bf16.mxu0 0
    %3457 = vmatpush1.bf16.msra.mxu0 0
    %3458 = vmatprep.subr.bf16.mxu0 0
    %3459 = vmatpush1.bf16.msra.mxu0 0
    %3460 = vmatprep.subr.bf16.mxu0 0
    %3461 = vmatpush1.bf16.msra.mxu0 0
    %3462 = vmatprep.subr.bf16.mxu0 0
    %3463 = vmatpush1.bf16.msra.mxu0 0
    %3464 = vmatprep.mubr.bf16.mxu0 0
    %3465 = vmatmul.mubr.bf16.gmra.mrb[0].mxu0 %v3430
    %v3466 = vpop.f32.mrb[0].mxu0
    %v3467 = vadd.f32 0.0, %v3466
    %v3468 = vpop.f32.mrb[0].mxu0
    %v3469 = vpop.f32.mrb[0].mxu0
    %v3470 = vpop.f32.mrb[0].mxu0
    %3471 = vdwg.mxu0
    %3472 = vmatprep.subr.bf16.mxu0 0
    %3473 = vmatpush1.bf16.msra.mxu0 %v1917
    %3474 = vmatprep.subr.bf16.mxu0 0
    %3475 = vmatpush1.bf16.msra.mxu0 %v1918
    %3476 = vmatprep.subr.bf16.mxu0 0
    %3477 = vmatpush1.bf16.msra.mxu0 0
    %3478 = vmatprep.subr.bf16.mxu0 0
    %3479 = vmatpush1.bf16.msra.mxu0 0
    %3480 = vmatprep.subr.bf16.mxu0 0
    %3481 = vmatpush1.bf16.msra.mxu0 0
    %3482 = vmatprep.subr.bf16.mxu0 0
    %3483 = vmatpush1.bf16.msra.mxu0 0
    %3484 = vmatprep.subr.bf16.mxu0 0
    %3485 = vmatpush1.bf16.msra.mxu0 0
    %3486 = vmatprep.subr.bf16.mxu0 0
    %3487 = vmatpush1.bf16.msra.mxu0 0
    %3488 = vmatprep.subr.bf16.mxu0 0
    %3489 = vmatpush1.bf16.msra.mxu0 0
    %3490 = vmatprep.subr.bf16.mxu0 0
    %3491 = vmatpush1.bf16.msra.mxu0 0
    %3492 = vmatprep.subr.bf16.mxu0 0
    %3493 = vmatpush1.bf16.msra.mxu0 0
    %3494 = vmatprep.subr.bf16.mxu0 0
    %3495 = vmatpush1.bf16.msra.mxu0 0
    %3496 = vmatprep.subr.bf16.mxu0 0
    %3497 = vmatpush1.bf16.msra.mxu0 0
    %3498 = vmatprep.subr.bf16.mxu0 0
    %3499 = vmatpush1.bf16.msra.mxu0 0
    %3500 = vmatprep.subr.bf16.mxu0 0
    %3501 = vmatpush1.bf16.msra.mxu0 0
    %3502 = vmatprep.subr.bf16.mxu0 0
    %3503 = vmatpush1.bf16.msra.mxu0 0
    %3504 = vmatprep.mubr.bf16.mxu0 0
    %3505 = vmatmul.mubr.bf16.gmra.mrb[0].mxu0 %v3331
    %v3506 = vpop.f32.mrb[0].mxu0
    %v3507 = vadd.f32 %v3467, %v3506
    %v3508 = vpop.f32.mrb[0].mxu0
    %v3509 = vpop.f32.mrb[0].mxu0
    %v3510 = vpop.f32.mrb[0].mxu0
    %3511 = vdwg.mxu0
    %v3512 = vadd.f32 %v3507, %v1556
    %v3513 = vtanh.pop %v3512
    %v3514 = vpack.c.bf16 %v3513, %v3513
    %3515 = vmatprep.subr.bf16.mxu0 0
    %3516 = vmatpush1.bf16.msra.mxu0 %v2012
    %3517 = vmatprep.subr.bf16.mxu0 0
    %3518 = vmatpush1.bf16.msra.mxu0 %v2013
    %3519 = vmatprep.subr.bf16.mxu0 0
    %3520 = vmatpush1.bf16.msra.mxu0 %v2014
    %3521 = vmatprep.subr.bf16.mxu0 0
    %3522 = vmatpush1.bf16.msra.mxu0 %v2015
    %3523 = vmatprep.subr.bf16.mxu0 0
    %3524 = vmatpush1.bf16.msra.mxu0 %v2016
    %3525 = vmatprep.subr.bf16.mxu0 0
    %3526 = vmatpush1.bf16.msra.mxu0 %v2017
    %3527 = vmatprep.subr.bf16.mxu0 0
    %3528 = vmatpush1.bf16.msra.mxu0 %v2018
    %3529 = vmatprep.subr.bf16.mxu0 0
    %3530 = vmatpush1.bf16.msra.mxu0 %v2019
    %3531 = vmatprep.subr.bf16.mxu0 0
    %3532 = vmatpush1.bf16.msra.mxu0 0
    %3533 = vmatprep.subr.bf16.mxu0 0
    %3534 = vmatpush1.bf16.msra.mxu0 0
    %3535 = vmatprep.subr.bf16.mxu0 0
    %3536 = vmatpush1.bf16.msra.mxu0 0
    %3537 = vmatprep.subr.bf16.mxu0 0
    %3538 = vmatpush1.bf16.msra.mxu0 0
    %3539 = vmatprep.subr.bf16.mxu0 0
    %3540 = vmatpush1.bf16.msra.mxu0 0
    %3541 = vmatprep.subr.bf16.mxu0 0
    %3542 = vmatpush1.bf16.msra.mxu0 0
    %3543 = vmatprep.subr.bf16.mxu0 0
    %3544 = vmatpush1.bf16.msra.mxu0 0
    %3545 = vmatprep.subr.bf16.mxu0 0
    %3546 = vmatpush1.bf16.msra.mxu0 0
    %3547 = vmatprep.mubr.bf16.mxu0 0
    %3548 = vmatmul.mubr.bf16.gmra.mrb[0].mxu0 %v3514
    %v3549 = vpop.f32.mrb[0].mxu0
    %v3550 = vadd.f32 %v1557, %v3549
    %v3551 = vpop.f32.mrb[0].mxu0
    %v3552 = vpop.f32.mrb[0].mxu0
    %v3553 = vpop.f32.mrb[0].mxu0
    %3554 = vdwg.mxu0
    %v3555 = vsel %vm1494, %v3550, -inf
    %3556 = vmax.xlane.f32.xlu0 %v3555
    %v3557 = vpop.xlane.xlu0 %3556
    %v3558 = vsub.f32 %v3550, %v3557
    %v3559 = vmul.f32 %v3558, 1.442695
    %v3560 = vpow.pop %v3559
    %v3561 = vsel %vm1494, %v3560, 0.0
    %3562 = vadd.xlane.f32.xlu0 %v3561
    %v3563 = vpop.xlane.xlu0 %3562
    %v3564 = vrcp.pop %v3563
    %vm3565 = vcmp.ge.f32.partialorder %v3550, %v3557
    %v3566 = vsel %vm3565, %v1559, 128
    %v3567 = vsel %vm1494, %v3566, 2147483647
    %v3568 = vand.u32 %v3567, 65535
    %v3569 = vshra.s32 %v3567, 16
    %v3570 = vcvt.s32.f32 %v3568
    %v3571 = vcvt.s32.f32 %v3569
    %3572 = vmin.xlane.f32.xlu0 %v3571
    %v3573 = vpop.xlane.xlu0 %3572
    %vm3574 = vcmp.eq.f32.partialorder %v3571, %v3573
    %v3575 = vsel %vm3574, %v3570, inf
    %3576 = vmin.xlane.f32.xlu0 %v3575
    %v3577 = vpop.xlane.xlu0 %3576
    %v3578 = vcvt.f32.s32 %v3577
    %v3579 = vcvt.f32.s32 %v3573
    %v3580 = vshll.u32 %v3579, 16
    %v3581 = vadd.s32 %v3580, %v3578
    %vm3582 = vcmp.eq.s32.totalorder %v1559, 4
    %v3583 = vsel %vm3582, %v3581, %v3211
    %v3584 = vsel %vm3582, %v3564, %v3212
    %vm3585 = vcmp.eq.s32.totalorder %v1559, %v3581
    %v3586 = vsel %vm3585, 1, 0
    %v3587 = vcvt.s32.f32 %v3586
    %v3588 = vpack.c.bf16 %v3587, %v3587
    %3589 = vmatprep.subr.bf16.mxu0 0
    %3590 = vmatpush1.bf16.msra.mxu0 %v1591
    %3591 = vmatprep.subr.bf16.mxu0 0
    %3592 = vmatpush1.bf16.msra.mxu0 %v1592
    %3593 = vmatprep.subr.bf16.mxu0 0
    %3594 = vmatpush1.bf16.msra.mxu0 0
    %3595 = vmatprep.subr.bf16.mxu0 0
    %3596 = vmatpush1.bf16.msra.mxu0 0
    %3597 = vmatprep.subr.bf16.mxu0 0
    %3598 = vmatpush1.bf16.msra.mxu0 0
    %3599 = vmatprep.subr.bf16.mxu0 0
    %3600 = vmatpush1.bf16.msra.mxu0 0
    %3601 = vmatprep.subr.bf16.mxu0 0
    %3602 = vmatpush1.bf16.msra.mxu0 0
    %3603 = vmatprep.subr.bf16.mxu0 0
    %3604 = vmatpush1.bf16.msra.mxu0 0
    %3605 = vmatprep.subr.bf16.mxu0 0
    %3606 = vmatpush1.bf16.msra.mxu0 0
    %3607 = vmatprep.subr.bf16.mxu0 0
    %3608 = vmatpush1.bf16.msra.mxu0 0
    %3609 = vmatprep.subr.bf16.mxu0 0
    %3610 = vmatpush1.bf16.msra.mxu0 0
    %3611 = vmatprep.subr.bf16.mxu0 0
    %3612 = vmatpush1.bf16.msra.mxu0 0
    %3613 = vmatprep.subr.bf16.mxu0 0
    %3614 = vmatpush1.bf16.msra.mxu0 0
    %3615 = vmatprep.subr.bf16.mxu0 0
    %3616 = vmatpush1.bf16.msra.mxu0 0
    %3617 = vmatprep.subr.bf16.mxu0 0
    %3618 = vmatpush1.bf16.msra.mxu0 0
    %3619 = vmatprep.subr.bf16.mxu0 0
    %3620 = vmatpush1.bf16.msra.mxu0 0
    %3621 = vmatprep.mubr.bf16.mxu0 0
    %3622 = vmatmul.mubr.bf16.gmra.mrb[0].mxu0 %v3331
    %v3623 = vpop.f32.mrb[0].mxu0
    %v3624 = vadd.f32 0.0, %v3623
    %v3625 = vpop.f32.mrb[0].mxu0
    %v3626 = vpop.f32.mrb[0].mxu0
    %v3627 = vpop.f32.mrb[0].mxu0
    %3628 = vdwg.mxu0
    %v3630 = vsel %vm1662, %v3588, 0
    %3632 = vmatprep.subr.bf16.mxu0 0
    %3633 = vmatpush1.bf16.msra.mxu0 %v1654
    %3634 = vmatprep.subr.bf16.mxu0 0
    %3635 = vmatpush1.bf16.msra.mxu0 %v1655
    %3636 = vmatprep.subr.bf16.mxu0 0
    %3637 = vmatpush1.bf16.msra.mxu0 %v1656
    %3638 = vmatprep.subr.bf16.mxu0 0
    %3639 = vmatpush1.bf16.msra.mxu0 %v1657
    %3640 = vmatprep.subr.bf16.mxu0 0
    %3641 = vmatpush1.bf16.msra.mxu0 0
    %3642 = vmatprep.subr.bf16.mxu0 0
    %3643 = vmatpush1.bf16.msra.mxu0 0
    %3644 = vmatprep.subr.bf16.mxu0 0
    %3645 = vmatpush1.bf16.msra.mxu0 0
    %3646 = vmatprep.subr.bf16.mxu0 0
    %3647 = vmatpush1.bf16.msra.mxu0 0
    %3648 = vmatprep.subr.bf16.mxu0 0
    %3649 = vmatpush1.bf16.msra.mxu0 0
    %3650 = vmatprep.subr.bf16.mxu0 0
    %3651 = vmatpush1.bf16.msra.mxu0 0
    %3652 = vmatprep.subr.bf16.mxu0 0
    %3653 = vmatpush1.bf16.msra.mxu0 0
    %3654 = vmatprep.subr.bf16.mxu0 0
    %3655 = vmatpush1.bf16.msra.mxu0 0
    %3656 = vmatprep.subr.bf16.mxu0 0
    %3657 = vmatpush1.bf16.msra.mxu0 0
    %3658 = vmatprep.subr.bf16.mxu0 0
    %3659 = vmatpush1.bf16.msra.mxu0 0
    %3660 = vmatprep.subr.bf16.mxu0 0
    %3661 = vmatpush1.bf16.msra.mxu0 0
    %3662 = vmatprep.subr.bf16.mxu0 0
    %3663 = vmatpush1.bf16.msra.mxu0 0
    %3664 = vmatprep.mubr.bf16.mxu0 0
    %3665 = vmatmul.mubr.bf16.gmra.mrb[0].mxu0 %v3630
    %v3666 = vpop.f32.mrb[0].mxu0
    %v3667 = vadd.f32 %v3624, %v3666
    %v3668 = vpop.f32.mrb[0].mxu0
    %v3669 = vpop.f32.mrb[0].mxu0
    %v3670 = vpop.f32.mrb[0].mxu0
    %3671 = vdwg.mxu0
    %v3672 = vadd.f32 %v3667, %v1555
    %v3673 = vxor.u32 %v3672, 2147483648
    %v3674 = vmul.f32 %v3673, 1.442695
    %v3675 = vpow.pop %v3674
    %v3676 = vadd.f32 %v3675, 1.0
    %v3677 = vrcp.pop %v3676
    %v3678 = vmul.f32 1.0, %v3677
    %3680 = vrot.lane.b32.xlu0 %v3672, 32
    %v3681 = vpop.permute.xlu0 %3680
    %v3683 = vmul.f32 %v3678, %v3681
    %3685 = vrot.lane.b32.xlu0 %v3683, 64
    %v3686 = vpop.permute.xlu0 %3685
    %v3688 = vadd.f32 %v3672, %v3686
    %v3689 = vtanh.pop %v3688
    %v3690 = vsub.f32 1.0, %v3678
    %3692 = vrot.lane.b32.xlu0 %v3689, 96
    %v3693 = vpop.permute.xlu0 %3692
    %v3695 = vmul.f32 %v3690, %v3693
    %v3696 = vmul.f32 %v3678, %v3325
    %v3697 = vadd.f32 %v3695, %v3696
    %v3698 = vpack.c.bf16 %v3697, %v3697
    %3700 = vrot.lane.b32.xlu0 %v3698, 96
    %v3701 = vpop.permute.xlu0 %3700
    %v3703 = vsel %vm48, %v3701, 0
    %3705 = vmatprep.subr.bf16.mxu0 0
    %3706 = vmatpush1.bf16.msra.mxu0 %v1553
    %3707 = vmatprep.subr.bf16.mxu0 0
    %3708 = vmatpush1.bf16.msra.mxu0 %v1554
    %3709 = vmatprep.subr.bf16.mxu0 0
    %3710 = vmatpush1.bf16.msra.mxu0 0
    %3711 = vmatprep.subr.bf16.mxu0 0
    %3712 = vmatpush1.bf16.msra.mxu0 0
    %3713 = vmatprep.subr.bf16.mxu0 0
    %3714 = vmatpush1.bf16.msra.mxu0 0
    %3715 = vmatprep.subr.bf16.mxu0 0
    %3716 = vmatpush1.bf16.msra.mxu0 0
    %3717 = vmatprep.subr.bf16.mxu0 0
    %3718 = vmatpush1.bf16.msra.mxu0 0
    %3719 = vmatprep.subr.bf16.mxu0 0
    %3720 = vmatpush1.bf16.msra.mxu0 0
    %3721 = vmatprep.subr.bf16.mxu0 0
    %3722 = vmatpush1.bf16.msra.mxu0 0
    %3723 = vmatprep.subr.bf16.mxu0 0
    %3724 = vmatpush1.bf16.msra.mxu0 0
    %3725 = vmatprep.subr.bf16.mxu0 0
    %3726 = vmatpush1.bf16.msra.mxu0 0
    %3727 = vmatprep.subr.bf16.mxu0 0
    %3728 = vmatpush1.bf16.msra.mxu0 0
    %3729 = vmatprep.subr.bf16.mxu0 0
    %3730 = vmatpush1.bf16.msra.mxu0 0
    %3731 = vmatprep.subr.bf16.mxu0 0
    %3732 = vmatpush1.bf16.msra.mxu0 0
    %3733 = vmatprep.subr.bf16.mxu0 0
    %3734 = vmatpush1.bf16.msra.mxu0 0
    %3735 = vmatprep.subr.bf16.mxu0 0
    %3736 = vmatpush1.bf16.msra.mxu0 0
    %3737 = vmatprep.mubr.bf16.mxu0 0
    %3738 = vmatmul.mubr.bf16.gmra.mrb[0].mxu0 %v3703
    %v3739 = vpop.f32.mrb[0].mxu0
    %v3740 = vadd.f32 0.0, %v3739
    %v3741 = vpop.f32.mrb[0].mxu0
    %v3742 = vpop.f32.mrb[0].mxu0
    %v3743 = vpop.f32.mrb[0].mxu0
    %3744 = vdwg.mxu0
    %v3745 = vsel %vm1782, %v3740, -inf
    %3746 = vmax.xlane.f32.xlu0 %v3745
    %v3747 = vpop.xlane.xlu0 %3746
    %v3748 = vsub.f32 %v3740, %v3747
    %v3749 = vmul.f32 %v3748, 1.442695
    %v3750 = vpow.pop %v3749
    %v3751 = vsel %vm1782, %v3750, 0.0
    %3752 = vadd.xlane.f32.xlu0 %v3751
    %v3753 = vpop.xlane.xlu0 %3752
    %v3754 = vrcp.pop %v3753
    %v3755 = vmul.f32 %v3750, %v3754
    %v3756 = vpack.c.bf16 %v3755, %v3755
    %v3758 = vsel %vm1798, %v3756, 0
    %3760 = vmatprep.subr.bf16.mxu0 0
    %3761 = vmatpush1.bf16.msra.mxu0 %v1803
    %3762 = vmatprep.subr.bf16.mxu0 0
    %3763 = vmatpush1.bf16.msra.mxu0 0
    %3764 = vmatprep.subr.bf16.mxu0 0
    %3765 = vmatpush1.bf16.msra.mxu0 0
    %3766 = vmatprep.subr.bf16.mxu0 0
    %3767 = vmatpush1.bf16.msra.mxu0 0
    %3768 = vmatprep.subr.bf16.mxu0 0
    %3769 = vmatpush1.bf16.msra.mxu0 0
    %3770 = vmatprep.subr.bf16.mxu0 0
    %3771 = vmatpush1.bf16.msra.mxu0 0
    %3772 = vmatprep.subr.bf16.mxu0 0
    %3773 = vmatpush1.bf16.msra.mxu0 0
    %3774 = vmatprep.subr.bf16.mxu0 0
    %3775 = vmatpush1.bf16.msra.mxu0 0
    %3776 = vmatprep.subr.bf16.mxu0 0
    %3777 = vmatpush1.bf16.msra.mxu0 0
    %3778 = vmatprep.subr.bf16.mxu0 0
    %3779 = vmatpush1.bf16.msra.mxu0 0
    %3780 = vmatprep.subr.bf16.mxu0 0
    %3781 = vmatpush1.bf16.msra.mxu0 0
    %3782 = vmatprep.subr.bf16.mxu0 0
    %3783 = vmatpush1.bf16.msra.mxu0 0
    %3784 = vmatprep.subr.bf16.mxu0 0
    %3785 = vmatpush1.bf16.msra.mxu0 0
    %3786 = vmatprep.subr.bf16.mxu0 0
    %3787 = vmatpush1.bf16.msra.mxu0 0
    %3788 = vmatprep.subr.bf16.mxu0 0
    %3789 = vmatpush1.bf16.msra.mxu0 0
    %3790 = vmatprep.subr.bf16.mxu0 0
    %3791 = vmatpush1.bf16.msra.mxu0 0
    %3792 = vmatprep.mubr.bf16.mxu0 0
    %3793 = vmatmul.mubr.bf16.gmra.mrb[0].mxu0 %v3758
    %v3794 = vpop.f32.mrb[0].mxu0
    %v3795 = vadd.f32 0.0, %v3794
    %v3796 = vpop.f32.mrb[0].mxu0
    %v3797 = vpop.f32.mrb[0].mxu0
    %v3798 = vpop.f32.mrb[0].mxu0
    %3799 = vdwg.mxu0
    %v3800 = vpack.c.bf16 %v3795, %v3795
    %v3802 = vsel %vm48, %v3800, 0
    %3804 = vmatprep.subr.bf16.mxu0 0
    %3805 = vmatpush1.bf16.msra.mxu0 %v1862
    %3806 = vmatprep.subr.bf16.mxu0 0
    %3807 = vmatpush1.bf16.msra.mxu0 %v1863
    %3808 = vmatprep.subr.bf16.mxu0 0
    %3809 = vmatpush1.bf16.msra.mxu0 0
    %3810 = vmatprep.subr.bf16.mxu0 0
    %3811 = vmatpush1.bf16.msra.mxu0 0
    %3812 = vmatprep.subr.bf16.mxu0 0
    %3813 = vmatpush1.bf16.msra.mxu0 0
    %3814 = vmatprep.subr.bf16.mxu0 0
    %3815 = vmatpush1.bf16.msra.mxu0 0
    %3816 = vmatprep.subr.bf16.mxu0 0
    %3817 = vmatpush1.bf16.msra.mxu0 0
    %3818 = vmatprep.subr.bf16.mxu0 0
    %3819 = vmatpush1.bf16.msra.mxu0 0
    %3820 = vmatprep.subr.bf16.mxu0 0
    %3821 = vmatpush1.bf16.msra.mxu0 0
    %3822 = vmatprep.subr.bf16.mxu0 0
    %3823 = vmatpush1.bf16.msra.mxu0 0
    %3824 = vmatprep.subr.bf16.mxu0 0
    %3825 = vmatpush1.bf16.msra.mxu0 0
    %3826 = vmatprep.subr.bf16.mxu0 0
    %3827 = vmatpush1.bf16.msra.mxu0 0
    %3828 = vmatprep.subr.bf16.mxu0 0
    %3829 = vmatpush1.bf16.msra.mxu0 0
    %3830 = vmatprep.subr.bf16.mxu0 0
    %3831 = vmatpush1.bf16.msra.mxu0 0
    %3832 = vmatprep.subr.bf16.mxu0 0
    %3833 = vmatpush1.bf16.msra.mxu0 0
    %3834 = vmatprep.subr.bf16.mxu0 0
    %3835 = vmatpush1.bf16.msra.mxu0 0
    %3836 = vmatprep.mubr.bf16.mxu0 0
    %3837 = vmatmul.mubr.bf16.gmra.mrb[0].mxu0 %v3802
    %v3838 = vpop.f32.mrb[0].mxu0
    %v3839 = vadd.f32 0.0, %v3838
    %v3840 = vpop.f32.mrb[0].mxu0
    %v3841 = vpop.f32.mrb[0].mxu0
    %v3842 = vpop.f32.mrb[0].mxu0
    %3843 = vdwg.mxu0
    %3844 = vmatprep.subr.bf16.mxu0 0
    %3845 = vmatpush1.bf16.msra.mxu0 %v1917
    %3846 = vmatprep.subr.bf16.mxu0 0
    %3847 = vmatpush1.bf16.msra.mxu0 %v1918
    %3848 = vmatprep.subr.bf16.mxu0 0
    %3849 = vmatpush1.bf16.msra.mxu0 0
    %3850 = vmatprep.subr.bf16.mxu0 0
    %3851 = vmatpush1.bf16.msra.mxu0 0
    %3852 = vmatprep.subr.bf16.mxu0 0
    %3853 = vmatpush1.bf16.msra.mxu0 0
    %3854 = vmatprep.subr.bf16.mxu0 0
    %3855 = vmatpush1.bf16.msra.mxu0 0
    %3856 = vmatprep.subr.bf16.mxu0 0
    %3857 = vmatpush1.bf16.msra.mxu0 0
    %3858 = vmatprep.subr.bf16.mxu0 0
    %3859 = vmatpush1.bf16.msra.mxu0 0
    %3860 = vmatprep.subr.bf16.mxu0 0
    %3861 = vmatpush1.bf16.msra.mxu0 0
    %3862 = vmatprep.subr.bf16.mxu0 0
    %3863 = vmatpush1.bf16.msra.mxu0 0
    %3864 = vmatprep.subr.bf16.mxu0 0
    %3865 = vmatpush1.bf16.msra.mxu0 0
    %3866 = vmatprep.subr.bf16.mxu0 0
    %3867 = vmatpush1.bf16.msra.mxu0 0
    %3868 = vmatprep.subr.bf16.mxu0 0
    %3869 = vmatpush1.bf16.msra.mxu0 0
    %3870 = vmatprep.subr.bf16.mxu0 0
    %3871 = vmatpush1.bf16.msra.mxu0 0
    %3872 = vmatprep.subr.bf16.mxu0 0
    %3873 = vmatpush1.bf16.msra.mxu0 0
    %3874 = vmatprep.subr.bf16.mxu0 0
    %3875 = vmatpush1.bf16.msra.mxu0 0
    %3876 = vmatprep.mubr.bf16.mxu0 0
    %3877 = vmatmul.mubr.bf16.gmra.mrb[0].mxu0 %v3703
    %v3878 = vpop.f32.mrb[0].mxu0
    %v3879 = vadd.f32 %v3839, %v3878
    %v3880 = vpop.f32.mrb[0].mxu0
    %v3881 = vpop.f32.mrb[0].mxu0
    %v3882 = vpop.f32.mrb[0].mxu0
    %3883 = vdwg.mxu0
    %v3884 = vadd.f32 %v3879, %v1556
    %v3885 = vtanh.pop %v3884
    %v3886 = vpack.c.bf16 %v3885, %v3885
    %3887 = vmatprep.subr.bf16.mxu0 0
    %3888 = vmatpush1.bf16.msra.mxu0 %v2012
    %3889 = vmatprep.subr.bf16.mxu0 0
    %3890 = vmatpush1.bf16.msra.mxu0 %v2013
    %3891 = vmatprep.subr.bf16.mxu0 0
    %3892 = vmatpush1.bf16.msra.mxu0 %v2014
    %3893 = vmatprep.subr.bf16.mxu0 0
    %3894 = vmatpush1.bf16.msra.mxu0 %v2015
    %3895 = vmatprep.subr.bf16.mxu0 0
    %3896 = vmatpush1.bf16.msra.mxu0 %v2016
    %3897 = vmatprep.subr.bf16.mxu0 0
    %3898 = vmatpush1.bf16.msra.mxu0 %v2017
    %3899 = vmatprep.subr.bf16.mxu0 0
    %3900 = vmatpush1.bf16.msra.mxu0 %v2018
    %3901 = vmatprep.subr.bf16.mxu0 0
    %3902 = vmatpush1.bf16.msra.mxu0 %v2019
    %3903 = vmatprep.subr.bf16.mxu0 0
    %3904 = vmatpush1.bf16.msra.mxu0 0
    %3905 = vmatprep.subr.bf16.mxu0 0
    %3906 = vmatpush1.bf16.msra.mxu0 0
    %3907 = vmatprep.subr.bf16.mxu0 0
    %3908 = vmatpush1.bf16.msra.mxu0 0
    %3909 = vmatprep.subr.bf16.mxu0 0
    %3910 = vmatpush1.bf16.msra.mxu0 0
    %3911 = vmatprep.subr.bf16.mxu0 0
    %3912 = vmatpush1.bf16.msra.mxu0 0
    %3913 = vmatprep.subr.bf16.mxu0 0
    %3914 = vmatpush1.bf16.msra.mxu0 0
    %3915 = vmatprep.subr.bf16.mxu0 0
    %3916 = vmatpush1.bf16.msra.mxu0 0
    %3917 = vmatprep.subr.bf16.mxu0 0
    %3918 = vmatpush1.bf16.msra.mxu0 0
    %3919 = vmatprep.mubr.bf16.mxu0 0
    %3920 = vmatmul.mubr.bf16.gmra.mrb[0].mxu0 %v3886
    %v3921 = vpop.f32.mrb[0].mxu0
    %v3922 = vadd.f32 %v1557, %v3921
    %v3923 = vpop.f32.mrb[0].mxu0
    %v3924 = vpop.f32.mrb[0].mxu0
    %v3925 = vpop.f32.mrb[0].mxu0
    %3926 = vdwg.mxu0
    %v3927 = vsel %vm1494, %v3922, -inf
    %3928 = vmax.xlane.f32.xlu0 %v3927
    %v3929 = vpop.xlane.xlu0 %3928
    %v3930 = vsub.f32 %v3922, %v3929
    %v3931 = vmul.f32 %v3930, 1.442695
    %v3932 = vpow.pop %v3931
    %v3933 = vsel %vm1494, %v3932, 0.0
    %3934 = vadd.xlane.f32.xlu0 %v3933
    %v3935 = vpop.xlane.xlu0 %3934
    %v3936 = vrcp.pop %v3935
    %vm3937 = vcmp.ge.f32.partialorder %v3922, %v3929
    %v3938 = vsel %vm3937, %v1559, 128
    %v3939 = vsel %vm1494, %v3938, 2147483647
    %v3940 = vand.u32 %v3939, 65535
    %v3941 = vshra.s32 %v3939, 16
    %v3942 = vcvt.s32.f32 %v3940
    %v3943 = vcvt.s32.f32 %v3941
    %3944 = vmin.xlane.f32.xlu0 %v3943
    %v3945 = vpop.xlane.xlu0 %3944
    %vm3946 = vcmp.eq.f32.partialorder %v3943, %v3945
    %v3947 = vsel %vm3946, %v3942, inf
    %3948 = vmin.xlane.f32.xlu0 %v3947
    %v3949 = vpop.xlane.xlu0 %3948
    %v3950 = vcvt.f32.s32 %v3949
    %v3951 = vcvt.f32.s32 %v3945
    %v3952 = vshll.u32 %v3951, 16
    %v3953 = vadd.s32 %v3952, %v3950
    %vm3954 = vcmp.eq.s32.totalorder %v1559, 5
    %v3955 = vsel %vm3954, %v3953, %v3583
    %v3956 = vsel %vm3954, %v3936, %v3584
    %3957 = vst [vmem:[%s3] sm:$0x1] %v3955
    %3958 = vst [vmem:[%s4] sm:$0x1] %v3956
    // Predicated region
    $region18: #{greedy_search_decoder.1} parent=1 // pred_check
      _
    $region19: #{greedy_search_decoder.1} parent=1 // pred_check_branch
      %3960 = sbr.rel (0) target = $region21
    $region20: #{greedy_search_decoder.1} parent=1 // pred_region
      _
    $region21: #{greedy_search_decoder.1} parent=1 // pred_fallthru
      _
    // Predicated region
    $region22: #{greedy_search_decoder.1} parent=1 // pred_check
      _
    $region23: #{greedy_search_decoder.1} parent=1 // pred_check_branch
      %3962 = sbr.rel (0) target = $region25
    $region24: #{greedy_search_decoder.1} parent=1 // pred_region
      _
    $region25: #{greedy_search_decoder.1} parent=1 // pred_fallthru
      _
    // Predicated region
    $region26: #{greedy_search_decoder.1} parent=1 // pred_check
      _
    $region27: #{greedy_search_decoder.1} parent=1 // pred_check_branch
      %3964 = sbr.rel (0) target = $region29
    $region28: #{greedy_search_decoder.1} parent=1 // pred_region
      _
    $region29: #{greedy_search_decoder.1} parent=1 // pred_fallthru
      _
    // Predicated region
    $region30: #{greedy_search_decoder.1} parent=1 // pred_check
      _
    $region31: #{greedy_search_decoder.1} parent=1 // pred_check_branch
      %3966 = sbr.rel (0) target = $region33
    $region32: #{greedy_search_decoder.1} parent=1 // pred_region
      _
    $region33: #{greedy_search_decoder.1} parent=1 // pred_fallthru
      _
    %3967 = vsyncpa [#allocation3], 1

</llo_original>
